<compile_context>
chip_gen: v6e
topology: v6e:2x2x1
jax: 0.10.0
libtpu: 0.0.40
codegen_flags: <defaults>
</compile_context>

<pallas_src>
import functools

import jax
import jax.numpy as jnp
from jax.experimental import pallas as pl
from jax.experimental.pallas import tpu as pltpu


LANE = 128
NEG_BIG = -1e30          # plain Python float: compile-time constant, NOT captured


def _round_up(x, m):
    return ((x + m - 1) // m) * m


def _pad2d(x, rows, cols):
    r, c = x.shape
    if r == rows and c == cols:
        return x
    return jnp.pad(x, ((0, rows - r), (0, cols - c)))


def _vmem_budgets():
    """(vmem_limit_bytes, weight_tile_budget_bytes) per TPU generation."""
    cap = 0
    try:
        info = pltpu.get_tpu_info()
        for name in ("vmem_capacity_bytes", "vmem_size_bytes", "vmem_bytes"):
            v = getattr(info, name, None)
            if v:
                cap = int(v)
                break
    except Exception:
        cap = 0
    if cap >= 120 * 1024 * 1024:                  # v5e / v6e: 128 MiB per TC
        return 100 * 1024 * 1024, 80 * 1024 * 1024
    # v7x (64 MiB per TC) and unknown/interpret fallback: stay conservative.
    return 48 * 1024 * 1024, 36 * 1024 * 1024


def _choose_tile_min_pad(dim, cap, lo):
    """Multiple-of-128 tile in [lo, cap] minimizing round_up(dim, t); ties -> larger."""
    cap = max(LANE, (cap // LANE) * LANE)
    lo = max(LANE, min((lo // LANE) * LANE, cap))
    best_key, best_t = None, LANE
    for t in range(lo, cap + 1, LANE):
        key = (_round_up(dim, t), -t)
        if best_key is None or key < best_key:
            best_key, best_t = key, t
    return best_t


def _largest_divisor_tile(total, cap):
    """Largest multiple-of-128 tile <= cap that evenly divides `total` (a 128-mult)."""
    cap = max(LANE, min(cap, total))
    units = total // LANE
    best = LANE
    d = 1
    while d * d <= units:
        if units % d == 0:
            for dd in (d, units // d):
                t = dd * LANE
                if t <= cap:
                    best = max(best, t)
        d += 1
    return best


def _block_weights(w, tk, tn):
    """(K, N) -> (N/tn, K/tk, tk, tn) so each streamed tile is one contiguous DMA."""
    K, N = w.shape
    kb, nb = K // tk, N // tn
    return w.reshape(kb, tk, nb, tn).transpose(2, 0, 1, 3)


# ----------------------------------------------------------------------------
# Kernel 1: fused value head
#   v = tanh( relu(x @ W1 + b1) @ W2 + b2 )      (dropout = identity, eval mode)
# fc2 is a VPU broadcast-multiply + row-sum on the resident f32 accumulator.
# ----------------------------------------------------------------------------
def _value_head_kernel(x_ref, w1_ref, b1_ref, w2_ref, b2_ref, v_ref, acc_ref):
    k = pl.program_id(1)

    @pl.when(k == 0)
    def _():
        acc_ref[...] = jnp.zeros_like(acc_ref)

    acc_ref[...] += jnp.dot(x_ref[...], w1_ref[...],
                            preferred_element_type=jnp.float32)

    @pl.when(k == pl.num_programs(1) - 1)
    def _():
        h = jnp.maximum(acc_ref[...] + b1_ref[...].astype(jnp.float32), 0.0)
        # Dropout(p=0.3): identity in eval mode.
        # TODO(synk): training-mode stochastic dropout (pltpu PRNG) not implemented.
        vpre = jnp.sum(h * w2_ref[...].astype(jnp.float32), axis=-1, keepdims=True)
        v_ref[...] = jnp.tanh(vpre + b2_ref[0, 0]).astype(v_ref.dtype)


def _value_head_call(x, w1, b1, w2row, b2, *, tm, tk, vmem_limit):
    mp, kp = x.shape
    hp = w1.shape[1]
    return pl.pallas_call(
        _value_head_kernel,
        out_shape=jax.ShapeDtypeStruct((mp, 1), jnp.float32),
        grid_spec=pltpu.PrefetchScalarGridSpec(
            num_scalar_prefetch=0,
            grid=(mp // tm, kp // tk),
            in_specs=[
                pl.BlockSpec((tm, tk), lambda i, k: (i, k)),
                pl.BlockSpec((tk, hp), lambda i, k: (k, 0)),
                pl.BlockSpec((1, hp), lambda i, k: (0, 0)),
                pl.BlockSpec((1, hp), lambda i, k: (0, 0)),
                pl.BlockSpec(memory_space=pltpu.MemorySpace.SMEM),   # b2 scalar
            ],
            out_specs=pl.BlockSpec((tm, 1), lambda i, k: (i, 0)),
            scratch_shapes=[pltpu.VMEM((tm, hp), jnp.float32)],
        ),
        compiler_params=pltpu.CompilerParams(
            dimension_semantics=("parallel", "arbitrary"),
            vmem_limit_bytes=vmem_limit,
        ),
    )(x, w1, b1, w2row, b2)


# ----------------------------------------------------------------------------
# Kernel 2: linear + relu (policy head first layer, `fc`)
# Weight comes pre-blocked (Nblk, Kblk, tk, tn): each tile is one contiguous DMA.
# ----------------------------------------------------------------------------
def _linear_relu_kernel(x_ref, w_ref, b_ref, o_ref, acc_ref):
    k = pl.program_id(2)

    @pl.when(k == 0)
    def _():
        acc_ref[...] = jnp.zeros_like(acc_ref)

    acc_ref[...] += jnp.dot(x_ref[...], w_ref[0, 0],
                            preferred_element_type=jnp.float32)

    @pl.when(k == pl.num_programs(2) - 1)
    def _():
        y = jnp.maximum(acc_ref[...] + b_ref[...].astype(jnp.float32), 0.0)
        # Dropout(p=0.3): identity in eval mode.
        o_ref[...] = y.astype(o_ref.dtype)


def _linear_relu_call(x, w_blocked, b, *, tm, tn, tk, out_dtype, vmem_limit):
    mp, kp = x.shape
    nb, kb, _, _ = w_blocked.shape
    np_ = nb * tn
    return pl.pallas_call(
        _linear_relu_kernel,
        out_shape=jax.ShapeDtypeStruct((mp, np_), out_dtype),
        grid_spec=pltpu.PrefetchScalarGridSpec(
            num_scalar_prefetch=0,
            grid=(mp // tm, nb, kb),
            in_specs=[
                pl.BlockSpec((tm, tk), lambda i, j, k: (i, k)),
                pl.BlockSpec((1, 1, tk, tn), lambda i, j, k: (j, k, 0, 0)),
                pl.BlockSpec((1, tn), lambda i, j, k: (0, j)),
            ],
            out_specs=pl.BlockSpec((tm, tn), lambda i, j, k: (i, j)),
            scratch_shapes=[pltpu.VMEM((tm, tn), jnp.float32)],
        ),
        compiler_params=pltpu.CompilerParams(
            dimension_semantics=("parallel", "parallel", "arbitrary"),
            vmem_limit_bytes=vmem_limit,
        ),
    )(x, w_blocked, b)


# ----------------------------------------------------------------------------
# Kernel 3: linear + row softmax fused (fcinter + logsoftmax.exp)
# Output block covers the full (padded) row; padded columns are masked.
# ----------------------------------------------------------------------------
def _linear_softmax_kernel(x_ref, w_ref, b_ref, o_ref, acc_ref, *, n_valid):
    k = pl.program_id(1)

    @pl.when(k == 0)
    def _():
        acc_ref[...] = jnp.zeros_like(acc_ref)

    acc_ref[...] += jnp.dot(x_ref[...], w_ref[...],
                            preferred_element_type=jnp.float32)

    @pl.when(k == pl.num_programs(1) - 1)
    def _():
        logits = acc_ref[...] + b_ref[...].astype(jnp.float32)
        if n_valid < logits.shape[-1]:
            col = jax.lax.broadcasted_iota(jnp.int32, logits.shape, 1)
            logits = jnp.where(col < n_valid, logits, NEG_BIG)
        m = jnp.max(logits, axis=-1, keepdims=True)
        e = jnp.exp(logits - m)
        s = jnp.sum(e, axis=-1, keepdims=True)
        inv = 1.0 / s                      # (tm, 1): negligible vs weight stream
        o_ref[...] = (e * inv).astype(o_ref.dtype)


def _linear_softmax_call(x, w, b, *, tm, tk, n_valid, vmem_limit):
    mp, kp = x.shape
    np_ = w.shape[1]
    kernel = functools.partial(_linear_softmax_kernel, n_valid=n_valid)
    return pl.pallas_call(
        kernel,
        out_shape=jax.ShapeDtypeStruct((mp, np_), jnp.float32),
        grid_spec=pltpu.PrefetchScalarGridSpec(
            num_scalar_prefetch=0,
            grid=(mp // tm, kp // tk),
            in_specs=[
                pl.BlockSpec((tm, tk), lambda i, k: (i, k)),
                pl.BlockSpec((tk, np_), lambda i, k: (k, 0)),
                pl.BlockSpec((1, np_), lambda i, k: (0, 0)),
            ],
            out_specs=pl.BlockSpec((tm, np_), lambda i, k: (i, 0)),
            scratch_shapes=[pltpu.VMEM((tm, np_), jnp.float32)],
        ),
        compiler_params=pltpu.CompilerParams(
            dimension_semantics=("parallel", "arbitrary"),
            vmem_limit_bytes=vmem_limit,
        ),
    )(x, w, b)


# ----------------------------------------------------------------------------
# OutBlock module. The PyTorch module hard-codes shape1=24624 / shape=23436;
# sizes are parameters here so the demo runs small, but padding/masking makes
# the kernels valid at the real (non-128-aligned) dimensions too.
# ----------------------------------------------------------------------------
class OutBlockPallas:
    def __init__(self, key, shape1=2048, shape=1536, hidden=512,
                 param_dtype=jnp.float32, compute_dtype=jnp.bfloat16):
        self.shape1, self.shape, self.hidden = shape1, shape, hidden
        self.compute_dtype = compute_dtype
        ebytes = jnp.dtype(compute_dtype).itemsize
        self.vmem_limit, weight_budget = _vmem_budgets()

        def init_linear(k, fan_in, fan_out):
            # PyTorch nn.Linear default: U(-1/sqrt(fan_in), 1/sqrt(fan_in))
            kw, kb = jax.random.split(k)
            bound = 1.0 / (fan_in ** 0.5)
            w_t = jax.random.uniform(kw, (fan_in, fan_out), param_dtype,
                                     minval=-bound, maxval=bound)
            b = jax.random.uniform(kb, (fan_out,), param_dtype,
                                   minval=-bound, maxval=bound)
            return w_t, b

        k1, k2, k3, k4 = jax.random.split(key, 4)
        w1_t, b1 = init_linear(k1, shape1, hidden)   # fc1 (stored transposed)
        w2_t, b2 = init_linear(k2, hidden, 1)        # fc2
        wf_t, bf = init_linear(k3, shape1, shape1)   # fc
        wi_t, bi = init_linear(k4, shape1, shape)    # fcinter
        self._raw = dict(w1=w1_t, b1=b1, w2=w2_t, b2=b2,
                         wf=wf_t, bf=bf, wi=wi_t, bi=bi)

        h_pad = _round_up(hidden, LANE)

        # Shared square tile over K=shape1 (fc K and N): min-pad search so the
        # real shape1=24624 pads to 24960 (tile 1920), not 26624 (tile 2048).
        t_cap = min(2048, _round_up(shape1, LANE))
        t_lo = max(LANE, min(1024, t_cap))
        t_shared = _choose_tile_min_pad(shape1, t_cap, t_lo)
        self.tk_x = self.tn_q = t_shared
        self.k_pad_x = self.n_pad_q = _round_up(shape1, t_shared)

        # Value head: its own (larger) K tile — a divisor of the padded K.
        cap_v = min(8192, max(LANE, (weight_budget // (2 * h_pad * ebytes))
                              // LANE * LANE))
        self.tk_v = _largest_divisor_tile(self.k_pad_x, cap_v)
        self.w1 = _pad2d(w1_t.astype(compute_dtype), self.k_pad_x, h_pad)
        self.b1 = _pad2d(b1.reshape(1, -1).astype(jnp.float32), 1, h_pad)
        self.w2row = _pad2d(w2_t.reshape(1, -1).astype(jnp.float32), 1, h_pad)
        self.b2 = b2.reshape(1, 1).astype(jnp.float32)        # scalar -> SMEM

        # Policy first layer (fc): blocked weight layout -> contiguous tile DMAs.
        wf_pad = _pad2d(wf_t.astype(compute_dtype), self.k_pad_x, self.n_pad_q)
        self.wf_blocked = _block_weights(wf_pad, self.tk_x, self.tn_q)
        self.bf = _pad2d(bf.reshape(1, -1).astype(jnp.float32), 1, self.n_pad_q)

        # Policy second layer (fcinter + softmax): full-row output block; K tile
        # sized from the per-generation weight budget (640 v5e/v6e, 384 v7x at
        # the real module dims).
        self.n_pad_p = _round_up(shape, LANE)
        cap_p = max(LANE, (weight_budget // (2 * self.n_pad_p * ebytes))
                    // LANE * LANE)
        tk_p = _largest_divisor_tile(self.n_pad_q, cap_p)
        if tk_p < cap_p // 2 and cap_p <= self.n_pad_q:
            tk_p = cap_p                        # unfriendly divisors: pad instead
        self.tk_p = tk_p
        self.k_pad_p = _round_up(self.n_pad_q, tk_p)
        self.wi = _pad2d(wi_t.astype(compute_dtype), self.k_pad_p, self.n_pad_p)
        self.bi = _pad2d(bi.reshape(1, -1).astype(jnp.float32), 1, self.n_pad_p)
        # TODO(synk): int8 (v5e/v6e) / fp8 (v7x) weight streaming with per-tile
        # scales would roughly halve the streamed bytes of wf/wi.

    def __call__(self, s):
        x = s.reshape(-1, self.shape1)
        m = x.shape[0]
        # Pad batch so bf16 LHS tiles fill packed sublane pairs (16 rows).
        m_align = 8 * (4 // jnp.dtype(self.compute_dtype).itemsize)
        m_pad = _round_up(m, m_align)
        if m_pad <= 256:
            tm = m_pad                        # whole batch in one tile
        else:
            tm = 128
            m_pad = _round_up(m, tm)
        xc = _pad2d(x.astype(self.compute_dtype), m_pad, self.k_pad_x)

        # value head: tanh(fc2(drop(relu(fc1(x))))) — single fused kernel
        v = _value_head_call(xc, self.w1, self.b1, self.w2row, self.b2,
                             tm=tm, tk=self.tk_v, vmem_limit=self.vmem_limit)

        # policy head layer 1: q = drop(relu(fc(x)))
        q = _linear_relu_call(xc, self.wf_blocked, self.bf, tm=tm, tn=self.tn_q,
                              tk=self.tk_x, out_dtype=self.compute_dtype,
                              vmem_limit=self.vmem_limit)

        # policy head layer 2 + softmax: softmax(fcinter(q)) — fused epilogue
        if q.shape[1] != self.k_pad_p:
            q = _pad2d(q, m_pad, self.k_pad_p)
        # Cap tm for this kernel so the full-row f32 accumulator/output buffers
        # stay small next to the big wi weight tiles (matters on v7x's 64 MiB).
        tm_p = tm if tm <= 32 else (32 if tm % 32 == 0 else 16)
        p = _linear_softmax_call(q, self.wi, self.bi, tm=tm_p, tk=self.tk_p,
                                 n_valid=self.shape, vmem_limit=self.vmem_limit)
        # TODO(synk): v7x two-TensorCore split of this kernel (split N + second
        # normalization pass) not implemented; one TC idles at batch <= 256.

        return p[:m, :self.shape], v[:m, :]

    # Pure-JAX reference with the same dtype pipeline (bf16 weight streaming,
    # f32 accumulation) for correctness checking.
    def reference(self, s):
        f32, cd = jnp.float32, self.compute_dtype
        hi = jax.lax.Precision.HIGHEST
        r = self._raw
        x = s.reshape(-1, self.shape1).astype(cd).astype(f32)
        w1 = r["w1"].astype(cd).astype(f32)
        wf = r["wf"].astype(cd).astype(f32)
        wi = r["wi"].astype(cd).astype(f32)
        h = jax.nn.relu(jnp.dot(x, w1, precision=hi) + r["b1"])
        v = jnp.tanh(jnp.sum(h * r["w2"].reshape(1, -1), axis=-1, keepdims=True)
                     + r["b2"])
        q = jax.nn.relu(jnp.dot(x, wf, precision=hi) + r["bf"]).astype(cd).astype(f32)
        logits = jnp.dot(q, wi, precision=hi) + r["bi"]
        p = jax.nn.softmax(logits, axis=-1)
        return p, v


if __name__ == "__main__":
    key = jax.random.PRNGKey(0)
    k_params, k_in = jax.random.split(key)

    # Small, deliberately NON-128-aligned stand-ins for the module's real dims
    # (shape1=24624, shape=23436) so the padding/masking path is exercised.
    SHAPE1, SHAPE, HIDDEN = 2000, 1500, 512
    model = OutBlockPallas(k_params, shape1=SHAPE1, shape=SHAPE, hidden=HIDDEN)

    # input s: any shape whose trailing dims flatten to SHAPE1 (module does
    # s.view(-1, shape1)); here (3, 2, 2000) -> batch M = 6 (also unaligned).
    s = jax.random.normal(k_in, (3, 2, SHAPE1), dtype=jnp.float32)

    p, v = model(s)
    p = jax.block_until_ready(p)
    v = jax.block_until_ready(v)

    assert p.shape == (6, SHAPE) and v.shape == (6, 1)

    p_ref, v_ref = model.reference(s)
    assert float(jnp.max(jnp.abs(p - p_ref))) < 2e-3
    assert float(jnp.max(jnp.abs(v - v_ref))) < 2e-3
    # softmax rows sum to 1, tanh output bounded
    assert jnp.allclose(jnp.sum(p, axis=1), 1.0, atol=1e-3)
    assert bool(jnp.all(jnp.abs(v) <= 1.0))

    print("KERNEL_OK")
</pallas_src>

<mosaic_0001>
module attributes {stable_mosaic.version = 11 : i64} {
  func.func @_value_head_kernel(%arg0: i32, %arg1: i32, %arg2: memref<16x2048xbf16, #tpu.memory_space<vmem>>, %arg3: memref<2048x512xbf16, #tpu.memory_space<vmem>>, %arg4: memref<1x512xf32, #tpu.memory_space<vmem>>, %arg5: memref<1x512xf32, #tpu.memory_space<vmem>>, %arg6: memref<1x1xf32, #tpu.memory_space<smem>>, %arg7: memref<16x1xf32, #tpu.memory_space<vmem>>, %arg8: memref<16x512xf32, #tpu.memory_space<vmem>>) attributes {dimension_semantics = [#tpu.dimension_semantics<parallel>, #tpu.dimension_semantics<arbitrary>], iteration_bounds = array<i64: 1, 1>, scalar_prefetch = 0 : i64, scratch_operands = 1 : i64, tpu.core_type = #tpu.core_type<tc>, window_params = [{transform_indices = @transform_0, window_bounds = array<i64: 16, 2048>}, {transform_indices = @transform_1, window_bounds = array<i64: 2048, 512>}, {pipeline_mode = #tpu.pipeline_mode<synchronous>, transform_indices = @transform_2, window_bounds = array<i64: 1, 512>}, {pipeline_mode = #tpu.pipeline_mode<synchronous>, transform_indices = @transform_3, window_bounds = array<i64: 1, 512>}, {transform_indices = @transform_4, window_bounds = array<i64: 1, 1>}, {transform_indices = @transform_5, window_bounds = array<i64: 16, 1>}]} {
    %c0_i32 = arith.constant 0 : i32
    %0 = arith.cmpi eq, %arg1, %c0_i32 : i32
    %1 = arith.extui %0 : i1 to i32
    %c0_i32_0 = arith.constant 0 : i32
    %2 = arith.cmpi ne, %1, %c0_i32_0 : i32
    scf.if %2 {
      %cst_10 = arith.constant 0.000000e+00 : f32
      %12 = vector.broadcast %cst_10 : f32 to vector<16x512xf32>
      %c0_11 = arith.constant 0 : index
      %c0_12 = arith.constant 0 : index
      %13 = vector.load %arg8[%c0_11, %c0_12] : memref<16x512xf32, #tpu.memory_space<vmem>>, vector<16x512xf32>
      tpu.vector_store %arg8[%c0_11, %c0_12], %12 {strides = array<i32>} : memref<16x512xf32, #tpu.memory_space<vmem>>, vector<16x512xf32>,
    } else {
    }
    %c0 = arith.constant 0 : index
    %c0_1 = arith.constant 0 : index
    %3 = vector.load %arg8[%c0, %c0_1] : memref<16x512xf32, #tpu.memory_space<vmem>>, vector<16x512xf32>
    %c0_2 = arith.constant 0 : index
    %c0_3 = arith.constant 0 : index
    %4 = vector.load %arg2[%c0_2, %c0_3] : memref<16x2048xbf16, #tpu.memory_space<vmem>>, vector<16x2048xbf16>
    %c0_4 = arith.constant 0 : index
    %c0_5 = arith.constant 0 : index
    %5 = vector.load %arg3[%c0_4, %c0_5] : memref<2048x512xbf16, #tpu.memory_space<vmem>>, vector<2048x512xbf16>
    %cst = arith.constant dense<0.000000e+00> : vector<16x512xf32>
    %6 = tpu.matmul %4, %5, %cst {dimension_numbers = #tpu.dot_dimension_numbers<[1], [0], [0], [1], [0, 0, 1, 1], [], []>} : vector<16x2048xbf16>, vector<2048x512xbf16>, vector<16x512xf32> -> vector<16x512xf32>
    %7 = arith.addf %3, %6 : vector<16x512xf32>
    %c0_6 = arith.constant 0 : index
    %c0_7 = arith.constant 0 : index
    %8 = vector.load %arg8[%c0_6, %c0_7] : memref<16x512xf32, #tpu.memory_space<vmem>>, vector<16x512xf32>
    tpu.vector_store %arg8[%c0_6, %c0_7], %7 {strides = array<i32>} : memref<16x512xf32, #tpu.memory_space<vmem>>, vector<16x512xf32>,
    %c0_i32_8 = arith.constant 0 : i32
    %9 = arith.cmpi eq, %arg1, %c0_i32_8 : i32
    %10 = arith.extui %9 : i1 to i32
    %c0_i32_9 = arith.constant 0 : i32
    %11 = arith.cmpi ne, %10, %c0_i32_9 : i32
    scf.if %11 {
      %c0_10 = arith.constant 0 : index
      %c0_11 = arith.constant 0 : index
      %12 = vector.load %arg8[%c0_10, %c0_11] : memref<16x512xf32, #tpu.memory_space<vmem>>, vector<16x512xf32>
      %c0_12 = arith.constant 0 : index
      %c0_13 = arith.constant 0 : index
      %13 = vector.load %arg4[%c0_12, %c0_13] : memref<1x512xf32, #tpu.memory_space<vmem>>, vector<1x512xf32>
      %14 = vector.broadcast %13 : vector<1x512xf32> to vector<16x512xf32>
      %15 = arith.addf %12, %14 : vector<16x512xf32>
      %cst_14 = arith.constant 0.000000e+00 : f32
      %16 = vector.broadcast %cst_14 : f32 to vector<16x512xf32>
      %17 = arith.maximumf %15, %16 : vector<16x512xf32>
      %c0_15 = arith.constant 0 : index
      %c0_16 = arith.constant 0 : index
      %18 = vector.load %arg5[%c0_15, %c0_16] : memref<1x512xf32, #tpu.memory_space<vmem>>, vector<1x512xf32>
      %19 = vector.broadcast %18 : vector<1x512xf32> to vector<16x512xf32>
      %20 = arith.mulf %17, %19 : vector<16x512xf32>
      %cst_17 = arith.constant dense<0.000000e+00> : vector<16xf32>
      %21 = vector.multi_reduction <add>, %20, %cst_17 [1] : vector<16x512xf32> to vector<16xf32>
      %22 = vector.shape_cast %21 : vector<16xf32> to vector<16x1xf32>
      %c0_18 = arith.constant 0 : index
      %c0_19 = arith.constant 0 : index
      %23 = memref.load %arg6[%c0_18, %c0_19] : memref<1x1xf32, #tpu.memory_space<smem>>
      %24 = vector.broadcast %23 : f32 to vector<16x1xf32>
      %25 = arith.addf %22, %24 : vector<16x1xf32>
      %26 = math.tanh %25 : vector<16x1xf32>
      %c0_20 = arith.constant 0 : index
      %c0_21 = arith.constant 0 : index
      %27 = vector.load %arg7[%c0_20, %c0_21] : memref<16x1xf32, #tpu.memory_space<vmem>>, vector<16x1xf32>
      tpu.vector_store %arg7[%c0_20, %c0_21], %26 {strides = array<i32>} : memref<16x1xf32, #tpu.memory_space<vmem>>, vector<16x1xf32>,
    } else {
    }
    return
  }
  func.func @transform_0(%arg0: i32, %arg1: i32) -> (i32, i32) {
    %c0_i32 = arith.constant 0 : i32
    return %arg0, %arg1 : i32, i32
  }
  func.func @transform_1(%arg0: i32, %arg1: i32) -> (i32, i32) {
    %c0_i32 = arith.constant 0 : i32
    %c0_i32_0 = arith.constant 0 : i32
    return %arg1, %c0_i32 : i32, i32
  }
  func.func @transform_2(%arg0: i32, %arg1: i32) -> (i32, i32) {
    %c0_i32 = arith.constant 0 : i32
    %c0_i32_0 = arith.constant 0 : i32
    %c0_i32_1 = arith.constant 0 : i32
    return %c0_i32, %c0_i32_0 : i32, i32
  }
  func.func @transform_3(%arg0: i32, %arg1: i32) -> (i32, i32) {
    %c0_i32 = arith.constant 0 : i32
    %c0_i32_0 = arith.constant 0 : i32
    %c0_i32_1 = arith.constant 0 : i32
    return %c0_i32, %c0_i32_0 : i32, i32
  }
  func.func @transform_4(%arg0: i32, %arg1: i32) -> (i32, i32) {
    %c0_i32 = arith.constant 0 : i32
    %c0_i32_0 = arith.constant 0 : i32
    %c0_i32_1 = arith.constant 0 : i32
    return %c0_i32, %c0_i32_0 : i32, i32
  }
  func.func @transform_5(%arg0: i32, %arg1: i32) -> (i32, i32) {
    %c0_i32 = arith.constant 0 : i32
    %c0_i32_0 = arith.constant 0 : i32
    return %arg0, %c0_i32 : i32, i32
  }
}

</mosaic_0001>

<llo_original>
// kernel: tpu_custom_call.1
$region0: #{tpu_custom_call.1}
  #allocation0 [shape = 'u32[]', space=smem, size = 0x4, offset = 0x4, fixed_abs, tag = 'smem constant byte address 0x4 - core index']
  #allocation1 [shape = 'u32[144,128]{1,0:T(1,128)}', space=vmem, size = 0x12000, scoped, tag = 'internal scratch']
  #allocation2 [shape = 'f32[16,512]{1,0:T(8,128)}', space=vmem, size = 0x8000, scoped, tag = 'scratch operand']
  #allocation3 [shape = 'f32[1,1]{1,0:T(1,128)S(6)}', space=smem, size = 0x200, scoped, tag = 'scoped memory for tpu_custom_call.1']
  %s0 = inlined_call_operand.hbm [shape: bf16[16,2048], index: 0, kind: input, shape index: {}]
  %s1 = inlined_call_operand.hbm [shape: bf16[2048,512], index: 1, kind: input, shape index: {}]
  %s2 = inlined_call_operand.hbm [shape: f32[1,512], index: 2, kind: input, shape index: {}]
  %s3 = inlined_call_operand.hbm [shape: f32[1,512], index: 3, kind: input, shape index: {}]
  %s4 = inlined_call_operand.<no memory space> [shape: f32[1,1], index: 4, kind: input, shape index: {}]
  %s5 = inlined_call_operand.vmem [shape: f32[16,1], index: 5, kind: output, shape index: {}]
  %s6 = sld [smem:[#allocation0]]
  $region54: #{tpu_custom_call.1} parent=0
    _
  %s8 = ssub.s32 1, %s6
  %s9 = scalar_select 0, %s8, %s6
  %10 = sst [smem:[#allocation3]] %s4
  $region1: #{tpu_custom_call.1} parent=0
    #allocation4 [shape = 'u8[65536]{0}', space=vmem, size = 0x10000, scoped, tag = 'input window, operand 0, single buffered']
    #allocation5 [shape = 's32[1]{0}', space=sflag, size = 0x4, scoped, tag = 'scoped memory for tpu_custom_call.1']
    #allocation6 [shape = 'u8[2097152]{0}', space=vmem, size = 0x200000, scoped, tag = 'input window, operand 1, single buffered']
    #allocation7 [shape = 's32[1]{0}', space=sflag, size = 0x4, scoped, tag = 'scoped memory for tpu_custom_call.1']
    #allocation8 [shape = 'u8[2048]{0}', space=vmem, size = 0x800, scoped, tag = 'input window, operand 2, single buffered']
    #allocation9 [shape = 'u8[2048]{0}', space=vmem, size = 0x800, scoped, tag = 'input window, operand 3, single buffered']
    #allocation10 [shape = 's32[1]{0}', space=sflag, size = 0x4, scoped, tag = 'scoped memory for tpu_custom_call.1']
    %11 = vsyncpa [#allocation5], 0
    %12 = vsyncpa [#allocation7], 0
    %13 = vsyncpa [#allocation10], 0
    // Predicated region
    $region2: #{tpu_custom_call.1} parent=1 // pred_check
      _
    $region3: #{tpu_custom_call.1} parent=1 // pred_check_branch
      %15 = sbr.rel (0) target = $region5
    $region4: #{tpu_custom_call.1} parent=1 // pred_region
      %s17 = ssub.s32 2048, 2048
      %18 = vsyncadd [#allocation5], %s17
      %s19 = sshll.u32 [#allocation4], 4
      %s20 = int_to_ptr.vmem [resolvable:$true] %s19
      %25 = dma.hbm_to_vmem [thread:$0]  %s0, 2048, %s20, [#allocation5], 1024, 1024, 64
    $region5: #{tpu_custom_call.1} parent=1 // pred_fallthru
      _
    // Predicated region
    $region6: #{tpu_custom_call.1} parent=1 // pred_check
      _
    $region7: #{tpu_custom_call.1} parent=1 // pred_check_branch
      %27 = sbr.rel (0) target = $region9
    $region8: #{tpu_custom_call.1} parent=1 // pred_region
      %s29 = ssub.s32 65536, 65536
      %30 = vsyncadd [#allocation7], %s29
      %s31 = sshll.u32 [#allocation6], 4
      %s32 = int_to_ptr.vmem [resolvable:$true] %s31
      %37 = dma.hbm_to_vmem [thread:$0]  %s1, 65536, %s32, [#allocation7], 256, 256, 16
    $region9: #{tpu_custom_call.1} parent=1 // pred_fallthru
      _
    // Predicated region
    $region10: #{tpu_custom_call.1} parent=1 // pred_check
      _
    $region11: #{tpu_custom_call.1} parent=1 // pred_check_branch
      %39 = sbr.rel (0) target = $region13
    $region12: #{tpu_custom_call.1} parent=1 // pred_region
      %s41 = ssub.s32 64, 64
      %42 = vsyncadd [#allocation7], %s41
      %s44 = sshll.u32 [#allocation8], 4
      %s45 = int_to_ptr.vmem [resolvable:$true] %s44
      %47 = dma.hbm_to_vmem [thread:$0]  %s2, 64, %s45, [#allocation7]
    $region13: #{tpu_custom_call.1} parent=1 // pred_fallthru
      _
    // Predicated region
    $region14: #{tpu_custom_call.1} parent=1 // pred_check
      _
    $region15: #{tpu_custom_call.1} parent=1 // pred_check_branch
      %49 = sbr.rel (0) target = $region17
    $region16: #{tpu_custom_call.1} parent=1 // pred_region
      %s51 = ssub.s32 64, 64
      %52 = vsyncadd [#allocation10], %s51
      %s54 = sshll.u32 [#allocation9], 4
      %s55 = int_to_ptr.vmem [resolvable:$true] %s54
      %57 = dma.hbm_to_vmem [thread:$0]  %s3, 64, %s55, [#allocation10]
    $region17: #{tpu_custom_call.1} parent=1 // pred_fallthru
      _
    // Predicated region
    $region18: #{tpu_custom_call.1} parent=1 // pred_check
      _
    $region19: #{tpu_custom_call.1} parent=1 // pred_check_branch
      %59 = sbr.rel (0) target = $region21
    $region20: #{tpu_custom_call.1} parent=1 // pred_region
      _
    $region21: #{tpu_custom_call.1} parent=1 // pred_fallthru
      _
    // Predicated region
    $region22: #{tpu_custom_call.1} parent=1 // pred_check
      _
    $region23: #{tpu_custom_call.1} parent=1 // pred_check_branch
      %61 = sbr.rel (0) target = $region25
    $region24: #{tpu_custom_call.1} parent=1 // pred_region
      %62 = dma.done [#allocation5], 2048
    $region25: #{tpu_custom_call.1} parent=1 // pred_fallthru
      _
    // Predicated region
    $region26: #{tpu_custom_call.1} parent=1 // pred_check
      _
    $region27: #{tpu_custom_call.1} parent=1 // pred_check_branch
      %64 = sbr.rel (0) target = $region29
    $region28: #{tpu_custom_call.1} parent=1 // pred_region
      %65 = dma.done [#allocation7], 65536
    $region29: #{tpu_custom_call.1} parent=1 // pred_fallthru
      _
    // Predicated region
    $region30: #{tpu_custom_call.1} parent=1 // pred_check
      _
    $region31: #{tpu_custom_call.1} parent=1 // pred_check_branch
      %67 = sbr.rel (0) target = $region33
    $region32: #{tpu_custom_call.1} parent=1 // pred_region
      %68 = dma.done [#allocation7], 64
    $region33: #{tpu_custom_call.1} parent=1 // pred_fallthru
      _
    // Predicated region
    $region34: #{tpu_custom_call.1} parent=1 // pred_check
      _
    $region35: #{tpu_custom_call.1} parent=1 // pred_check_branch
      %70 = sbr.rel (0) target = $region37
    $region36: #{tpu_custom_call.1} parent=1 // pred_region
      %71 = dma.done [#allocation10], 64
    $region37: #{tpu_custom_call.1} parent=1 // pred_fallthru
      _
    %p72 = scmp.eq.s32.totalorder 0, 0
    // Predicated region
    $region38: #{tpu_custom_call.1} parent=1 // pred_check
      %p73 = pneg %p72
    $region39: #{tpu_custom_call.1} parent=1 // pred_check_branch
      %75 = sbr.rel (%p73) target = $region41
    $region40: #{tpu_custom_call.1} parent=1 // pred_region
      %76 = vst [vmem:[#allocation2] sm:$0xff] 0.0
      %77 = vst [vmem:[#allocation2 + $0x8] sm:$0xff] 0.0
      %78 = vst [vmem:[#allocation2 + $0x10] sm:$0xff] 0.0
      %79 = vst [vmem:[#allocation2 + $0x18] sm:$0xff] 0.0
      %80 = vst [vmem:[#allocation2 + $0x20] sm:$0xff] 0.0
      %81 = vst [vmem:[#allocation2 + $0x28] sm:$0xff] 0.0
      %82 = vst [vmem:[#allocation2 + $0x30] sm:$0xff] 0.0
      %83 = vst [vmem:[#allocation2 + $0x38] sm:$0xff] 0.0
    $region41: #{tpu_custom_call.1} parent=1 // pred_fallthru
      _
    %v84 = vld [vmem:[#allocation2] sm:$0xff]
    %v85 = vld [vmem:[#allocation2 + $0x8] sm:$0xff]
    %v86 = vld [vmem:[#allocation2 + $0x10] sm:$0xff]
    %v87 = vld [vmem:[#allocation2 + $0x18] sm:$0xff]
    %v88 = vld [vmem:[#allocation2 + $0x20] sm:$0xff]
    %v89 = vld [vmem:[#allocation2 + $0x28] sm:$0xff]
    %v90 = vld [vmem:[#allocation2 + $0x30] sm:$0xff]
    %v91 = vld [vmem:[#allocation2 + $0x38] sm:$0xff]
    %v92 = vld [vmem:[#allocation4] sm:$0xff]
    %v93 = vld [vmem:[#allocation4 + $0x8] sm:$0xff]
    %v94 = vld [vmem:[#allocation4 + $0x10] sm:$0xff]
    %v95 = vld [vmem:[#allocation4 + $0x18] sm:$0xff]
    %v96 = vld [vmem:[#allocation4 + $0x20] sm:$0xff]
    %v97 = vld [vmem:[#allocation4 + $0x28] sm:$0xff]
    %v98 = vld [vmem:[#allocation4 + $0x30] sm:$0xff]
    %v99 = vld [vmem:[#allocation4 + $0x38] sm:$0xff]
    %v100 = vld [vmem:[#allocation4 + $0x40] sm:$0xff]
    %v101 = vld [vmem:[#allocation4 + $0x48] sm:$0xff]
    %v102 = vld [vmem:[#allocation4 + $0x50] sm:$0xff]
    %v103 = vld [vmem:[#allocation4 + $0x58] sm:$0xff]
    %v104 = vld [vmem:[#allocation4 + $0x60] sm:$0xff]
    %v105 = vld [vmem:[#allocation4 + $0x68] sm:$0xff]
    %v106 = vld [vmem:[#allocation4 + $0x70] sm:$0xff]
    %v107 = vld [vmem:[#allocation4 + $0x78] sm:$0xff]
    %v108 = vld [vmem:[#allocation6] sm:$0xff]
    %v109 = vld [vmem:[#allocation6 + $0x8] sm:$0xff]
    %v110 = vld [vmem:[#allocation6 + $0x10] sm:$0xff]
    %v111 = vld [vmem:[#allocation6 + $0x18] sm:$0xff]
    %v112 = vld [vmem:[#allocation6 + $0x20] sm:$0xff]
    %v113 = vld [vmem:[#allocation6 + $0x28] sm:$0xff]
    %v114 = vld [vmem:[#allocation6 + $0x30] sm:$0xff]
    %v115 = vld [vmem:[#allocation6 + $0x38] sm:$0xff]
    %v116 = vld [vmem:[#allocation6 + $0x40] sm:$0xff]
    %v117 = vld [vmem:[#allocation6 + $0x48] sm:$0xff]
    %v118 = vld [vmem:[#allocation6 + $0x50] sm:$0xff]
    %v119 = vld [vmem:[#allocation6 + $0x58] sm:$0xff]
    %v120 = vld [vmem:[#allocation6 + $0x60] sm:$0xff]
    %v121 = vld [vmem:[#allocation6 + $0x68] sm:$0xff]
    %v122 = vld [vmem:[#allocation6 + $0x70] sm:$0xff]
    %v123 = vld [vmem:[#allocation6 + $0x78] sm:$0xff]
    %v124 = vld [vmem:[#allocation6 + $0x80] sm:$0xff]
    %v125 = vld [vmem:[#allocation6 + $0x88] sm:$0xff]
    %v126 = vld [vmem:[#allocation6 + $0x90] sm:$0xff]
    %v127 = vld [vmem:[#allocation6 + $0x98] sm:$0xff]
    %v128 = vld [vmem:[#allocation6 + $0xa0] sm:$0xff]
    %v129 = vld [vmem:[#allocation6 + $0xa8] sm:$0xff]
    %v130 = vld [vmem:[#allocation6 + $0xb0] sm:$0xff]
    %v131 = vld [vmem:[#allocation6 + $0xb8] sm:$0xff]
    %v132 = vld [vmem:[#allocation6 + $0xc0] sm:$0xff]
    %v133 = vld [vmem:[#allocation6 + $0xc8] sm:$0xff]
    %v134 = vld [vmem:[#allocation6 + $0xd0] sm:$0xff]
    %v135 = vld [vmem:[#allocation6 + $0xd8] sm:$0xff]
    %v136 = vld [vmem:[#allocation6 + $0xe0] sm:$0xff]
    %v137 = vld [vmem:[#allocation6 + $0xe8] sm:$0xff]
    %v138 = vld [vmem:[#allocation6 + $0xf0] sm:$0xff]
    %v139 = vld [vmem:[#allocation6 + $0xf8] sm:$0xff]
    %v140 = vld [vmem:[#allocation6 + $0x100] sm:$0xff]
    %v141 = vld [vmem:[#allocation6 + $0x108] sm:$0xff]
    %v142 = vld [vmem:[#allocation6 + $0x110] sm:$0xff]
    %v143 = vld [vmem:[#allocation6 + $0x118] sm:$0xff]
    %v144 = vld [vmem:[#allocation6 + $0x120] sm:$0xff]
    %v145 = vld [vmem:[#allocation6 + $0x128] sm:$0xff]
    %v146 = vld [vmem:[#allocation6 + $0x130] sm:$0xff]
    %v147 = vld [vmem:[#allocation6 + $0x138] sm:$0xff]
    %v148 = vld [vmem:[#allocation6 + $0x140] sm:$0xff]
    %v149 = vld [vmem:[#allocation6 + $0x148] sm:$0xff]
    %v150 = vld [vmem:[#allocation6 + $0x150] sm:$0xff]
    %v151 = vld [vmem:[#allocation6 + $0x158] sm:$0xff]
    %v152 = vld [vmem:[#allocation6 + $0x160] sm:$0xff]
    %v153 = vld [vmem:[#allocation6 + $0x168] sm:$0xff]
    %v154 = vld [vmem:[#allocation6 + $0x170] sm:$0xff]
    %v155 = vld [vmem:[#allocation6 + $0x178] sm:$0xff]
    %v156 = vld [vmem:[#allocation6 + $0x180] sm:$0xff]
    %v157 = vld [vmem:[#allocation6 + $0x188] sm:$0xff]
    %v158 = vld [vmem:[#allocation6 + $0x190] sm:$0xff]
    %v159 = vld [vmem:[#allocation6 + $0x198] sm:$0xff]
    %v160 = vld [vmem:[#allocation6 + $0x1a0] sm:$0xff]
    %v161 = vld [vmem:[#allocation6 + $0x1a8] sm:$0xff]
    %v162 = vld [vmem:[#allocation6 + $0x1b0] sm:$0xff]
    %v163 = vld [vmem:[#allocation6 + $0x1b8] sm:$0xff]
    %v164 = vld [vmem:[#allocation6 + $0x1c0] sm:$0xff]
    %v165 = vld [vmem:[#allocation6 + $0x1c8] sm:$0xff]
    %v166 = vld [vmem:[#allocation6 + $0x1d0] sm:$0xff]
    %v167 = vld [vmem:[#allocation6 + $0x1d8] sm:$0xff]
    %v168 = vld [vmem:[#allocation6 + $0x1e0] sm:$0xff]
    %v169 = vld [vmem:[#allocation6 + $0x1e8] sm:$0xff]
    %v170 = vld [vmem:[#allocation6 + $0x1f0] sm:$0xff]
    %v171 = vld [vmem:[#allocation6 + $0x1f8] sm:$0xff]
    %v172 = vld [vmem:[#allocation6 + $0x200] sm:$0xff]
    %v173 = vld [vmem:[#allocation6 + $0x208] sm:$0xff]
    %v174 = vld [vmem:[#allocation6 + $0x210] sm:$0xff]
    %v175 = vld [vmem:[#allocation6 + $0x218] sm:$0xff]
    %v176 = vld [vmem:[#allocation6 + $0x220] sm:$0xff]
    %v177 = vld [vmem:[#allocation6 + $0x228] sm:$0xff]
    %v178 = vld [vmem:[#allocation6 + $0x230] sm:$0xff]
    %v179 = vld [vmem:[#allocation6 + $0x238] sm:$0xff]
    %v180 = vld [vmem:[#allocation6 + $0x240] sm:$0xff]
    %v181 = vld [vmem:[#allocation6 + $0x248] sm:$0xff]
    %v182 = vld [vmem:[#allocation6 + $0x250] sm:$0xff]
    %v183 = vld [vmem:[#allocation6 + $0x258] sm:$0xff]
    %v184 = vld [vmem:[#allocation6 + $0x260] sm:$0xff]
    %v185 = vld [vmem:[#allocation6 + $0x268] sm:$0xff]
    %v186 = vld [vmem:[#allocation6 + $0x270] sm:$0xff]
    %v187 = vld [vmem:[#allocation6 + $0x278] sm:$0xff]
    %v188 = vld [vmem:[#allocation6 + $0x280] sm:$0xff]
    %v189 = vld [vmem:[#allocation6 + $0x288] sm:$0xff]
    %v190 = vld [vmem:[#allocation6 + $0x290] sm:$0xff]
    %v191 = vld [vmem:[#allocation6 + $0x298] sm:$0xff]
    %v192 = vld [vmem:[#allocation6 + $0x2a0] sm:$0xff]
    %v193 = vld [vmem:[#allocation6 + $0x2a8] sm:$0xff]
    %v194 = vld [vmem:[#allocation6 + $0x2b0] sm:$0xff]
    %v195 = vld [vmem:[#allocation6 + $0x2b8] sm:$0xff]
    %v196 = vld [vmem:[#allocation6 + $0x2c0] sm:$0xff]
    %v197 = vld [vmem:[#allocation6 + $0x2c8] sm:$0xff]
    %v198 = vld [vmem:[#allocation6 + $0x2d0] sm:$0xff]
    %v199 = vld [vmem:[#allocation6 + $0x2d8] sm:$0xff]
    %v200 = vld [vmem:[#allocation6 + $0x2e0] sm:$0xff]
    %v201 = vld [vmem:[#allocation6 + $0x2e8] sm:$0xff]
    %v202 = vld [vmem:[#allocation6 + $0x2f0] sm:$0xff]
    %v203 = vld [vmem:[#allocation6 + $0x2f8] sm:$0xff]
    %v204 = vld [vmem:[#allocation6 + $0x300] sm:$0xff]
    %v205 = vld [vmem:[#allocation6 + $0x308] sm:$0xff]
    %v206 = vld [vmem:[#allocation6 + $0x310] sm:$0xff]
    %v207 = vld [vmem:[#allocation6 + $0x318] sm:$0xff]
    %v208 = vld [vmem:[#allocation6 + $0x320] sm:$0xff]
    %v209 = vld [vmem:[#allocation6 + $0x328] sm:$0xff]
    %v210 = vld [vmem:[#allocation6 + $0x330] sm:$0xff]
    %v211 = vld [vmem:[#allocation6 + $0x338] sm:$0xff]
    %v212 = vld [vmem:[#allocation6 + $0x340] sm:$0xff]
    %v213 = vld [vmem:[#allocation6 + $0x348] sm:$0xff]
    %v214 = vld [vmem:[#allocation6 + $0x350] sm:$0xff]
    %v215 = vld [vmem:[#allocation6 + $0x358] sm:$0xff]
    %v216 = vld [vmem:[#allocation6 + $0x360] sm:$0xff]
    %v217 = vld [vmem:[#allocation6 + $0x368] sm:$0xff]
    %v218 = vld [vmem:[#allocation6 + $0x370] sm:$0xff]
    %v219 = vld [vmem:[#allocation6 + $0x378] sm:$0xff]
    %v220 = vld [vmem:[#allocation6 + $0x380] sm:$0xff]
    %v221 = vld [vmem:[#allocation6 + $0x388] sm:$0xff]
    %v222 = vld [vmem:[#allocation6 + $0x390] sm:$0xff]
    %v223 = vld [vmem:[#allocation6 + $0x398] sm:$0xff]
    %v224 = vld [vmem:[#allocation6 + $0x3a0] sm:$0xff]
    %v225 = vld [vmem:[#allocation6 + $0x3a8] sm:$0xff]
    %v226 = vld [vmem:[#allocation6 + $0x3b0] sm:$0xff]
    %v227 = vld [vmem:[#allocation6 + $0x3b8] sm:$0xff]
    %v228 = vld [vmem:[#allocation6 + $0x3c0] sm:$0xff]
    %v229 = vld [vmem:[#allocation6 + $0x3c8] sm:$0xff]
    %v230 = vld [vmem:[#allocation6 + $0x3d0] sm:$0xff]
    %v231 = vld [vmem:[#allocation6 + $0x3d8] sm:$0xff]
    %v232 = vld [vmem:[#allocation6 + $0x3e0] sm:$0xff]
    %v233 = vld [vmem:[#allocation6 + $0x3e8] sm:$0xff]
    %v234 = vld [vmem:[#allocation6 + $0x3f0] sm:$0xff]
    %v235 = vld [vmem:[#allocation6 + $0x3f8] sm:$0xff]
    %v236 = vld [vmem:[#allocation6 + $0x400] sm:$0xff]
    %v237 = vld [vmem:[#allocation6 + $0x408] sm:$0xff]
    %v238 = vld [vmem:[#allocation6 + $0x410] sm:$0xff]
    %v239 = vld [vmem:[#allocation6 + $0x418] sm:$0xff]
    %v240 = vld [vmem:[#allocation6 + $0x420] sm:$0xff]
    %v241 = vld [vmem:[#allocation6 + $0x428] sm:$0xff]
    %v242 = vld [vmem:[#allocation6 + $0x430] sm:$0xff]
    %v243 = vld [vmem:[#allocation6 + $0x438] sm:$0xff]
    %v244 = vld [vmem:[#allocation6 + $0x440] sm:$0xff]
    %v245 = vld [vmem:[#allocation6 + $0x448] sm:$0xff]
    %v246 = vld [vmem:[#allocation6 + $0x450] sm:$0xff]
    %v247 = vld [vmem:[#allocation6 + $0x458] sm:$0xff]
    %v248 = vld [vmem:[#allocation6 + $0x460] sm:$0xff]
    %v249 = vld [vmem:[#allocation6 + $0x468] sm:$0xff]
    %v250 = vld [vmem:[#allocation6 + $0x470] sm:$0xff]
    %v251 = vld [vmem:[#allocation6 + $0x478] sm:$0xff]
    %v252 = vld [vmem:[#allocation6 + $0x480] sm:$0xff]
    %v253 = vld [vmem:[#allocation6 + $0x488] sm:$0xff]
    %v254 = vld [vmem:[#allocation6 + $0x490] sm:$0xff]
    %v255 = vld [vmem:[#allocation6 + $0x498] sm:$0xff]
    %v256 = vld [vmem:[#allocation6 + $0x4a0] sm:$0xff]
    %v257 = vld [vmem:[#allocation6 + $0x4a8] sm:$0xff]
    %v258 = vld [vmem:[#allocation6 + $0x4b0] sm:$0xff]
    %v259 = vld [vmem:[#allocation6 + $0x4b8] sm:$0xff]
    %v260 = vld [vmem:[#allocation6 + $0x4c0] sm:$0xff]
    %v261 = vld [vmem:[#allocation6 + $0x4c8] sm:$0xff]
    %v262 = vld [vmem:[#allocation6 + $0x4d0] sm:$0xff]
    %v263 = vld [vmem:[#allocation6 + $0x4d8] sm:$0xff]
    %v264 = vld [vmem:[#allocation6 + $0x4e0] sm:$0xff]
    %v265 = vld [vmem:[#allocation6 + $0x4e8] sm:$0xff]
    %v266 = vld [vmem:[#allocation6 + $0x4f0] sm:$0xff]
    %v267 = vld [vmem:[#allocation6 + $0x4f8] sm:$0xff]
    %v268 = vld [vmem:[#allocation6 + $0x500] sm:$0xff]
    %v269 = vld [vmem:[#allocation6 + $0x508] sm:$0xff]
    %v270 = vld [vmem:[#allocation6 + $0x510] sm:$0xff]
    %v271 = vld [vmem:[#allocation6 + $0x518] sm:$0xff]
    %v272 = vld [vmem:[#allocation6 + $0x520] sm:$0xff]
    %v273 = vld [vmem:[#allocation6 + $0x528] sm:$0xff]
    %v274 = vld [vmem:[#allocation6 + $0x530] sm:$0xff]
    %v275 = vld [vmem:[#allocation6 + $0x538] sm:$0xff]
    %v276 = vld [vmem:[#allocation6 + $0x540] sm:$0xff]
    %v277 = vld [vmem:[#allocation6 + $0x548] sm:$0xff]
    %v278 = vld [vmem:[#allocation6 + $0x550] sm:$0xff]
    %v279 = vld [vmem:[#allocation6 + $0x558] sm:$0xff]
    %v280 = vld [vmem:[#allocation6 + $0x560] sm:$0xff]
    %v281 = vld [vmem:[#allocation6 + $0x568] sm:$0xff]
    %v282 = vld [vmem:[#allocation6 + $0x570] sm:$0xff]
    %v283 = vld [vmem:[#allocation6 + $0x578] sm:$0xff]
    %v284 = vld [vmem:[#allocation6 + $0x580] sm:$0xff]
    %v285 = vld [vmem:[#allocation6 + $0x588] sm:$0xff]
    %v286 = vld [vmem:[#allocation6 + $0x590] sm:$0xff]
    %v287 = vld [vmem:[#allocation6 + $0x598] sm:$0xff]
    %v288 = vld [vmem:[#allocation6 + $0x5a0] sm:$0xff]
    %v289 = vld [vmem:[#allocation6 + $0x5a8] sm:$0xff]
    %v290 = vld [vmem:[#allocation6 + $0x5b0] sm:$0xff]
    %v291 = vld [vmem:[#allocation6 + $0x5b8] sm:$0xff]
    %v292 = vld [vmem:[#allocation6 + $0x5c0] sm:$0xff]
    %v293 = vld [vmem:[#allocation6 + $0x5c8] sm:$0xff]
    %v294 = vld [vmem:[#allocation6 + $0x5d0] sm:$0xff]
    %v295 = vld [vmem:[#allocation6 + $0x5d8] sm:$0xff]
    %v296 = vld [vmem:[#allocation6 + $0x5e0] sm:$0xff]
    %v297 = vld [vmem:[#allocation6 + $0x5e8] sm:$0xff]
    %v298 = vld [vmem:[#allocation6 + $0x5f0] sm:$0xff]
    %v299 = vld [vmem:[#allocation6 + $0x5f8] sm:$0xff]
    %v300 = vld [vmem:[#allocation6 + $0x600] sm:$0xff]
    %v301 = vld [vmem:[#allocation6 + $0x608] sm:$0xff]
    %v302 = vld [vmem:[#allocation6 + $0x610] sm:$0xff]
    %v303 = vld [vmem:[#allocation6 + $0x618] sm:$0xff]
    %v304 = vld [vmem:[#allocation6 + $0x620] sm:$0xff]
    %v305 = vld [vmem:[#allocation6 + $0x628] sm:$0xff]
    %v306 = vld [vmem:[#allocation6 + $0x630] sm:$0xff]
    %v307 = vld [vmem:[#allocation6 + $0x638] sm:$0xff]
    %v308 = vld [vmem:[#allocation6 + $0x640] sm:$0xff]
    %v309 = vld [vmem:[#allocation6 + $0x648] sm:$0xff]
    %v310 = vld [vmem:[#allocation6 + $0x650] sm:$0xff]
    %v311 = vld [vmem:[#allocation6 + $0x658] sm:$0xff]
    %v312 = vld [vmem:[#allocation6 + $0x660] sm:$0xff]
    %v313 = vld [vmem:[#allocation6 + $0x668] sm:$0xff]
    %v314 = vld [vmem:[#allocation6 + $0x670] sm:$0xff]
    %v315 = vld [vmem:[#allocation6 + $0x678] sm:$0xff]
    %v316 = vld [vmem:[#allocation6 + $0x680] sm:$0xff]
    %v317 = vld [vmem:[#allocation6 + $0x688] sm:$0xff]
    %v318 = vld [vmem:[#allocation6 + $0x690] sm:$0xff]
    %v319 = vld [vmem:[#allocation6 + $0x698] sm:$0xff]
    %v320 = vld [vmem:[#allocation6 + $0x6a0] sm:$0xff]
    %v321 = vld [vmem:[#allocation6 + $0x6a8] sm:$0xff]
    %v322 = vld [vmem:[#allocation6 + $0x6b0] sm:$0xff]
    %v323 = vld [vmem:[#allocation6 + $0x6b8] sm:$0xff]
    %v324 = vld [vmem:[#allocation6 + $0x6c0] sm:$0xff]
    %v325 = vld [vmem:[#allocation6 + $0x6c8] sm:$0xff]
    %v326 = vld [vmem:[#allocation6 + $0x6d0] sm:$0xff]
    %v327 = vld [vmem:[#allocation6 + $0x6d8] sm:$0xff]
    %v328 = vld [vmem:[#allocation6 + $0x6e0] sm:$0xff]
    %v329 = vld [vmem:[#allocation6 + $0x6e8] sm:$0xff]
    %v330 = vld [vmem:[#allocation6 + $0x6f0] sm:$0xff]
    %v331 = vld [vmem:[#allocation6 + $0x6f8] sm:$0xff]
    %v332 = vld [vmem:[#allocation6 + $0x700] sm:$0xff]
    %v333 = vld [vmem:[#allocation6 + $0x708] sm:$0xff]
    %v334 = vld [vmem:[#allocation6 + $0x710] sm:$0xff]
    %v335 = vld [vmem:[#allocation6 + $0x718] sm:$0xff]
    %v336 = vld [vmem:[#allocation6 + $0x720] sm:$0xff]
    %v337 = vld [vmem:[#allocation6 + $0x728] sm:$0xff]
    %v338 = vld [vmem:[#allocation6 + $0x730] sm:$0xff]
    %v339 = vld [vmem:[#allocation6 + $0x738] sm:$0xff]
    %v340 = vld [vmem:[#allocation6 + $0x740] sm:$0xff]
    %v341 = vld [vmem:[#allocation6 + $0x748] sm:$0xff]
    %v342 = vld [vmem:[#allocation6 + $0x750] sm:$0xff]
    %v343 = vld [vmem:[#allocation6 + $0x758] sm:$0xff]
    %v344 = vld [vmem:[#allocation6 + $0x760] sm:$0xff]
    %v345 = vld [vmem:[#allocation6 + $0x768] sm:$0xff]
    %v346 = vld [vmem:[#allocation6 + $0x770] sm:$0xff]
    %v347 = vld [vmem:[#allocation6 + $0x778] sm:$0xff]
    %v348 = vld [vmem:[#allocation6 + $0x780] sm:$0xff]
    %v349 = vld [vmem:[#allocation6 + $0x788] sm:$0xff]
    %v350 = vld [vmem:[#allocation6 + $0x790] sm:$0xff]
    %v351 = vld [vmem:[#allocation6 + $0x798] sm:$0xff]
    %v352 = vld [vmem:[#allocation6 + $0x7a0] sm:$0xff]
    %v353 = vld [vmem:[#allocation6 + $0x7a8] sm:$0xff]
    %v354 = vld [vmem:[#allocation6 + $0x7b0] sm:$0xff]
    %v355 = vld [vmem:[#allocation6 + $0x7b8] sm:$0xff]
    %v356 = vld [vmem:[#allocation6 + $0x7c0] sm:$0xff]
    %v357 = vld [vmem:[#allocation6 + $0x7c8] sm:$0xff]
    %v358 = vld [vmem:[#allocation6 + $0x7d0] sm:$0xff]
    %v359 = vld [vmem:[#allocation6 + $0x7d8] sm:$0xff]
    %v360 = vld [vmem:[#allocation6 + $0x7e0] sm:$0xff]
    %v361 = vld [vmem:[#allocation6 + $0x7e8] sm:$0xff]
    %v362 = vld [vmem:[#allocation6 + $0x7f0] sm:$0xff]
    %v363 = vld [vmem:[#allocation6 + $0x7f8] sm:$0xff]
    %v364 = vld [vmem:[#allocation6 + $0x800] sm:$0xff]
    %v365 = vld [vmem:[#allocation6 + $0x808] sm:$0xff]
    %v366 = vld [vmem:[#allocation6 + $0x810] sm:$0xff]
    %v367 = vld [vmem:[#allocation6 + $0x818] sm:$0xff]
    %v368 = vld [vmem:[#allocation6 + $0x820] sm:$0xff]
    %v369 = vld [vmem:[#allocation6 + $0x828] sm:$0xff]
    %v370 = vld [vmem:[#allocation6 + $0x830] sm:$0xff]
    %v371 = vld [vmem:[#allocation6 + $0x838] sm:$0xff]
    %v372 = vld [vmem:[#allocation6 + $0x840] sm:$0xff]
    %v373 = vld [vmem:[#allocation6 + $0x848] sm:$0xff]
    %v374 = vld [vmem:[#allocation6 + $0x850] sm:$0xff]
    %v375 = vld [vmem:[#allocation6 + $0x858] sm:$0xff]
    %v376 = vld [vmem:[#allocation6 + $0x860] sm:$0xff]
    %v377 = vld [vmem:[#allocation6 + $0x868] sm:$0xff]
    %v378 = vld [vmem:[#allocation6 + $0x870] sm:$0xff]
    %v379 = vld [vmem:[#allocation6 + $0x878] sm:$0xff]
    %v380 = vld [vmem:[#allocation6 + $0x880] sm:$0xff]
    %v381 = vld [vmem:[#allocation6 + $0x888] sm:$0xff]
    %v382 = vld [vmem:[#allocation6 + $0x890] sm:$0xff]
    %v383 = vld [vmem:[#allocation6 + $0x898] sm:$0xff]
    %v384 = vld [vmem:[#allocation6 + $0x8a0] sm:$0xff]
    %v385 = vld [vmem:[#allocation6 + $0x8a8] sm:$0xff]
    %v386 = vld [vmem:[#allocation6 + $0x8b0] sm:$0xff]
    %v387 = vld [vmem:[#allocation6 + $0x8b8] sm:$0xff]
    %v388 = vld [vmem:[#allocation6 + $0x8c0] sm:$0xff]
    %v389 = vld [vmem:[#allocation6 + $0x8c8] sm:$0xff]
    %v390 = vld [vmem:[#allocation6 + $0x8d0] sm:$0xff]
    %v391 = vld [vmem:[#allocation6 + $0x8d8] sm:$0xff]
    %v392 = vld [vmem:[#allocation6 + $0x8e0] sm:$0xff]
    %v393 = vld [vmem:[#allocation6 + $0x8e8] sm:$0xff]
    %v394 = vld [vmem:[#allocation6 + $0x8f0] sm:$0xff]
    %v395 = vld [vmem:[#allocation6 + $0x8f8] sm:$0xff]
    %v396 = vld [vmem:[#allocation6 + $0x900] sm:$0xff]
    %v397 = vld [vmem:[#allocation6 + $0x908] sm:$0xff]
    %v398 = vld [vmem:[#allocation6 + $0x910] sm:$0xff]
    %v399 = vld [vmem:[#allocation6 + $0x918] sm:$0xff]
    %v400 = vld [vmem:[#allocation6 + $0x920] sm:$0xff]
    %v401 = vld [vmem:[#allocation6 + $0x928] sm:$0xff]
    %v402 = vld [vmem:[#allocation6 + $0x930] sm:$0xff]
    %v403 = vld [vmem:[#allocation6 + $0x938] sm:$0xff]
    %v404 = vld [vmem:[#allocation6 + $0x940] sm:$0xff]
    %v405 = vld [vmem:[#allocation6 + $0x948] sm:$0xff]
    %v406 = vld [vmem:[#allocation6 + $0x950] sm:$0xff]
    %v407 = vld [vmem:[#allocation6 + $0x958] sm:$0xff]
    %v408 = vld [vmem:[#allocation6 + $0x960] sm:$0xff]
    %v409 = vld [vmem:[#allocation6 + $0x968] sm:$0xff]
    %v410 = vld [vmem:[#allocation6 + $0x970] sm:$0xff]
    %v411 = vld [vmem:[#allocation6 + $0x978] sm:$0xff]
    %v412 = vld [vmem:[#allocation6 + $0x980] sm:$0xff]
    %v413 = vld [vmem:[#allocation6 + $0x988] sm:$0xff]
    %v414 = vld [vmem:[#allocation6 + $0x990] sm:$0xff]
    %v415 = vld [vmem:[#allocation6 + $0x998] sm:$0xff]
    %v416 = vld [vmem:[#allocation6 + $0x9a0] sm:$0xff]
    %v417 = vld [vmem:[#allocation6 + $0x9a8] sm:$0xff]
    %v418 = vld [vmem:[#allocation6 + $0x9b0] sm:$0xff]
    %v419 = vld [vmem:[#allocation6 + $0x9b8] sm:$0xff]
    %v420 = vld [vmem:[#allocation6 + $0x9c0] sm:$0xff]
    %v421 = vld [vmem:[#allocation6 + $0x9c8] sm:$0xff]
    %v422 = vld [vmem:[#allocation6 + $0x9d0] sm:$0xff]
    %v423 = vld [vmem:[#allocation6 + $0x9d8] sm:$0xff]
    %v424 = vld [vmem:[#allocation6 + $0x9e0] sm:$0xff]
    %v425 = vld [vmem:[#allocation6 + $0x9e8] sm:$0xff]
    %v426 = vld [vmem:[#allocation6 + $0x9f0] sm:$0xff]
    %v427 = vld [vmem:[#allocation6 + $0x9f8] sm:$0xff]
    %v428 = vld [vmem:[#allocation6 + $0xa00] sm:$0xff]
    %v429 = vld [vmem:[#allocation6 + $0xa08] sm:$0xff]
    %v430 = vld [vmem:[#allocation6 + $0xa10] sm:$0xff]
    %v431 = vld [vmem:[#allocation6 + $0xa18] sm:$0xff]
    %v432 = vld [vmem:[#allocation6 + $0xa20] sm:$0xff]
    %v433 = vld [vmem:[#allocation6 + $0xa28] sm:$0xff]
    %v434 = vld [vmem:[#allocation6 + $0xa30] sm:$0xff]
    %v435 = vld [vmem:[#allocation6 + $0xa38] sm:$0xff]
    %v436 = vld [vmem:[#allocation6 + $0xa40] sm:$0xff]
    %v437 = vld [vmem:[#allocation6 + $0xa48] sm:$0xff]
    %v438 = vld [vmem:[#allocation6 + $0xa50] sm:$0xff]
    %v439 = vld [vmem:[#allocation6 + $0xa58] sm:$0xff]
    %v440 = vld [vmem:[#allocation6 + $0xa60] sm:$0xff]
    %v441 = vld [vmem:[#allocation6 + $0xa68] sm:$0xff]
    %v442 = vld [vmem:[#allocation6 + $0xa70] sm:$0xff]
    %v443 = vld [vmem:[#allocation6 + $0xa78] sm:$0xff]
    %v444 = vld [vmem:[#allocation6 + $0xa80] sm:$0xff]
    %v445 = vld [vmem:[#allocation6 + $0xa88] sm:$0xff]
    %v446 = vld [vmem:[#allocation6 + $0xa90] sm:$0xff]
    %v447 = vld [vmem:[#allocation6 + $0xa98] sm:$0xff]
    %v448 = vld [vmem:[#allocation6 + $0xaa0] sm:$0xff]
    %v449 = vld [vmem:[#allocation6 + $0xaa8] sm:$0xff]
    %v450 = vld [vmem:[#allocation6 + $0xab0] sm:$0xff]
    %v451 = vld [vmem:[#allocation6 + $0xab8] sm:$0xff]
    %v452 = vld [vmem:[#allocation6 + $0xac0] sm:$0xff]
    %v453 = vld [vmem:[#allocation6 + $0xac8] sm:$0xff]
    %v454 = vld [vmem:[#allocation6 + $0xad0] sm:$0xff]
    %v455 = vld [vmem:[#allocation6 + $0xad8] sm:$0xff]
    %v456 = vld [vmem:[#allocation6 + $0xae0] sm:$0xff]
    %v457 = vld [vmem:[#allocation6 + $0xae8] sm:$0xff]
    %v458 = vld [vmem:[#allocation6 + $0xaf0] sm:$0xff]
    %v459 = vld [vmem:[#allocation6 + $0xaf8] sm:$0xff]
    %v460 = vld [vmem:[#allocation6 + $0xb00] sm:$0xff]
    %v461 = vld [vmem:[#allocation6 + $0xb08] sm:$0xff]
    %v462 = vld [vmem:[#allocation6 + $0xb10] sm:$0xff]
    %v463 = vld [vmem:[#allocation6 + $0xb18] sm:$0xff]
    %v464 = vld [vmem:[#allocation6 + $0xb20] sm:$0xff]
    %v465 = vld [vmem:[#allocation6 + $0xb28] sm:$0xff]
    %v466 = vld [vmem:[#allocation6 + $0xb30] sm:$0xff]
    %v467 = vld [vmem:[#allocation6 + $0xb38] sm:$0xff]
    %v468 = vld [vmem:[#allocation6 + $0xb40] sm:$0xff]
    %v469 = vld [vmem:[#allocation6 + $0xb48] sm:$0xff]
    %v470 = vld [vmem:[#allocation6 + $0xb50] sm:$0xff]
    %v471 = vld [vmem:[#allocation6 + $0xb58] sm:$0xff]
    %v472 = vld [vmem:[#allocation6 + $0xb60] sm:$0xff]
    %v473 = vld [vmem:[#allocation6 + $0xb68] sm:$0xff]
    %v474 = vld [vmem:[#allocation6 + $0xb70] sm:$0xff]
    %v475 = vld [vmem:[#allocation6 + $0xb78] sm:$0xff]
    %v476 = vld [vmem:[#allocation6 + $0xb80] sm:$0xff]
    %v477 = vld [vmem:[#allocation6 + $0xb88] sm:$0xff]
    %v478 = vld [vmem:[#allocation6 + $0xb90] sm:$0xff]
    %v479 = vld [vmem:[#allocation6 + $0xb98] sm:$0xff]
    %v480 = vld [vmem:[#allocation6 + $0xba0] sm:$0xff]
    %v481 = vld [vmem:[#allocation6 + $0xba8] sm:$0xff]
    %v482 = vld [vmem:[#allocation6 + $0xbb0] sm:$0xff]
    %v483 = vld [vmem:[#allocation6 + $0xbb8] sm:$0xff]
    %v484 = vld [vmem:[#allocation6 + $0xbc0] sm:$0xff]
    %v485 = vld [vmem:[#allocation6 + $0xbc8] sm:$0xff]
    %v486 = vld [vmem:[#allocation6 + $0xbd0] sm:$0xff]
    %v487 = vld [vmem:[#allocation6 + $0xbd8] sm:$0xff]
    %v488 = vld [vmem:[#allocation6 + $0xbe0] sm:$0xff]
    %v489 = vld [vmem:[#allocation6 + $0xbe8] sm:$0xff]
    %v490 = vld [vmem:[#allocation6 + $0xbf0] sm:$0xff]
    %v491 = vld [vmem:[#allocation6 + $0xbf8] sm:$0xff]
    %v492 = vld [vmem:[#allocation6 + $0xc00] sm:$0xff]
    %v493 = vld [vmem:[#allocation6 + $0xc08] sm:$0xff]
    %v494 = vld [vmem:[#allocation6 + $0xc10] sm:$0xff]
    %v495 = vld [vmem:[#allocation6 + $0xc18] sm:$0xff]
    %v496 = vld [vmem:[#allocation6 + $0xc20] sm:$0xff]
    %v497 = vld [vmem:[#allocation6 + $0xc28] sm:$0xff]
    %v498 = vld [vmem:[#allocation6 + $0xc30] sm:$0xff]
    %v499 = vld [vmem:[#allocation6 + $0xc38] sm:$0xff]
    %v500 = vld [vmem:[#allocation6 + $0xc40] sm:$0xff]
    %v501 = vld [vmem:[#allocation6 + $0xc48] sm:$0xff]
    %v502 = vld [vmem:[#allocation6 + $0xc50] sm:$0xff]
    %v503 = vld [vmem:[#allocation6 + $0xc58] sm:$0xff]
    %v504 = vld [vmem:[#allocation6 + $0xc60] sm:$0xff]
    %v505 = vld [vmem:[#allocation6 + $0xc68] sm:$0xff]
    %v506 = vld [vmem:[#allocation6 + $0xc70] sm:$0xff]
    %v507 = vld [vmem:[#allocation6 + $0xc78] sm:$0xff]
    %v508 = vld [vmem:[#allocation6 + $0xc80] sm:$0xff]
    %v509 = vld [vmem:[#allocation6 + $0xc88] sm:$0xff]
    %v510 = vld [vmem:[#allocation6 + $0xc90] sm:$0xff]
    %v511 = vld [vmem:[#allocation6 + $0xc98] sm:$0xff]
    %v512 = vld [vmem:[#allocation6 + $0xca0] sm:$0xff]
    %v513 = vld [vmem:[#allocation6 + $0xca8] sm:$0xff]
    %v514 = vld [vmem:[#allocation6 + $0xcb0] sm:$0xff]
    %v515 = vld [vmem:[#allocation6 + $0xcb8] sm:$0xff]
    %v516 = vld [vmem:[#allocation6 + $0xcc0] sm:$0xff]
    %v517 = vld [vmem:[#allocation6 + $0xcc8] sm:$0xff]
    %v518 = vld [vmem:[#allocation6 + $0xcd0] sm:$0xff]
    %v519 = vld [vmem:[#allocation6 + $0xcd8] sm:$0xff]
    %v520 = vld [vmem:[#allocation6 + $0xce0] sm:$0xff]
    %v521 = vld [vmem:[#allocation6 + $0xce8] sm:$0xff]
    %v522 = vld [vmem:[#allocation6 + $0xcf0] sm:$0xff]
    %v523 = vld [vmem:[#allocation6 + $0xcf8] sm:$0xff]
    %v524 = vld [vmem:[#allocation6 + $0xd00] sm:$0xff]
    %v525 = vld [vmem:[#allocation6 + $0xd08] sm:$0xff]
    %v526 = vld [vmem:[#allocation6 + $0xd10] sm:$0xff]
    %v527 = vld [vmem:[#allocation6 + $0xd18] sm:$0xff]
    %v528 = vld [vmem:[#allocation6 + $0xd20] sm:$0xff]
    %v529 = vld [vmem:[#allocation6 + $0xd28] sm:$0xff]
    %v530 = vld [vmem:[#allocation6 + $0xd30] sm:$0xff]
    %v531 = vld [vmem:[#allocation6 + $0xd38] sm:$0xff]
    %v532 = vld [vmem:[#allocation6 + $0xd40] sm:$0xff]
    %v533 = vld [vmem:[#allocation6 + $0xd48] sm:$0xff]
    %v534 = vld [vmem:[#allocation6 + $0xd50] sm:$0xff]
    %v535 = vld [vmem:[#allocation6 + $0xd58] sm:$0xff]
    %v536 = vld [vmem:[#allocation6 + $0xd60] sm:$0xff]
    %v537 = vld [vmem:[#allocation6 + $0xd68] sm:$0xff]
    %v538 = vld [vmem:[#allocation6 + $0xd70] sm:$0xff]
    %v539 = vld [vmem:[#allocation6 + $0xd78] sm:$0xff]
    %v540 = vld [vmem:[#allocation6 + $0xd80] sm:$0xff]
    %v541 = vld [vmem:[#allocation6 + $0xd88] sm:$0xff]
    %v542 = vld [vmem:[#allocation6 + $0xd90] sm:$0xff]
    %v543 = vld [vmem:[#allocation6 + $0xd98] sm:$0xff]
    %v544 = vld [vmem:[#allocation6 + $0xda0] sm:$0xff]
    %v545 = vld [vmem:[#allocation6 + $0xda8] sm:$0xff]
    %v546 = vld [vmem:[#allocation6 + $0xdb0] sm:$0xff]
    %v547 = vld [vmem:[#allocation6 + $0xdb8] sm:$0xff]
    %v548 = vld [vmem:[#allocation6 + $0xdc0] sm:$0xff]
    %v549 = vld [vmem:[#allocation6 + $0xdc8] sm:$0xff]
    %v550 = vld [vmem:[#allocation6 + $0xdd0] sm:$0xff]
    %v551 = vld [vmem:[#allocation6 + $0xdd8] sm:$0xff]
    %v552 = vld [vmem:[#allocation6 + $0xde0] sm:$0xff]
    %v553 = vld [vmem:[#allocation6 + $0xde8] sm:$0xff]
    %v554 = vld [vmem:[#allocation6 + $0xdf0] sm:$0xff]
    %v555 = vld [vmem:[#allocation6 + $0xdf8] sm:$0xff]
    %v556 = vld [vmem:[#allocation6 + $0xe00] sm:$0xff]
    %v557 = vld [vmem:[#allocation6 + $0xe08] sm:$0xff]
    %v558 = vld [vmem:[#allocation6 + $0xe10] sm:$0xff]
    %v559 = vld [vmem:[#allocation6 + $0xe18] sm:$0xff]
    %v560 = vld [vmem:[#allocation6 + $0xe20] sm:$0xff]
    %v561 = vld [vmem:[#allocation6 + $0xe28] sm:$0xff]
    %v562 = vld [vmem:[#allocation6 + $0xe30] sm:$0xff]
    %v563 = vld [vmem:[#allocation6 + $0xe38] sm:$0xff]
    %v564 = vld [vmem:[#allocation6 + $0xe40] sm:$0xff]
    %v565 = vld [vmem:[#allocation6 + $0xe48] sm:$0xff]
    %v566 = vld [vmem:[#allocation6 + $0xe50] sm:$0xff]
    %v567 = vld [vmem:[#allocation6 + $0xe58] sm:$0xff]
    %v568 = vld [vmem:[#allocation6 + $0xe60] sm:$0xff]
    %v569 = vld [vmem:[#allocation6 + $0xe68] sm:$0xff]
    %v570 = vld [vmem:[#allocation6 + $0xe70] sm:$0xff]
    %v571 = vld [vmem:[#allocation6 + $0xe78] sm:$0xff]
    %v572 = vld [vmem:[#allocation6 + $0xe80] sm:$0xff]
    %v573 = vld [vmem:[#allocation6 + $0xe88] sm:$0xff]
    %v574 = vld [vmem:[#allocation6 + $0xe90] sm:$0xff]
    %v575 = vld [vmem:[#allocation6 + $0xe98] sm:$0xff]
    %v576 = vld [vmem:[#allocation6 + $0xea0] sm:$0xff]
    %v577 = vld [vmem:[#allocation6 + $0xea8] sm:$0xff]
    %v578 = vld [vmem:[#allocation6 + $0xeb0] sm:$0xff]
    %v579 = vld [vmem:[#allocation6 + $0xeb8] sm:$0xff]
    %v580 = vld [vmem:[#allocation6 + $0xec0] sm:$0xff]
    %v581 = vld [vmem:[#allocation6 + $0xec8] sm:$0xff]
    %v582 = vld [vmem:[#allocation6 + $0xed0] sm:$0xff]
    %v583 = vld [vmem:[#allocation6 + $0xed8] sm:$0xff]
    %v584 = vld [vmem:[#allocation6 + $0xee0] sm:$0xff]
    %v585 = vld [vmem:[#allocation6 + $0xee8] sm:$0xff]
    %v586 = vld [vmem:[#allocation6 + $0xef0] sm:$0xff]
    %v587 = vld [vmem:[#allocation6 + $0xef8] sm:$0xff]
    %v588 = vld [vmem:[#allocation6 + $0xf00] sm:$0xff]
    %v589 = vld [vmem:[#allocation6 + $0xf08] sm:$0xff]
    %v590 = vld [vmem:[#allocation6 + $0xf10] sm:$0xff]
    %v591 = vld [vmem:[#allocation6 + $0xf18] sm:$0xff]
    %v592 = vld [vmem:[#allocation6 + $0xf20] sm:$0xff]
    %v593 = vld [vmem:[#allocation6 + $0xf28] sm:$0xff]
    %v594 = vld [vmem:[#allocation6 + $0xf30] sm:$0xff]
    %v595 = vld [vmem:[#allocation6 + $0xf38] sm:$0xff]
    %v596 = vld [vmem:[#allocation6 + $0xf40] sm:$0xff]
    %v597 = vld [vmem:[#allocation6 + $0xf48] sm:$0xff]
    %v598 = vld [vmem:[#allocation6 + $0xf50] sm:$0xff]
    %v599 = vld [vmem:[#allocation6 + $0xf58] sm:$0xff]
    %v600 = vld [vmem:[#allocation6 + $0xf60] sm:$0xff]
    %v601 = vld [vmem:[#allocation6 + $0xf68] sm:$0xff]
    %v602 = vld [vmem:[#allocation6 + $0xf70] sm:$0xff]
    %v603 = vld [vmem:[#allocation6 + $0xf78] sm:$0xff]
    %v604 = vld [vmem:[#allocation6 + $0xf80] sm:$0xff]
    %v605 = vld [vmem:[#allocation6 + $0xf88] sm:$0xff]
    %v606 = vld [vmem:[#allocation6 + $0xf90] sm:$0xff]
    %v607 = vld [vmem:[#allocation6 + $0xf98] sm:$0xff]
    %v608 = vld [vmem:[#allocation6 + $0xfa0] sm:$0xff]
    %v609 = vld [vmem:[#allocation6 + $0xfa8] sm:$0xff]
    %v610 = vld [vmem:[#allocation6 + $0xfb0] sm:$0xff]
    %v611 = vld [vmem:[#allocation6 + $0xfb8] sm:$0xff]
    %v612 = vld [vmem:[#allocation6 + $0xfc0] sm:$0xff]
    %v613 = vld [vmem:[#allocation6 + $0xfc8] sm:$0xff]
    %v614 = vld [vmem:[#allocation6 + $0xfd0] sm:$0xff]
    %v615 = vld [vmem:[#allocation6 + $0xfd8] sm:$0xff]
    %v616 = vld [vmem:[#allocation6 + $0xfe0] sm:$0xff]
    %v617 = vld [vmem:[#allocation6 + $0xfe8] sm:$0xff]
    %v618 = vld [vmem:[#allocation6 + $0xff0] sm:$0xff]
    %v619 = vld [vmem:[#allocation6 + $0xff8] sm:$0xff]
    %v636 = vunpack.c.l.b16 %v92
    %v637 = vunpack.c.h.b16 %v92
    %v638 = vunpack.c.l.b16 %v93
    %v639 = vunpack.c.h.b16 %v93
    %v640 = vunpack.c.l.b16 %v94
    %v641 = vunpack.c.h.b16 %v94
    %v642 = vunpack.c.l.b16 %v95
    %v643 = vunpack.c.h.b16 %v95
    %v644 = vunpack.c.l.b16 %v96
    %v645 = vunpack.c.h.b16 %v96
    %v646 = vunpack.c.l.b16 %v97
    %v647 = vunpack.c.h.b16 %v97
    %v648 = vunpack.c.l.b16 %v98
    %v649 = vunpack.c.h.b16 %v98
    %v650 = vunpack.c.l.b16 %v99
    %v651 = vunpack.c.h.b16 %v99
    %v652 = vunpack.c.l.b16 %v100
    %v653 = vunpack.c.h.b16 %v100
    %v654 = vunpack.c.l.b16 %v101
    %v655 = vunpack.c.h.b16 %v101
    %v656 = vunpack.c.l.b16 %v102
    %v657 = vunpack.c.h.b16 %v102
    %v658 = vunpack.c.l.b16 %v103
    %v659 = vunpack.c.h.b16 %v103
    %v660 = vunpack.c.l.b16 %v104
    %v661 = vunpack.c.h.b16 %v104
    %v662 = vunpack.c.l.b16 %v105
    %v663 = vunpack.c.h.b16 %v105
    %v664 = vunpack.c.l.b16 %v106
    %v665 = vunpack.c.h.b16 %v106
    %v666 = vunpack.c.l.b16 %v107
    %v667 = vunpack.c.h.b16 %v107
    %v668 = vpack.c.b16 %v652, %v636
    %v669 = vpack.c.b16 %v653, %v637
    %v670 = vpack.c.b16 %v654, %v638
    %v671 = vpack.c.b16 %v655, %v639
    %v672 = vpack.c.b16 %v656, %v640
    %v673 = vpack.c.b16 %v657, %v641
    %v674 = vpack.c.b16 %v658, %v642
    %v675 = vpack.c.b16 %v659, %v643
    %v676 = vpack.c.b16 %v660, %v644
    %v677 = vpack.c.b16 %v661, %v645
    %v678 = vpack.c.b16 %v662, %v646
    %v679 = vpack.c.b16 %v663, %v647
    %v680 = vpack.c.b16 %v664, %v648
    %v681 = vpack.c.b16 %v665, %v649
    %v682 = vpack.c.b16 %v666, %v650
    %v683 = vpack.c.b16 %v667, %v651
    %v1212 = vunpack.c.l.b16 %v108
    %v1213 = vunpack.c.h.b16 %v108
    %v1214 = vunpack.c.l.b16 %v109
    %v1215 = vunpack.c.h.b16 %v109
    %v1216 = vunpack.c.l.b16 %v110
    %v1217 = vunpack.c.h.b16 %v110
    %v1218 = vunpack.c.l.b16 %v111
    %v1219 = vunpack.c.h.b16 %v111
    %v1220 = vunpack.c.l.b16 %v112
    %v1221 = vunpack.c.h.b16 %v112
    %v1222 = vunpack.c.l.b16 %v113
    %v1223 = vunpack.c.h.b16 %v113
    %v1224 = vunpack.c.l.b16 %v114
    %v1225 = vunpack.c.h.b16 %v114
    %v1226 = vunpack.c.l.b16 %v115
    %v1227 = vunpack.c.h.b16 %v115
    %v1228 = vunpack.c.l.b16 %v116
    %v1229 = vunpack.c.h.b16 %v116
    %v1230 = vunpack.c.l.b16 %v117
    %v1231 = vunpack.c.h.b16 %v117
    %v1232 = vunpack.c.l.b16 %v118
    %v1233 = vunpack.c.h.b16 %v118
    %v1234 = vunpack.c.l.b16 %v119
    %v1235 = vunpack.c.h.b16 %v119
    %v1236 = vunpack.c.l.b16 %v120
    %v1237 = vunpack.c.h.b16 %v120
    %v1238 = vunpack.c.l.b16 %v121
    %v1239 = vunpack.c.h.b16 %v121
    %v1240 = vunpack.c.l.b16 %v122
    %v1241 = vunpack.c.h.b16 %v122
    %v1242 = vunpack.c.l.b16 %v123
    %v1243 = vunpack.c.h.b16 %v123
    %v1244 = vunpack.c.l.b16 %v124
    %v1245 = vunpack.c.h.b16 %v124
    %v1246 = vunpack.c.l.b16 %v125
    %v1247 = vunpack.c.h.b16 %v125
    %v1248 = vunpack.c.l.b16 %v126
    %v1249 = vunpack.c.h.b16 %v126
    %v1250 = vunpack.c.l.b16 %v127
    %v1251 = vunpack.c.h.b16 %v127
    %v1252 = vunpack.c.l.b16 %v128
    %v1253 = vunpack.c.h.b16 %v128
    %v1254 = vunpack.c.l.b16 %v129
    %v1255 = vunpack.c.h.b16 %v129
    %v1256 = vunpack.c.l.b16 %v130
    %v1257 = vunpack.c.h.b16 %v130
    %v1258 = vunpack.c.l.b16 %v131
    %v1259 = vunpack.c.h.b16 %v131
    %v1260 = vunpack.c.l.b16 %v132
    %v1261 = vunpack.c.h.b16 %v132
    %v1262 = vunpack.c.l.b16 %v133
    %v1263 = vunpack.c.h.b16 %v133
    %v1264 = vunpack.c.l.b16 %v134
    %v1265 = vunpack.c.h.b16 %v134
    %v1266 = vunpack.c.l.b16 %v135
    %v1267 = vunpack.c.h.b16 %v135
    %v1268 = vunpack.c.l.b16 %v136
    %v1269 = vunpack.c.h.b16 %v136
    %v1270 = vunpack.c.l.b16 %v137
    %v1271 = vunpack.c.h.b16 %v137
    %v1272 = vunpack.c.l.b16 %v138
    %v1273 = vunpack.c.h.b16 %v138
    %v1274 = vunpack.c.l.b16 %v139
    %v1275 = vunpack.c.h.b16 %v139
    %v1276 = vunpack.c.l.b16 %v140
    %v1277 = vunpack.c.h.b16 %v140
    %v1278 = vunpack.c.l.b16 %v141
    %v1279 = vunpack.c.h.b16 %v141
    %v1280 = vunpack.c.l.b16 %v142
    %v1281 = vunpack.c.h.b16 %v142
    %v1282 = vunpack.c.l.b16 %v143
    %v1283 = vunpack.c.h.b16 %v143
    %v1284 = vunpack.c.l.b16 %v144
    %v1285 = vunpack.c.h.b16 %v144
    %v1286 = vunpack.c.l.b16 %v145
    %v1287 = vunpack.c.h.b16 %v145
    %v1288 = vunpack.c.l.b16 %v146
    %v1289 = vunpack.c.h.b16 %v146
    %v1290 = vunpack.c.l.b16 %v147
    %v1291 = vunpack.c.h.b16 %v147
    %v1292 = vunpack.c.l.b16 %v148
    %v1293 = vunpack.c.h.b16 %v148
    %v1294 = vunpack.c.l.b16 %v149
    %v1295 = vunpack.c.h.b16 %v149
    %v1296 = vunpack.c.l.b16 %v150
    %v1297 = vunpack.c.h.b16 %v150
    %v1298 = vunpack.c.l.b16 %v151
    %v1299 = vunpack.c.h.b16 %v151
    %v1300 = vunpack.c.l.b16 %v152
    %v1301 = vunpack.c.h.b16 %v152
    %v1302 = vunpack.c.l.b16 %v153
    %v1303 = vunpack.c.h.b16 %v153
    %v1304 = vunpack.c.l.b16 %v154
    %v1305 = vunpack.c.h.b16 %v154
    %v1306 = vunpack.c.l.b16 %v155
    %v1307 = vunpack.c.h.b16 %v155
    %v1308 = vunpack.c.l.b16 %v156
    %v1309 = vunpack.c.h.b16 %v156
    %v1310 = vunpack.c.l.b16 %v157
    %v1311 = vunpack.c.h.b16 %v157
    %v1312 = vunpack.c.l.b16 %v158
    %v1313 = vunpack.c.h.b16 %v158
    %v1314 = vunpack.c.l.b16 %v159
    %v1315 = vunpack.c.h.b16 %v159
    %v1316 = vunpack.c.l.b16 %v160
    %v1317 = vunpack.c.h.b16 %v160
    %v1318 = vunpack.c.l.b16 %v161
    %v1319 = vunpack.c.h.b16 %v161
    %v1320 = vunpack.c.l.b16 %v162
    %v1321 = vunpack.c.h.b16 %v162
    %v1322 = vunpack.c.l.b16 %v163
    %v1323 = vunpack.c.h.b16 %v163
    %v1324 = vunpack.c.l.b16 %v164
    %v1325 = vunpack.c.h.b16 %v164
    %v1326 = vunpack.c.l.b16 %v165
    %v1327 = vunpack.c.h.b16 %v165
    %v1328 = vunpack.c.l.b16 %v166
    %v1329 = vunpack.c.h.b16 %v166
    %v1330 = vunpack.c.l.b16 %v167
    %v1331 = vunpack.c.h.b16 %v167
    %v1332 = vunpack.c.l.b16 %v168
    %v1333 = vunpack.c.h.b16 %v168
    %v1334 = vunpack.c.l.b16 %v169
    %v1335 = vunpack.c.h.b16 %v169
    %v1336 = vunpack.c.l.b16 %v170
    %v1337 = vunpack.c.h.b16 %v170
    %v1338 = vunpack.c.l.b16 %v171
    %v1339 = vunpack.c.h.b16 %v171
    %v1340 = vunpack.c.l.b16 %v172
    %v1341 = vunpack.c.h.b16 %v172
    %v1342 = vunpack.c.l.b16 %v173
    %v1343 = vunpack.c.h.b16 %v173
    %v1344 = vunpack.c.l.b16 %v174
    %v1345 = vunpack.c.h.b16 %v174
    %v1346 = vunpack.c.l.b16 %v175
    %v1347 = vunpack.c.h.b16 %v175
    %v1348 = vunpack.c.l.b16 %v176
    %v1349 = vunpack.c.h.b16 %v176
    %v1350 = vunpack.c.l.b16 %v177
    %v1351 = vunpack.c.h.b16 %v177
    %v1352 = vunpack.c.l.b16 %v178
    %v1353 = vunpack.c.h.b16 %v178
    %v1354 = vunpack.c.l.b16 %v179
    %v1355 = vunpack.c.h.b16 %v179
    %v1356 = vunpack.c.l.b16 %v180
    %v1357 = vunpack.c.h.b16 %v180
    %v1358 = vunpack.c.l.b16 %v181
    %v1359 = vunpack.c.h.b16 %v181
    %v1360 = vunpack.c.l.b16 %v182
    %v1361 = vunpack.c.h.b16 %v182
    %v1362 = vunpack.c.l.b16 %v183
    %v1363 = vunpack.c.h.b16 %v183
    %v1364 = vunpack.c.l.b16 %v184
    %v1365 = vunpack.c.h.b16 %v184
    %v1366 = vunpack.c.l.b16 %v185
    %v1367 = vunpack.c.h.b16 %v185
    %v1368 = vunpack.c.l.b16 %v186
    %v1369 = vunpack.c.h.b16 %v186
    %v1370 = vunpack.c.l.b16 %v187
    %v1371 = vunpack.c.h.b16 %v187
    %v1372 = vunpack.c.l.b16 %v188
    %v1373 = vunpack.c.h.b16 %v188
    %v1374 = vunpack.c.l.b16 %v189
    %v1375 = vunpack.c.h.b16 %v189
    %v1376 = vunpack.c.l.b16 %v190
    %v1377 = vunpack.c.h.b16 %v190
    %v1378 = vunpack.c.l.b16 %v191
    %v1379 = vunpack.c.h.b16 %v191
    %v1380 = vunpack.c.l.b16 %v192
    %v1381 = vunpack.c.h.b16 %v192
    %v1382 = vunpack.c.l.b16 %v193
    %v1383 = vunpack.c.h.b16 %v193
    %v1384 = vunpack.c.l.b16 %v194
    %v1385 = vunpack.c.h.b16 %v194
    %v1386 = vunpack.c.l.b16 %v195
    %v1387 = vunpack.c.h.b16 %v195
    %v1388 = vunpack.c.l.b16 %v196
    %v1389 = vunpack.c.h.b16 %v196
    %v1390 = vunpack.c.l.b16 %v197
    %v1391 = vunpack.c.h.b16 %v197
    %v1392 = vunpack.c.l.b16 %v198
    %v1393 = vunpack.c.h.b16 %v198
    %v1394 = vunpack.c.l.b16 %v199
    %v1395 = vunpack.c.h.b16 %v199
    %v1396 = vunpack.c.l.b16 %v200
    %v1397 = vunpack.c.h.b16 %v200
    %v1398 = vunpack.c.l.b16 %v201
    %v1399 = vunpack.c.h.b16 %v201
    %v1400 = vunpack.c.l.b16 %v202
    %v1401 = vunpack.c.h.b16 %v202
    %v1402 = vunpack.c.l.b16 %v203
    %v1403 = vunpack.c.h.b16 %v203
    %v1404 = vunpack.c.l.b16 %v204
    %v1405 = vunpack.c.h.b16 %v204
    %v1406 = vunpack.c.l.b16 %v205
    %v1407 = vunpack.c.h.b16 %v205
    %v1408 = vunpack.c.l.b16 %v206
    %v1409 = vunpack.c.h.b16 %v206
    %v1410 = vunpack.c.l.b16 %v207
    %v1411 = vunpack.c.h.b16 %v207
    %v1412 = vunpack.c.l.b16 %v208
    %v1413 = vunpack.c.h.b16 %v208
    %v1414 = vunpack.c.l.b16 %v209
    %v1415 = vunpack.c.h.b16 %v209
    %v1416 = vunpack.c.l.b16 %v210
    %v1417 = vunpack.c.h.b16 %v210
    %v1418 = vunpack.c.l.b16 %v211
    %v1419 = vunpack.c.h.b16 %v211
    %v1420 = vunpack.c.l.b16 %v212
    %v1421 = vunpack.c.h.b16 %v212
    %v1422 = vunpack.c.l.b16 %v213
    %v1423 = vunpack.c.h.b16 %v213
    %v1424 = vunpack.c.l.b16 %v214
    %v1425 = vunpack.c.h.b16 %v214
    %v1426 = vunpack.c.l.b16 %v215
    %v1427 = vunpack.c.h.b16 %v215
    %v1428 = vunpack.c.l.b16 %v216
    %v1429 = vunpack.c.h.b16 %v216
    %v1430 = vunpack.c.l.b16 %v217
    %v1431 = vunpack.c.h.b16 %v217
    %v1432 = vunpack.c.l.b16 %v218
    %v1433 = vunpack.c.h.b16 %v218
    %v1434 = vunpack.c.l.b16 %v219
    %v1435 = vunpack.c.h.b16 %v219
    %v1436 = vunpack.c.l.b16 %v220
    %v1437 = vunpack.c.h.b16 %v220
    %v1438 = vunpack.c.l.b16 %v221
    %v1439 = vunpack.c.h.b16 %v221
    %v1440 = vunpack.c.l.b16 %v222
    %v1441 = vunpack.c.h.b16 %v222
    %v1442 = vunpack.c.l.b16 %v223
    %v1443 = vunpack.c.h.b16 %v223
    %v1444 = vunpack.c.l.b16 %v224
    %v1445 = vunpack.c.h.b16 %v224
    %v1446 = vunpack.c.l.b16 %v225
    %v1447 = vunpack.c.h.b16 %v225
    %v1448 = vunpack.c.l.b16 %v226
    %v1449 = vunpack.c.h.b16 %v226
    %v1450 = vunpack.c.l.b16 %v227
    %v1451 = vunpack.c.h.b16 %v227
    %v1452 = vunpack.c.l.b16 %v228
    %v1453 = vunpack.c.h.b16 %v228
    %v1454 = vunpack.c.l.b16 %v229
    %v1455 = vunpack.c.h.b16 %v229
    %v1456 = vunpack.c.l.b16 %v230
    %v1457 = vunpack.c.h.b16 %v230
    %v1458 = vunpack.c.l.b16 %v231
    %v1459 = vunpack.c.h.b16 %v231
    %v1460 = vunpack.c.l.b16 %v232
    %v1461 = vunpack.c.h.b16 %v232
    %v1462 = vunpack.c.l.b16 %v233
    %v1463 = vunpack.c.h.b16 %v233
    %v1464 = vunpack.c.l.b16 %v234
    %v1465 = vunpack.c.h.b16 %v234
    %v1466 = vunpack.c.l.b16 %v235
    %v1467 = vunpack.c.h.b16 %v235
    %v1468 = vunpack.c.l.b16 %v236
    %v1469 = vunpack.c.h.b16 %v236
    %v1470 = vunpack.c.l.b16 %v237
    %v1471 = vunpack.c.h.b16 %v237
    %v1472 = vunpack.c.l.b16 %v238
    %v1473 = vunpack.c.h.b16 %v238
    %v1474 = vunpack.c.l.b16 %v239
    %v1475 = vunpack.c.h.b16 %v239
    %v1476 = vunpack.c.l.b16 %v240
    %v1477 = vunpack.c.h.b16 %v240
    %v1478 = vunpack.c.l.b16 %v241
    %v1479 = vunpack.c.h.b16 %v241
    %v1480 = vunpack.c.l.b16 %v242
    %v1481 = vunpack.c.h.b16 %v242
    %v1482 = vunpack.c.l.b16 %v243
    %v1483 = vunpack.c.h.b16 %v243
    %v1484 = vunpack.c.l.b16 %v244
    %v1485 = vunpack.c.h.b16 %v244
    %v1486 = vunpack.c.l.b16 %v245
    %v1487 = vunpack.c.h.b16 %v245
    %v1488 = vunpack.c.l.b16 %v246
    %v1489 = vunpack.c.h.b16 %v246
    %v1490 = vunpack.c.l.b16 %v247
    %v1491 = vunpack.c.h.b16 %v247
    %v1492 = vunpack.c.l.b16 %v248
    %v1493 = vunpack.c.h.b16 %v248
    %v1494 = vunpack.c.l.b16 %v249
    %v1495 = vunpack.c.h.b16 %v249
    %v1496 = vunpack.c.l.b16 %v250
    %v1497 = vunpack.c.h.b16 %v250
    %v1498 = vunpack.c.l.b16 %v251
    %v1499 = vunpack.c.h.b16 %v251
    %v1500 = vunpack.c.l.b16 %v252
    %v1501 = vunpack.c.h.b16 %v252
    %v1502 = vunpack.c.l.b16 %v253
    %v1503 = vunpack.c.h.b16 %v253
    %v1504 = vunpack.c.l.b16 %v254
    %v1505 = vunpack.c.h.b16 %v254
    %v1506 = vunpack.c.l.b16 %v255
    %v1507 = vunpack.c.h.b16 %v255
    %v1508 = vunpack.c.l.b16 %v256
    %v1509 = vunpack.c.h.b16 %v256
    %v1510 = vunpack.c.l.b16 %v257
    %v1511 = vunpack.c.h.b16 %v257
    %v1512 = vunpack.c.l.b16 %v258
    %v1513 = vunpack.c.h.b16 %v258
    %v1514 = vunpack.c.l.b16 %v259
    %v1515 = vunpack.c.h.b16 %v259
    %v1516 = vunpack.c.l.b16 %v260
    %v1517 = vunpack.c.h.b16 %v260
    %v1518 = vunpack.c.l.b16 %v261
    %v1519 = vunpack.c.h.b16 %v261
    %v1520 = vunpack.c.l.b16 %v262
    %v1521 = vunpack.c.h.b16 %v262
    %v1522 = vunpack.c.l.b16 %v263
    %v1523 = vunpack.c.h.b16 %v263
    %v1524 = vunpack.c.l.b16 %v264
    %v1525 = vunpack.c.h.b16 %v264
    %v1526 = vunpack.c.l.b16 %v265
    %v1527 = vunpack.c.h.b16 %v265
    %v1528 = vunpack.c.l.b16 %v266
    %v1529 = vunpack.c.h.b16 %v266
    %v1530 = vunpack.c.l.b16 %v267
    %v1531 = vunpack.c.h.b16 %v267
    %v1532 = vunpack.c.l.b16 %v268
    %v1533 = vunpack.c.h.b16 %v268
    %v1534 = vunpack.c.l.b16 %v269
    %v1535 = vunpack.c.h.b16 %v269
    %v1536 = vunpack.c.l.b16 %v270
    %v1537 = vunpack.c.h.b16 %v270
    %v1538 = vunpack.c.l.b16 %v271
    %v1539 = vunpack.c.h.b16 %v271
    %v1540 = vunpack.c.l.b16 %v272
    %v1541 = vunpack.c.h.b16 %v272
    %v1542 = vunpack.c.l.b16 %v273
    %v1543 = vunpack.c.h.b16 %v273
    %v1544 = vunpack.c.l.b16 %v274
    %v1545 = vunpack.c.h.b16 %v274
    %v1546 = vunpack.c.l.b16 %v275
    %v1547 = vunpack.c.h.b16 %v275
    %v1548 = vunpack.c.l.b16 %v276
    %v1549 = vunpack.c.h.b16 %v276
    %v1550 = vunpack.c.l.b16 %v277
    %v1551 = vunpack.c.h.b16 %v277
    %v1552 = vunpack.c.l.b16 %v278
    %v1553 = vunpack.c.h.b16 %v278
    %v1554 = vunpack.c.l.b16 %v279
    %v1555 = vunpack.c.h.b16 %v279
    %v1556 = vunpack.c.l.b16 %v280
    %v1557 = vunpack.c.h.b16 %v280
    %v1558 = vunpack.c.l.b16 %v281
    %v1559 = vunpack.c.h.b16 %v281
    %v1560 = vunpack.c.l.b16 %v282
    %v1561 = vunpack.c.h.b16 %v282
    %v1562 = vunpack.c.l.b16 %v283
    %v1563 = vunpack.c.h.b16 %v283
    %v1564 = vunpack.c.l.b16 %v284
    %v1565 = vunpack.c.h.b16 %v284
    %v1566 = vunpack.c.l.b16 %v285
    %v1567 = vunpack.c.h.b16 %v285
    %v1568 = vunpack.c.l.b16 %v286
    %v1569 = vunpack.c.h.b16 %v286
    %v1570 = vunpack.c.l.b16 %v287
    %v1571 = vunpack.c.h.b16 %v287
    %v1572 = vunpack.c.l.b16 %v288
    %v1573 = vunpack.c.h.b16 %v288
    %v1574 = vunpack.c.l.b16 %v289
    %v1575 = vunpack.c.h.b16 %v289
    %v1576 = vunpack.c.l.b16 %v290
    %v1577 = vunpack.c.h.b16 %v290
    %v1578 = vunpack.c.l.b16 %v291
    %v1579 = vunpack.c.h.b16 %v291
    %v1580 = vunpack.c.l.b16 %v292
    %v1581 = vunpack.c.h.b16 %v292
    %v1582 = vunpack.c.l.b16 %v293
    %v1583 = vunpack.c.h.b16 %v293
    %v1584 = vunpack.c.l.b16 %v294
    %v1585 = vunpack.c.h.b16 %v294
    %v1586 = vunpack.c.l.b16 %v295
    %v1587 = vunpack.c.h.b16 %v295
    %v1588 = vunpack.c.l.b16 %v296
    %v1589 = vunpack.c.h.b16 %v296
    %v1590 = vunpack.c.l.b16 %v297
    %v1591 = vunpack.c.h.b16 %v297
    %v1592 = vunpack.c.l.b16 %v298
    %v1593 = vunpack.c.h.b16 %v298
    %v1594 = vunpack.c.l.b16 %v299
    %v1595 = vunpack.c.h.b16 %v299
    %v1596 = vunpack.c.l.b16 %v300
    %v1597 = vunpack.c.h.b16 %v300
    %v1598 = vunpack.c.l.b16 %v301
    %v1599 = vunpack.c.h.b16 %v301
    %v1600 = vunpack.c.l.b16 %v302
    %v1601 = vunpack.c.h.b16 %v302
    %v1602 = vunpack.c.l.b16 %v303
    %v1603 = vunpack.c.h.b16 %v303
    %v1604 = vunpack.c.l.b16 %v304
    %v1605 = vunpack.c.h.b16 %v304
    %v1606 = vunpack.c.l.b16 %v305
    %v1607 = vunpack.c.h.b16 %v305
    %v1608 = vunpack.c.l.b16 %v306
    %v1609 = vunpack.c.h.b16 %v306
    %v1610 = vunpack.c.l.b16 %v307
    %v1611 = vunpack.c.h.b16 %v307
    %v1612 = vunpack.c.l.b16 %v308
    %v1613 = vunpack.c.h.b16 %v308
    %v1614 = vunpack.c.l.b16 %v309
    %v1615 = vunpack.c.h.b16 %v309
    %v1616 = vunpack.c.l.b16 %v310
    %v1617 = vunpack.c.h.b16 %v310
    %v1618 = vunpack.c.l.b16 %v311
    %v1619 = vunpack.c.h.b16 %v311
    %v1620 = vunpack.c.l.b16 %v312
    %v1621 = vunpack.c.h.b16 %v312
    %v1622 = vunpack.c.l.b16 %v313
    %v1623 = vunpack.c.h.b16 %v313
    %v1624 = vunpack.c.l.b16 %v314
    %v1625 = vunpack.c.h.b16 %v314
    %v1626 = vunpack.c.l.b16 %v315
    %v1627 = vunpack.c.h.b16 %v315
    %v1628 = vunpack.c.l.b16 %v316
    %v1629 = vunpack.c.h.b16 %v316
    %v1630 = vunpack.c.l.b16 %v317
    %v1631 = vunpack.c.h.b16 %v317
    %v1632 = vunpack.c.l.b16 %v318
    %v1633 = vunpack.c.h.b16 %v318
    %v1634 = vunpack.c.l.b16 %v319
    %v1635 = vunpack.c.h.b16 %v319
    %v1636 = vunpack.c.l.b16 %v320
    %v1637 = vunpack.c.h.b16 %v320
    %v1638 = vunpack.c.l.b16 %v321
    %v1639 = vunpack.c.h.b16 %v321
    %v1640 = vunpack.c.l.b16 %v322
    %v1641 = vunpack.c.h.b16 %v322
    %v1642 = vunpack.c.l.b16 %v323
    %v1643 = vunpack.c.h.b16 %v323
    %v1644 = vunpack.c.l.b16 %v324
    %v1645 = vunpack.c.h.b16 %v324
    %v1646 = vunpack.c.l.b16 %v325
    %v1647 = vunpack.c.h.b16 %v325
    %v1648 = vunpack.c.l.b16 %v326
    %v1649 = vunpack.c.h.b16 %v326
    %v1650 = vunpack.c.l.b16 %v327
    %v1651 = vunpack.c.h.b16 %v327
    %v1652 = vunpack.c.l.b16 %v328
    %v1653 = vunpack.c.h.b16 %v328
    %v1654 = vunpack.c.l.b16 %v329
    %v1655 = vunpack.c.h.b16 %v329
    %v1656 = vunpack.c.l.b16 %v330
    %v1657 = vunpack.c.h.b16 %v330
    %v1658 = vunpack.c.l.b16 %v331
    %v1659 = vunpack.c.h.b16 %v331
    %v1660 = vunpack.c.l.b16 %v332
    %v1661 = vunpack.c.h.b16 %v332
    %v1662 = vunpack.c.l.b16 %v333
    %v1663 = vunpack.c.h.b16 %v333
    %v1664 = vunpack.c.l.b16 %v334
    %v1665 = vunpack.c.h.b16 %v334
    %v1666 = vunpack.c.l.b16 %v335
    %v1667 = vunpack.c.h.b16 %v335
    %v1668 = vunpack.c.l.b16 %v336
    %v1669 = vunpack.c.h.b16 %v336
    %v1670 = vunpack.c.l.b16 %v337
    %v1671 = vunpack.c.h.b16 %v337
    %v1672 = vunpack.c.l.b16 %v338
    %v1673 = vunpack.c.h.b16 %v338
    %v1674 = vunpack.c.l.b16 %v339
    %v1675 = vunpack.c.h.b16 %v339
    %v1676 = vunpack.c.l.b16 %v340
    %v1677 = vunpack.c.h.b16 %v340
    %v1678 = vunpack.c.l.b16 %v341
    %v1679 = vunpack.c.h.b16 %v341
    %v1680 = vunpack.c.l.b16 %v342
    %v1681 = vunpack.c.h.b16 %v342
    %v1682 = vunpack.c.l.b16 %v343
    %v1683 = vunpack.c.h.b16 %v343
    %v1684 = vunpack.c.l.b16 %v344
    %v1685 = vunpack.c.h.b16 %v344
    %v1686 = vunpack.c.l.b16 %v345
    %v1687 = vunpack.c.h.b16 %v345
    %v1688 = vunpack.c.l.b16 %v346
    %v1689 = vunpack.c.h.b16 %v346
    %v1690 = vunpack.c.l.b16 %v347
    %v1691 = vunpack.c.h.b16 %v347
    %v1692 = vunpack.c.l.b16 %v348
    %v1693 = vunpack.c.h.b16 %v348
    %v1694 = vunpack.c.l.b16 %v349
    %v1695 = vunpack.c.h.b16 %v349
    %v1696 = vunpack.c.l.b16 %v350
    %v1697 = vunpack.c.h.b16 %v350
    %v1698 = vunpack.c.l.b16 %v351
    %v1699 = vunpack.c.h.b16 %v351
    %v1700 = vunpack.c.l.b16 %v352
    %v1701 = vunpack.c.h.b16 %v352
    %v1702 = vunpack.c.l.b16 %v353
    %v1703 = vunpack.c.h.b16 %v353
    %v1704 = vunpack.c.l.b16 %v354
    %v1705 = vunpack.c.h.b16 %v354
    %v1706 = vunpack.c.l.b16 %v355
    %v1707 = vunpack.c.h.b16 %v355
    %v1708 = vunpack.c.l.b16 %v356
    %v1709 = vunpack.c.h.b16 %v356
    %v1710 = vunpack.c.l.b16 %v357
    %v1711 = vunpack.c.h.b16 %v357
    %v1712 = vunpack.c.l.b16 %v358
    %v1713 = vunpack.c.h.b16 %v358
    %v1714 = vunpack.c.l.b16 %v359
    %v1715 = vunpack.c.h.b16 %v359
    %v1716 = vunpack.c.l.b16 %v360
    %v1717 = vunpack.c.h.b16 %v360
    %v1718 = vunpack.c.l.b16 %v361
    %v1719 = vunpack.c.h.b16 %v361
    %v1720 = vunpack.c.l.b16 %v362
    %v1721 = vunpack.c.h.b16 %v362
    %v1722 = vunpack.c.l.b16 %v363
    %v1723 = vunpack.c.h.b16 %v363
    %v1724 = vunpack.c.l.b16 %v364
    %v1725 = vunpack.c.h.b16 %v364
    %v1726 = vunpack.c.l.b16 %v365
    %v1727 = vunpack.c.h.b16 %v365
    %v1728 = vunpack.c.l.b16 %v366
    %v1729 = vunpack.c.h.b16 %v366
    %v1730 = vunpack.c.l.b16 %v367
    %v1731 = vunpack.c.h.b16 %v367
    %v1732 = vunpack.c.l.b16 %v368
    %v1733 = vunpack.c.h.b16 %v368
    %v1734 = vunpack.c.l.b16 %v369
    %v1735 = vunpack.c.h.b16 %v369
    %v1736 = vunpack.c.l.b16 %v370
    %v1737 = vunpack.c.h.b16 %v370
    %v1738 = vunpack.c.l.b16 %v371
    %v1739 = vunpack.c.h.b16 %v371
    %v1740 = vunpack.c.l.b16 %v372
    %v1741 = vunpack.c.h.b16 %v372
    %v1742 = vunpack.c.l.b16 %v373
    %v1743 = vunpack.c.h.b16 %v373
    %v1744 = vunpack.c.l.b16 %v374
    %v1745 = vunpack.c.h.b16 %v374
    %v1746 = vunpack.c.l.b16 %v375
    %v1747 = vunpack.c.h.b16 %v375
    %v1748 = vunpack.c.l.b16 %v376
    %v1749 = vunpack.c.h.b16 %v376
    %v1750 = vunpack.c.l.b16 %v377
    %v1751 = vunpack.c.h.b16 %v377
    %v1752 = vunpack.c.l.b16 %v378
    %v1753 = vunpack.c.h.b16 %v378
    %v1754 = vunpack.c.l.b16 %v379
    %v1755 = vunpack.c.h.b16 %v379
    %v1756 = vunpack.c.l.b16 %v380
    %v1757 = vunpack.c.h.b16 %v380
    %v1758 = vunpack.c.l.b16 %v381
    %v1759 = vunpack.c.h.b16 %v381
    %v1760 = vunpack.c.l.b16 %v382
    %v1761 = vunpack.c.h.b16 %v382
    %v1762 = vunpack.c.l.b16 %v383
    %v1763 = vunpack.c.h.b16 %v383
    %v1764 = vunpack.c.l.b16 %v384
    %v1765 = vunpack.c.h.b16 %v384
    %v1766 = vunpack.c.l.b16 %v385
    %v1767 = vunpack.c.h.b16 %v385
    %v1768 = vunpack.c.l.b16 %v386
    %v1769 = vunpack.c.h.b16 %v386
    %v1770 = vunpack.c.l.b16 %v387
    %v1771 = vunpack.c.h.b16 %v387
    %v1772 = vunpack.c.l.b16 %v388
    %v1773 = vunpack.c.h.b16 %v388
    %v1774 = vunpack.c.l.b16 %v389
    %v1775 = vunpack.c.h.b16 %v389
    %v1776 = vunpack.c.l.b16 %v390
    %v1777 = vunpack.c.h.b16 %v390
    %v1778 = vunpack.c.l.b16 %v391
    %v1779 = vunpack.c.h.b16 %v391
    %v1780 = vunpack.c.l.b16 %v392
    %v1781 = vunpack.c.h.b16 %v392
    %v1782 = vunpack.c.l.b16 %v393
    %v1783 = vunpack.c.h.b16 %v393
    %v1784 = vunpack.c.l.b16 %v394
    %v1785 = vunpack.c.h.b16 %v394
    %v1786 = vunpack.c.l.b16 %v395
    %v1787 = vunpack.c.h.b16 %v395
    %v1788 = vunpack.c.l.b16 %v396
    %v1789 = vunpack.c.h.b16 %v396
    %v1790 = vunpack.c.l.b16 %v397
    %v1791 = vunpack.c.h.b16 %v397
    %v1792 = vunpack.c.l.b16 %v398
    %v1793 = vunpack.c.h.b16 %v398
    %v1794 = vunpack.c.l.b16 %v399
    %v1795 = vunpack.c.h.b16 %v399
    %v1796 = vunpack.c.l.b16 %v400
    %v1797 = vunpack.c.h.b16 %v400
    %v1798 = vunpack.c.l.b16 %v401
    %v1799 = vunpack.c.h.b16 %v401
    %v1800 = vunpack.c.l.b16 %v402
    %v1801 = vunpack.c.h.b16 %v402
    %v1802 = vunpack.c.l.b16 %v403
    %v1803 = vunpack.c.h.b16 %v403
    %v1804 = vunpack.c.l.b16 %v404
    %v1805 = vunpack.c.h.b16 %v404
    %v1806 = vunpack.c.l.b16 %v405
    %v1807 = vunpack.c.h.b16 %v405
    %v1808 = vunpack.c.l.b16 %v406
    %v1809 = vunpack.c.h.b16 %v406
    %v1810 = vunpack.c.l.b16 %v407
    %v1811 = vunpack.c.h.b16 %v407
    %v1812 = vunpack.c.l.b16 %v408
    %v1813 = vunpack.c.h.b16 %v408
    %v1814 = vunpack.c.l.b16 %v409
    %v1815 = vunpack.c.h.b16 %v409
    %v1816 = vunpack.c.l.b16 %v410
    %v1817 = vunpack.c.h.b16 %v410
    %v1818 = vunpack.c.l.b16 %v411
    %v1819 = vunpack.c.h.b16 %v411
    %v1820 = vunpack.c.l.b16 %v412
    %v1821 = vunpack.c.h.b16 %v412
    %v1822 = vunpack.c.l.b16 %v413
    %v1823 = vunpack.c.h.b16 %v413
    %v1824 = vunpack.c.l.b16 %v414
    %v1825 = vunpack.c.h.b16 %v414
    %v1826 = vunpack.c.l.b16 %v415
    %v1827 = vunpack.c.h.b16 %v415
    %v1828 = vunpack.c.l.b16 %v416
    %v1829 = vunpack.c.h.b16 %v416
    %v1830 = vunpack.c.l.b16 %v417
    %v1831 = vunpack.c.h.b16 %v417
    %v1832 = vunpack.c.l.b16 %v418
    %v1833 = vunpack.c.h.b16 %v418
    %v1834 = vunpack.c.l.b16 %v419
    %v1835 = vunpack.c.h.b16 %v419
    %v1836 = vunpack.c.l.b16 %v420
    %v1837 = vunpack.c.h.b16 %v420
    %v1838 = vunpack.c.l.b16 %v421
    %v1839 = vunpack.c.h.b16 %v421
    %v1840 = vunpack.c.l.b16 %v422
    %v1841 = vunpack.c.h.b16 %v422
    %v1842 = vunpack.c.l.b16 %v423
    %v1843 = vunpack.c.h.b16 %v423
    %v1844 = vunpack.c.l.b16 %v424
    %v1845 = vunpack.c.h.b16 %v424
    %v1846 = vunpack.c.l.b16 %v425
    %v1847 = vunpack.c.h.b16 %v425
    %v1848 = vunpack.c.l.b16 %v426
    %v1849 = vunpack.c.h.b16 %v426
    %v1850 = vunpack.c.l.b16 %v427
    %v1851 = vunpack.c.h.b16 %v427
    %v1852 = vunpack.c.l.b16 %v428
    %v1853 = vunpack.c.h.b16 %v428
    %v1854 = vunpack.c.l.b16 %v429
    %v1855 = vunpack.c.h.b16 %v429
    %v1856 = vunpack.c.l.b16 %v430
    %v1857 = vunpack.c.h.b16 %v430
    %v1858 = vunpack.c.l.b16 %v431
    %v1859 = vunpack.c.h.b16 %v431
    %v1860 = vunpack.c.l.b16 %v432
    %v1861 = vunpack.c.h.b16 %v432
    %v1862 = vunpack.c.l.b16 %v433
    %v1863 = vunpack.c.h.b16 %v433
    %v1864 = vunpack.c.l.b16 %v434
    %v1865 = vunpack.c.h.b16 %v434
    %v1866 = vunpack.c.l.b16 %v435
    %v1867 = vunpack.c.h.b16 %v435
    %v1868 = vunpack.c.l.b16 %v436
    %v1869 = vunpack.c.h.b16 %v436
    %v1870 = vunpack.c.l.b16 %v437
    %v1871 = vunpack.c.h.b16 %v437
    %v1872 = vunpack.c.l.b16 %v438
    %v1873 = vunpack.c.h.b16 %v438
    %v1874 = vunpack.c.l.b16 %v439
    %v1875 = vunpack.c.h.b16 %v439
    %v1876 = vunpack.c.l.b16 %v440
    %v1877 = vunpack.c.h.b16 %v440
    %v1878 = vunpack.c.l.b16 %v441
    %v1879 = vunpack.c.h.b16 %v441
    %v1880 = vunpack.c.l.b16 %v442
    %v1881 = vunpack.c.h.b16 %v442
    %v1882 = vunpack.c.l.b16 %v443
    %v1883 = vunpack.c.h.b16 %v443
    %v1884 = vunpack.c.l.b16 %v444
    %v1885 = vunpack.c.h.b16 %v444
    %v1886 = vunpack.c.l.b16 %v445
    %v1887 = vunpack.c.h.b16 %v445
    %v1888 = vunpack.c.l.b16 %v446
    %v1889 = vunpack.c.h.b16 %v446
    %v1890 = vunpack.c.l.b16 %v447
    %v1891 = vunpack.c.h.b16 %v447
    %v1892 = vunpack.c.l.b16 %v448
    %v1893 = vunpack.c.h.b16 %v448
    %v1894 = vunpack.c.l.b16 %v449
    %v1895 = vunpack.c.h.b16 %v449
    %v1896 = vunpack.c.l.b16 %v450
    %v1897 = vunpack.c.h.b16 %v450
    %v1898 = vunpack.c.l.b16 %v451
    %v1899 = vunpack.c.h.b16 %v451
    %v1900 = vunpack.c.l.b16 %v452
    %v1901 = vunpack.c.h.b16 %v452
    %v1902 = vunpack.c.l.b16 %v453
    %v1903 = vunpack.c.h.b16 %v453
    %v1904 = vunpack.c.l.b16 %v454
    %v1905 = vunpack.c.h.b16 %v454
    %v1906 = vunpack.c.l.b16 %v455
    %v1907 = vunpack.c.h.b16 %v455
    %v1908 = vunpack.c.l.b16 %v456
    %v1909 = vunpack.c.h.b16 %v456
    %v1910 = vunpack.c.l.b16 %v457
    %v1911 = vunpack.c.h.b16 %v457
    %v1912 = vunpack.c.l.b16 %v458
    %v1913 = vunpack.c.h.b16 %v458
    %v1914 = vunpack.c.l.b16 %v459
    %v1915 = vunpack.c.h.b16 %v459
    %v1916 = vunpack.c.l.b16 %v460
    %v1917 = vunpack.c.h.b16 %v460
    %v1918 = vunpack.c.l.b16 %v461
    %v1919 = vunpack.c.h.b16 %v461
    %v1920 = vunpack.c.l.b16 %v462
    %v1921 = vunpack.c.h.b16 %v462
    %v1922 = vunpack.c.l.b16 %v463
    %v1923 = vunpack.c.h.b16 %v463
    %v1924 = vunpack.c.l.b16 %v464
    %v1925 = vunpack.c.h.b16 %v464
    %v1926 = vunpack.c.l.b16 %v465
    %v1927 = vunpack.c.h.b16 %v465
    %v1928 = vunpack.c.l.b16 %v466
    %v1929 = vunpack.c.h.b16 %v466
    %v1930 = vunpack.c.l.b16 %v467
    %v1931 = vunpack.c.h.b16 %v467
    %v1932 = vunpack.c.l.b16 %v468
    %v1933 = vunpack.c.h.b16 %v468
    %v1934 = vunpack.c.l.b16 %v469
    %v1935 = vunpack.c.h.b16 %v469
    %v1936 = vunpack.c.l.b16 %v470
    %v1937 = vunpack.c.h.b16 %v470
    %v1938 = vunpack.c.l.b16 %v471
    %v1939 = vunpack.c.h.b16 %v471
    %v1940 = vunpack.c.l.b16 %v472
    %v1941 = vunpack.c.h.b16 %v472
    %v1942 = vunpack.c.l.b16 %v473
    %v1943 = vunpack.c.h.b16 %v473
    %v1944 = vunpack.c.l.b16 %v474
    %v1945 = vunpack.c.h.b16 %v474
    %v1946 = vunpack.c.l.b16 %v475
    %v1947 = vunpack.c.h.b16 %v475
    %v1948 = vunpack.c.l.b16 %v476
    %v1949 = vunpack.c.h.b16 %v476
    %v1950 = vunpack.c.l.b16 %v477
    %v1951 = vunpack.c.h.b16 %v477
    %v1952 = vunpack.c.l.b16 %v478
    %v1953 = vunpack.c.h.b16 %v478
    %v1954 = vunpack.c.l.b16 %v479
    %v1955 = vunpack.c.h.b16 %v479
    %v1956 = vunpack.c.l.b16 %v480
    %v1957 = vunpack.c.h.b16 %v480
    %v1958 = vunpack.c.l.b16 %v481
    %v1959 = vunpack.c.h.b16 %v481
    %v1960 = vunpack.c.l.b16 %v482
    %v1961 = vunpack.c.h.b16 %v482
    %v1962 = vunpack.c.l.b16 %v483
    %v1963 = vunpack.c.h.b16 %v483
    %v1964 = vunpack.c.l.b16 %v484
    %v1965 = vunpack.c.h.b16 %v484
    %v1966 = vunpack.c.l.b16 %v485
    %v1967 = vunpack.c.h.b16 %v485
    %v1968 = vunpack.c.l.b16 %v486
    %v1969 = vunpack.c.h.b16 %v486
    %v1970 = vunpack.c.l.b16 %v487
    %v1971 = vunpack.c.h.b16 %v487
    %v1972 = vunpack.c.l.b16 %v488
    %v1973 = vunpack.c.h.b16 %v488
    %v1974 = vunpack.c.l.b16 %v489
    %v1975 = vunpack.c.h.b16 %v489
    %v1976 = vunpack.c.l.b16 %v490
    %v1977 = vunpack.c.h.b16 %v490
    %v1978 = vunpack.c.l.b16 %v491
    %v1979 = vunpack.c.h.b16 %v491
    %v1980 = vunpack.c.l.b16 %v492
    %v1981 = vunpack.c.h.b16 %v492
    %v1982 = vunpack.c.l.b16 %v493
    %v1983 = vunpack.c.h.b16 %v493
    %v1984 = vunpack.c.l.b16 %v494
    %v1985 = vunpack.c.h.b16 %v494
    %v1986 = vunpack.c.l.b16 %v495
    %v1987 = vunpack.c.h.b16 %v495
    %v1988 = vunpack.c.l.b16 %v496
    %v1989 = vunpack.c.h.b16 %v496
    %v1990 = vunpack.c.l.b16 %v497
    %v1991 = vunpack.c.h.b16 %v497
    %v1992 = vunpack.c.l.b16 %v498
    %v1993 = vunpack.c.h.b16 %v498
    %v1994 = vunpack.c.l.b16 %v499
    %v1995 = vunpack.c.h.b16 %v499
    %v1996 = vunpack.c.l.b16 %v500
    %v1997 = vunpack.c.h.b16 %v500
    %v1998 = vunpack.c.l.b16 %v501
    %v1999 = vunpack.c.h.b16 %v501
    %v2000 = vunpack.c.l.b16 %v502
    %v2001 = vunpack.c.h.b16 %v502
    %v2002 = vunpack.c.l.b16 %v503
    %v2003 = vunpack.c.h.b16 %v503
    %v2004 = vunpack.c.l.b16 %v504
    %v2005 = vunpack.c.h.b16 %v504
    %v2006 = vunpack.c.l.b16 %v505
    %v2007 = vunpack.c.h.b16 %v505
    %v2008 = vunpack.c.l.b16 %v506
    %v2009 = vunpack.c.h.b16 %v506
    %v2010 = vunpack.c.l.b16 %v507
    %v2011 = vunpack.c.h.b16 %v507
    %v2012 = vunpack.c.l.b16 %v508
    %v2013 = vunpack.c.h.b16 %v508
    %v2014 = vunpack.c.l.b16 %v509
    %v2015 = vunpack.c.h.b16 %v509
    %v2016 = vunpack.c.l.b16 %v510
    %v2017 = vunpack.c.h.b16 %v510
    %v2018 = vunpack.c.l.b16 %v511
    %v2019 = vunpack.c.h.b16 %v511
    %v2020 = vunpack.c.l.b16 %v512
    %v2021 = vunpack.c.h.b16 %v512
    %v2022 = vunpack.c.l.b16 %v513
    %v2023 = vunpack.c.h.b16 %v513
    %v2024 = vunpack.c.l.b16 %v514
    %v2025 = vunpack.c.h.b16 %v514
    %v2026 = vunpack.c.l.b16 %v515
    %v2027 = vunpack.c.h.b16 %v515
    %v2028 = vunpack.c.l.b16 %v516
    %v2029 = vunpack.c.h.b16 %v516
    %v2030 = vunpack.c.l.b16 %v517
    %v2031 = vunpack.c.h.b16 %v517
    %v2032 = vunpack.c.l.b16 %v518
    %v2033 = vunpack.c.h.b16 %v518
    %v2034 = vunpack.c.l.b16 %v519
    %v2035 = vunpack.c.h.b16 %v519
    %v2036 = vunpack.c.l.b16 %v520
    %v2037 = vunpack.c.h.b16 %v520
    %v2038 = vunpack.c.l.b16 %v521
    %v2039 = vunpack.c.h.b16 %v521
    %v2040 = vunpack.c.l.b16 %v522
    %v2041 = vunpack.c.h.b16 %v522
    %v2042 = vunpack.c.l.b16 %v523
    %v2043 = vunpack.c.h.b16 %v523
    %v2044 = vunpack.c.l.b16 %v524
    %v2045 = vunpack.c.h.b16 %v524
    %v2046 = vunpack.c.l.b16 %v525
    %v2047 = vunpack.c.h.b16 %v525
    %v2048 = vunpack.c.l.b16 %v526
    %v2049 = vunpack.c.h.b16 %v526
    %v2050 = vunpack.c.l.b16 %v527
    %v2051 = vunpack.c.h.b16 %v527
    %v2052 = vunpack.c.l.b16 %v528
    %v2053 = vunpack.c.h.b16 %v528
    %v2054 = vunpack.c.l.b16 %v529
    %v2055 = vunpack.c.h.b16 %v529
    %v2056 = vunpack.c.l.b16 %v530
    %v2057 = vunpack.c.h.b16 %v530
    %v2058 = vunpack.c.l.b16 %v531
    %v2059 = vunpack.c.h.b16 %v531
    %v2060 = vunpack.c.l.b16 %v532
    %v2061 = vunpack.c.h.b16 %v532
    %v2062 = vunpack.c.l.b16 %v533
    %v2063 = vunpack.c.h.b16 %v533
    %v2064 = vunpack.c.l.b16 %v534
    %v2065 = vunpack.c.h.b16 %v534
    %v2066 = vunpack.c.l.b16 %v535
    %v2067 = vunpack.c.h.b16 %v535
    %v2068 = vunpack.c.l.b16 %v536
    %v2069 = vunpack.c.h.b16 %v536
    %v2070 = vunpack.c.l.b16 %v537
    %v2071 = vunpack.c.h.b16 %v537
    %v2072 = vunpack.c.l.b16 %v538
    %v2073 = vunpack.c.h.b16 %v538
    %v2074 = vunpack.c.l.b16 %v539
    %v2075 = vunpack.c.h.b16 %v539
    %v2076 = vunpack.c.l.b16 %v540
    %v2077 = vunpack.c.h.b16 %v540
    %v2078 = vunpack.c.l.b16 %v541
    %v2079 = vunpack.c.h.b16 %v541
    %v2080 = vunpack.c.l.b16 %v542
    %v2081 = vunpack.c.h.b16 %v542
    %v2082 = vunpack.c.l.b16 %v543
    %v2083 = vunpack.c.h.b16 %v543
    %v2084 = vunpack.c.l.b16 %v544
    %v2085 = vunpack.c.h.b16 %v544
    %v2086 = vunpack.c.l.b16 %v545
    %v2087 = vunpack.c.h.b16 %v545
    %v2088 = vunpack.c.l.b16 %v546
    %v2089 = vunpack.c.h.b16 %v546
    %v2090 = vunpack.c.l.b16 %v547
    %v2091 = vunpack.c.h.b16 %v547
    %v2092 = vunpack.c.l.b16 %v548
    %v2093 = vunpack.c.h.b16 %v548
    %v2094 = vunpack.c.l.b16 %v549
    %v2095 = vunpack.c.h.b16 %v549
    %v2096 = vunpack.c.l.b16 %v550
    %v2097 = vunpack.c.h.b16 %v550
    %v2098 = vunpack.c.l.b16 %v551
    %v2099 = vunpack.c.h.b16 %v551
    %v2100 = vunpack.c.l.b16 %v552
    %v2101 = vunpack.c.h.b16 %v552
    %v2102 = vunpack.c.l.b16 %v553
    %v2103 = vunpack.c.h.b16 %v553
    %v2104 = vunpack.c.l.b16 %v554
    %v2105 = vunpack.c.h.b16 %v554
    %v2106 = vunpack.c.l.b16 %v555
    %v2107 = vunpack.c.h.b16 %v555
    %v2108 = vunpack.c.l.b16 %v556
    %v2109 = vunpack.c.h.b16 %v556
    %v2110 = vunpack.c.l.b16 %v557
    %v2111 = vunpack.c.h.b16 %v557
    %v2112 = vunpack.c.l.b16 %v558
    %v2113 = vunpack.c.h.b16 %v558
    %v2114 = vunpack.c.l.b16 %v559
    %v2115 = vunpack.c.h.b16 %v559
    %v2116 = vunpack.c.l.b16 %v560
    %v2117 = vunpack.c.h.b16 %v560
    %v2118 = vunpack.c.l.b16 %v561
    %v2119 = vunpack.c.h.b16 %v561
    %v2120 = vunpack.c.l.b16 %v562
    %v2121 = vunpack.c.h.b16 %v562
    %v2122 = vunpack.c.l.b16 %v563
    %v2123 = vunpack.c.h.b16 %v563
    %v2124 = vunpack.c.l.b16 %v564
    %v2125 = vunpack.c.h.b16 %v564
    %v2126 = vunpack.c.l.b16 %v565
    %v2127 = vunpack.c.h.b16 %v565
    %v2128 = vunpack.c.l.b16 %v566
    %v2129 = vunpack.c.h.b16 %v566
    %v2130 = vunpack.c.l.b16 %v567
    %v2131 = vunpack.c.h.b16 %v567
    %v2132 = vunpack.c.l.b16 %v568
    %v2133 = vunpack.c.h.b16 %v568
    %v2134 = vunpack.c.l.b16 %v569
    %v2135 = vunpack.c.h.b16 %v569
    %v2136 = vunpack.c.l.b16 %v570
    %v2137 = vunpack.c.h.b16 %v570
    %v2138 = vunpack.c.l.b16 %v571
    %v2139 = vunpack.c.h.b16 %v571
    %v2140 = vunpack.c.l.b16 %v572
    %v2141 = vunpack.c.h.b16 %v572
    %v2142 = vunpack.c.l.b16 %v573
    %v2143 = vunpack.c.h.b16 %v573
    %v2144 = vunpack.c.l.b16 %v574
    %v2145 = vunpack.c.h.b16 %v574
    %v2146 = vunpack.c.l.b16 %v575
    %v2147 = vunpack.c.h.b16 %v575
    %v2148 = vunpack.c.l.b16 %v576
    %v2149 = vunpack.c.h.b16 %v576
    %v2150 = vunpack.c.l.b16 %v577
    %v2151 = vunpack.c.h.b16 %v577
    %v2152 = vunpack.c.l.b16 %v578
    %v2153 = vunpack.c.h.b16 %v578
    %v2154 = vunpack.c.l.b16 %v579
    %v2155 = vunpack.c.h.b16 %v579
    %v2156 = vunpack.c.l.b16 %v580
    %v2157 = vunpack.c.h.b16 %v580
    %v2158 = vunpack.c.l.b16 %v581
    %v2159 = vunpack.c.h.b16 %v581
    %v2160 = vunpack.c.l.b16 %v582
    %v2161 = vunpack.c.h.b16 %v582
    %v2162 = vunpack.c.l.b16 %v583
    %v2163 = vunpack.c.h.b16 %v583
    %v2164 = vunpack.c.l.b16 %v584
    %v2165 = vunpack.c.h.b16 %v584
    %v2166 = vunpack.c.l.b16 %v585
    %v2167 = vunpack.c.h.b16 %v585
    %v2168 = vunpack.c.l.b16 %v586
    %v2169 = vunpack.c.h.b16 %v586
    %v2170 = vunpack.c.l.b16 %v587
    %v2171 = vunpack.c.h.b16 %v587
    %v2172 = vunpack.c.l.b16 %v588
    %v2173 = vunpack.c.h.b16 %v588
    %v2174 = vunpack.c.l.b16 %v589
    %v2175 = vunpack.c.h.b16 %v589
    %v2176 = vunpack.c.l.b16 %v590
    %v2177 = vunpack.c.h.b16 %v590
    %v2178 = vunpack.c.l.b16 %v591
    %v2179 = vunpack.c.h.b16 %v591
    %v2180 = vunpack.c.l.b16 %v592
    %v2181 = vunpack.c.h.b16 %v592
    %v2182 = vunpack.c.l.b16 %v593
    %v2183 = vunpack.c.h.b16 %v593
    %v2184 = vunpack.c.l.b16 %v594
    %v2185 = vunpack.c.h.b16 %v594
    %v2186 = vunpack.c.l.b16 %v595
    %v2187 = vunpack.c.h.b16 %v595
    %v2188 = vunpack.c.l.b16 %v596
    %v2189 = vunpack.c.h.b16 %v596
    %v2190 = vunpack.c.l.b16 %v597
    %v2191 = vunpack.c.h.b16 %v597
    %v2192 = vunpack.c.l.b16 %v598
    %v2193 = vunpack.c.h.b16 %v598
    %v2194 = vunpack.c.l.b16 %v599
    %v2195 = vunpack.c.h.b16 %v599
    %v2196 = vunpack.c.l.b16 %v600
    %v2197 = vunpack.c.h.b16 %v600
    %v2198 = vunpack.c.l.b16 %v601
    %v2199 = vunpack.c.h.b16 %v601
    %v2200 = vunpack.c.l.b16 %v602
    %v2201 = vunpack.c.h.b16 %v602
    %v2202 = vunpack.c.l.b16 %v603
    %v2203 = vunpack.c.h.b16 %v603
    %v2204 = vunpack.c.l.b16 %v604
    %v2205 = vunpack.c.h.b16 %v604
    %v2206 = vunpack.c.l.b16 %v605
    %v2207 = vunpack.c.h.b16 %v605
    %v2208 = vunpack.c.l.b16 %v606
    %v2209 = vunpack.c.h.b16 %v606
    %v2210 = vunpack.c.l.b16 %v607
    %v2211 = vunpack.c.h.b16 %v607
    %v2212 = vunpack.c.l.b16 %v608
    %v2213 = vunpack.c.h.b16 %v608
    %v2214 = vunpack.c.l.b16 %v609
    %v2215 = vunpack.c.h.b16 %v609
    %v2216 = vunpack.c.l.b16 %v610
    %v2217 = vunpack.c.h.b16 %v610
    %v2218 = vunpack.c.l.b16 %v611
    %v2219 = vunpack.c.h.b16 %v611
    %v2220 = vunpack.c.l.b16 %v612
    %v2221 = vunpack.c.h.b16 %v612
    %v2222 = vunpack.c.l.b16 %v613
    %v2223 = vunpack.c.h.b16 %v613
    %v2224 = vunpack.c.l.b16 %v614
    %v2225 = vunpack.c.h.b16 %v614
    %v2226 = vunpack.c.l.b16 %v615
    %v2227 = vunpack.c.h.b16 %v615
    %v2228 = vunpack.c.l.b16 %v616
    %v2229 = vunpack.c.h.b16 %v616
    %v2230 = vunpack.c.l.b16 %v617
    %v2231 = vunpack.c.h.b16 %v617
    %v2232 = vunpack.c.l.b16 %v618
    %v2233 = vunpack.c.h.b16 %v618
    %v2234 = vunpack.c.l.b16 %v619
    %v2235 = vunpack.c.h.b16 %v619
    %v2236 = vpack.c.b16 %v1216, %v1212
    %v2237 = vpack.c.b16 %v1217, %v1213
    %v2238 = vpack.c.b16 %v1218, %v1214
    %v2239 = vpack.c.b16 %v1219, %v1215
    %v2240 = vpack.c.b16 %v1224, %v1220
    %v2241 = vpack.c.b16 %v1225, %v1221
    %v2242 = vpack.c.b16 %v1226, %v1222
    %v2243 = vpack.c.b16 %v1227, %v1223
    %v2244 = vpack.c.b16 %v1232, %v1228
    %v2245 = vpack.c.b16 %v1233, %v1229
    %v2246 = vpack.c.b16 %v1234, %v1230
    %v2247 = vpack.c.b16 %v1235, %v1231
    %v2248 = vpack.c.b16 %v1240, %v1236
    %v2249 = vpack.c.b16 %v1241, %v1237
    %v2250 = vpack.c.b16 %v1242, %v1238
    %v2251 = vpack.c.b16 %v1243, %v1239
    %v2252 = vpack.c.b16 %v1248, %v1244
    %v2253 = vpack.c.b16 %v1249, %v1245
    %v2254 = vpack.c.b16 %v1250, %v1246
    %v2255 = vpack.c.b16 %v1251, %v1247
    %v2256 = vpack.c.b16 %v1256, %v1252
    %v2257 = vpack.c.b16 %v1257, %v1253
    %v2258 = vpack.c.b16 %v1258, %v1254
    %v2259 = vpack.c.b16 %v1259, %v1255
    %v2260 = vpack.c.b16 %v1264, %v1260
    %v2261 = vpack.c.b16 %v1265, %v1261
    %v2262 = vpack.c.b16 %v1266, %v1262
    %v2263 = vpack.c.b16 %v1267, %v1263
    %v2264 = vpack.c.b16 %v1272, %v1268
    %v2265 = vpack.c.b16 %v1273, %v1269
    %v2266 = vpack.c.b16 %v1274, %v1270
    %v2267 = vpack.c.b16 %v1275, %v1271
    %v2268 = vpack.c.b16 %v1280, %v1276
    %v2269 = vpack.c.b16 %v1281, %v1277
    %v2270 = vpack.c.b16 %v1282, %v1278
    %v2271 = vpack.c.b16 %v1283, %v1279
    %v2272 = vpack.c.b16 %v1288, %v1284
    %v2273 = vpack.c.b16 %v1289, %v1285
    %v2274 = vpack.c.b16 %v1290, %v1286
    %v2275 = vpack.c.b16 %v1291, %v1287
    %v2276 = vpack.c.b16 %v1296, %v1292
    %v2277 = vpack.c.b16 %v1297, %v1293
    %v2278 = vpack.c.b16 %v1298, %v1294
    %v2279 = vpack.c.b16 %v1299, %v1295
    %v2280 = vpack.c.b16 %v1304, %v1300
    %v2281 = vpack.c.b16 %v1305, %v1301
    %v2282 = vpack.c.b16 %v1306, %v1302
    %v2283 = vpack.c.b16 %v1307, %v1303
    %v2284 = vpack.c.b16 %v1312, %v1308
    %v2285 = vpack.c.b16 %v1313, %v1309
    %v2286 = vpack.c.b16 %v1314, %v1310
    %v2287 = vpack.c.b16 %v1315, %v1311
    %v2288 = vpack.c.b16 %v1320, %v1316
    %v2289 = vpack.c.b16 %v1321, %v1317
    %v2290 = vpack.c.b16 %v1322, %v1318
    %v2291 = vpack.c.b16 %v1323, %v1319
    %v2292 = vpack.c.b16 %v1328, %v1324
    %v2293 = vpack.c.b16 %v1329, %v1325
    %v2294 = vpack.c.b16 %v1330, %v1326
    %v2295 = vpack.c.b16 %v1331, %v1327
    %v2296 = vpack.c.b16 %v1336, %v1332
    %v2297 = vpack.c.b16 %v1337, %v1333
    %v2298 = vpack.c.b16 %v1338, %v1334
    %v2299 = vpack.c.b16 %v1339, %v1335
    %v2300 = vpack.c.b16 %v1344, %v1340
    %v2301 = vpack.c.b16 %v1345, %v1341
    %v2302 = vpack.c.b16 %v1346, %v1342
    %v2303 = vpack.c.b16 %v1347, %v1343
    %v2304 = vpack.c.b16 %v1352, %v1348
    %v2305 = vpack.c.b16 %v1353, %v1349
    %v2306 = vpack.c.b16 %v1354, %v1350
    %v2307 = vpack.c.b16 %v1355, %v1351
    %v2308 = vpack.c.b16 %v1360, %v1356
    %v2309 = vpack.c.b16 %v1361, %v1357
    %v2310 = vpack.c.b16 %v1362, %v1358
    %v2311 = vpack.c.b16 %v1363, %v1359
    %v2312 = vpack.c.b16 %v1368, %v1364
    %v2313 = vpack.c.b16 %v1369, %v1365
    %v2314 = vpack.c.b16 %v1370, %v1366
    %v2315 = vpack.c.b16 %v1371, %v1367
    %v2316 = vpack.c.b16 %v1376, %v1372
    %v2317 = vpack.c.b16 %v1377, %v1373
    %v2318 = vpack.c.b16 %v1378, %v1374
    %v2319 = vpack.c.b16 %v1379, %v1375
    %v2320 = vpack.c.b16 %v1384, %v1380
    %v2321 = vpack.c.b16 %v1385, %v1381
    %v2322 = vpack.c.b16 %v1386, %v1382
    %v2323 = vpack.c.b16 %v1387, %v1383
    %v2324 = vpack.c.b16 %v1392, %v1388
    %v2325 = vpack.c.b16 %v1393, %v1389
    %v2326 = vpack.c.b16 %v1394, %v1390
    %v2327 = vpack.c.b16 %v1395, %v1391
    %v2328 = vpack.c.b16 %v1400, %v1396
    %v2329 = vpack.c.b16 %v1401, %v1397
    %v2330 = vpack.c.b16 %v1402, %v1398
    %v2331 = vpack.c.b16 %v1403, %v1399
    %v2332 = vpack.c.b16 %v1408, %v1404
    %v2333 = vpack.c.b16 %v1409, %v1405
    %v2334 = vpack.c.b16 %v1410, %v1406
    %v2335 = vpack.c.b16 %v1411, %v1407
    %v2336 = vpack.c.b16 %v1416, %v1412
    %v2337 = vpack.c.b16 %v1417, %v1413
    %v2338 = vpack.c.b16 %v1418, %v1414
    %v2339 = vpack.c.b16 %v1419, %v1415
    %v2340 = vpack.c.b16 %v1424, %v1420
    %v2341 = vpack.c.b16 %v1425, %v1421
    %v2342 = vpack.c.b16 %v1426, %v1422
    %v2343 = vpack.c.b16 %v1427, %v1423
    %v2344 = vpack.c.b16 %v1432, %v1428
    %v2345 = vpack.c.b16 %v1433, %v1429
    %v2346 = vpack.c.b16 %v1434, %v1430
    %v2347 = vpack.c.b16 %v1435, %v1431
    %v2348 = vpack.c.b16 %v1440, %v1436
    %v2349 = vpack.c.b16 %v1441, %v1437
    %v2350 = vpack.c.b16 %v1442, %v1438
    %v2351 = vpack.c.b16 %v1443, %v1439
    %v2352 = vpack.c.b16 %v1448, %v1444
    %v2353 = vpack.c.b16 %v1449, %v1445
    %v2354 = vpack.c.b16 %v1450, %v1446
    %v2355 = vpack.c.b16 %v1451, %v1447
    %v2356 = vpack.c.b16 %v1456, %v1452
    %v2357 = vpack.c.b16 %v1457, %v1453
    %v2358 = vpack.c.b16 %v1458, %v1454
    %v2359 = vpack.c.b16 %v1459, %v1455
    %v2360 = vpack.c.b16 %v1464, %v1460
    %v2361 = vpack.c.b16 %v1465, %v1461
    %v2362 = vpack.c.b16 %v1466, %v1462
    %v2363 = vpack.c.b16 %v1467, %v1463
    %v2364 = vpack.c.b16 %v1472, %v1468
    %v2365 = vpack.c.b16 %v1473, %v1469
    %v2366 = vpack.c.b16 %v1474, %v1470
    %v2367 = vpack.c.b16 %v1475, %v1471
    %v2368 = vpack.c.b16 %v1480, %v1476
    %v2369 = vpack.c.b16 %v1481, %v1477
    %v2370 = vpack.c.b16 %v1482, %v1478
    %v2371 = vpack.c.b16 %v1483, %v1479
    %v2372 = vpack.c.b16 %v1488, %v1484
    %v2373 = vpack.c.b16 %v1489, %v1485
    %v2374 = vpack.c.b16 %v1490, %v1486
    %v2375 = vpack.c.b16 %v1491, %v1487
    %v2376 = vpack.c.b16 %v1496, %v1492
    %v2377 = vpack.c.b16 %v1497, %v1493
    %v2378 = vpack.c.b16 %v1498, %v1494
    %v2379 = vpack.c.b16 %v1499, %v1495
    %v2380 = vpack.c.b16 %v1504, %v1500
    %v2381 = vpack.c.b16 %v1505, %v1501
    %v2382 = vpack.c.b16 %v1506, %v1502
    %v2383 = vpack.c.b16 %v1507, %v1503
    %v2384 = vpack.c.b16 %v1512, %v1508
    %v2385 = vpack.c.b16 %v1513, %v1509
    %v2386 = vpack.c.b16 %v1514, %v1510
    %v2387 = vpack.c.b16 %v1515, %v1511
    %v2388 = vpack.c.b16 %v1520, %v1516
    %v2389 = vpack.c.b16 %v1521, %v1517
    %v2390 = vpack.c.b16 %v1522, %v1518
    %v2391 = vpack.c.b16 %v1523, %v1519
    %v2392 = vpack.c.b16 %v1528, %v1524
    %v2393 = vpack.c.b16 %v1529, %v1525
    %v2394 = vpack.c.b16 %v1530, %v1526
    %v2395 = vpack.c.b16 %v1531, %v1527
    %v2396 = vpack.c.b16 %v1536, %v1532
    %v2397 = vpack.c.b16 %v1537, %v1533
    %v2398 = vpack.c.b16 %v1538, %v1534
    %v2399 = vpack.c.b16 %v1539, %v1535
    %v2400 = vpack.c.b16 %v1544, %v1540
    %v2401 = vpack.c.b16 %v1545, %v1541
    %v2402 = vpack.c.b16 %v1546, %v1542
    %v2403 = vpack.c.b16 %v1547, %v1543
    %v2404 = vpack.c.b16 %v1552, %v1548
    %v2405 = vpack.c.b16 %v1553, %v1549
    %v2406 = vpack.c.b16 %v1554, %v1550
    %v2407 = vpack.c.b16 %v1555, %v1551
    %v2408 = vpack.c.b16 %v1560, %v1556
    %v2409 = vpack.c.b16 %v1561, %v1557
    %v2410 = vpack.c.b16 %v1562, %v1558
    %v2411 = vpack.c.b16 %v1563, %v1559
    %v2412 = vpack.c.b16 %v1568, %v1564
    %v2413 = vpack.c.b16 %v1569, %v1565
    %v2414 = vpack.c.b16 %v1570, %v1566
    %v2415 = vpack.c.b16 %v1571, %v1567
    %v2416 = vpack.c.b16 %v1576, %v1572
    %v2417 = vpack.c.b16 %v1577, %v1573
    %v2418 = vpack.c.b16 %v1578, %v1574
    %v2419 = vpack.c.b16 %v1579, %v1575
    %v2420 = vpack.c.b16 %v1584, %v1580
    %v2421 = vpack.c.b16 %v1585, %v1581
    %v2422 = vpack.c.b16 %v1586, %v1582
    %v2423 = vpack.c.b16 %v1587, %v1583
    %v2424 = vpack.c.b16 %v1592, %v1588
    %v2425 = vpack.c.b16 %v1593, %v1589
    %v2426 = vpack.c.b16 %v1594, %v1590
    %v2427 = vpack.c.b16 %v1595, %v1591
    %v2428 = vpack.c.b16 %v1600, %v1596
    %v2429 = vpack.c.b16 %v1601, %v1597
    %v2430 = vpack.c.b16 %v1602, %v1598
    %v2431 = vpack.c.b16 %v1603, %v1599
    %v2432 = vpack.c.b16 %v1608, %v1604
    %v2433 = vpack.c.b16 %v1609, %v1605
    %v2434 = vpack.c.b16 %v1610, %v1606
    %v2435 = vpack.c.b16 %v1611, %v1607
    %v2436 = vpack.c.b16 %v1616, %v1612
    %v2437 = vpack.c.b16 %v1617, %v1613
    %v2438 = vpack.c.b16 %v1618, %v1614
    %v2439 = vpack.c.b16 %v1619, %v1615
    %v2440 = vpack.c.b16 %v1624, %v1620
    %v2441 = vpack.c.b16 %v1625, %v1621
    %v2442 = vpack.c.b16 %v1626, %v1622
    %v2443 = vpack.c.b16 %v1627, %v1623
    %v2444 = vpack.c.b16 %v1632, %v1628
    %v2445 = vpack.c.b16 %v1633, %v1629
    %v2446 = vpack.c.b16 %v1634, %v1630
    %v2447 = vpack.c.b16 %v1635, %v1631
    %v2448 = vpack.c.b16 %v1640, %v1636
    %v2449 = vpack.c.b16 %v1641, %v1637
    %v2450 = vpack.c.b16 %v1642, %v1638
    %v2451 = vpack.c.b16 %v1643, %v1639
    %v2452 = vpack.c.b16 %v1648, %v1644
    %v2453 = vpack.c.b16 %v1649, %v1645
    %v2454 = vpack.c.b16 %v1650, %v1646
    %v2455 = vpack.c.b16 %v1651, %v1647
    %v2456 = vpack.c.b16 %v1656, %v1652
    %v2457 = vpack.c.b16 %v1657, %v1653
    %v2458 = vpack.c.b16 %v1658, %v1654
    %v2459 = vpack.c.b16 %v1659, %v1655
    %v2460 = vpack.c.b16 %v1664, %v1660
    %v2461 = vpack.c.b16 %v1665, %v1661
    %v2462 = vpack.c.b16 %v1666, %v1662
    %v2463 = vpack.c.b16 %v1667, %v1663
    %v2464 = vpack.c.b16 %v1672, %v1668
    %v2465 = vpack.c.b16 %v1673, %v1669
    %v2466 = vpack.c.b16 %v1674, %v1670
    %v2467 = vpack.c.b16 %v1675, %v1671
    %v2468 = vpack.c.b16 %v1680, %v1676
    %v2469 = vpack.c.b16 %v1681, %v1677
    %v2470 = vpack.c.b16 %v1682, %v1678
    %v2471 = vpack.c.b16 %v1683, %v1679
    %v2472 = vpack.c.b16 %v1688, %v1684
    %v2473 = vpack.c.b16 %v1689, %v1685
    %v2474 = vpack.c.b16 %v1690, %v1686
    %v2475 = vpack.c.b16 %v1691, %v1687
    %v2476 = vpack.c.b16 %v1696, %v1692
    %v2477 = vpack.c.b16 %v1697, %v1693
    %v2478 = vpack.c.b16 %v1698, %v1694
    %v2479 = vpack.c.b16 %v1699, %v1695
    %v2480 = vpack.c.b16 %v1704, %v1700
    %v2481 = vpack.c.b16 %v1705, %v1701
    %v2482 = vpack.c.b16 %v1706, %v1702
    %v2483 = vpack.c.b16 %v1707, %v1703
    %v2484 = vpack.c.b16 %v1712, %v1708
    %v2485 = vpack.c.b16 %v1713, %v1709
    %v2486 = vpack.c.b16 %v1714, %v1710
    %v2487 = vpack.c.b16 %v1715, %v1711
    %v2488 = vpack.c.b16 %v1720, %v1716
    %v2489 = vpack.c.b16 %v1721, %v1717
    %v2490 = vpack.c.b16 %v1722, %v1718
    %v2491 = vpack.c.b16 %v1723, %v1719
    %v2492 = vpack.c.b16 %v1728, %v1724
    %v2493 = vpack.c.b16 %v1729, %v1725
    %v2494 = vpack.c.b16 %v1730, %v1726
    %v2495 = vpack.c.b16 %v1731, %v1727
    %v2496 = vpack.c.b16 %v1736, %v1732
    %v2497 = vpack.c.b16 %v1737, %v1733
    %v2498 = vpack.c.b16 %v1738, %v1734
    %v2499 = vpack.c.b16 %v1739, %v1735
    %v2500 = vpack.c.b16 %v1744, %v1740
    %v2501 = vpack.c.b16 %v1745, %v1741
    %v2502 = vpack.c.b16 %v1746, %v1742
    %v2503 = vpack.c.b16 %v1747, %v1743
    %v2504 = vpack.c.b16 %v1752, %v1748
    %v2505 = vpack.c.b16 %v1753, %v1749
    %v2506 = vpack.c.b16 %v1754, %v1750
    %v2507 = vpack.c.b16 %v1755, %v1751
    %v2508 = vpack.c.b16 %v1760, %v1756
    %v2509 = vpack.c.b16 %v1761, %v1757
    %v2510 = vpack.c.b16 %v1762, %v1758
    %v2511 = vpack.c.b16 %v1763, %v1759
    %v2512 = vpack.c.b16 %v1768, %v1764
    %v2513 = vpack.c.b16 %v1769, %v1765
    %v2514 = vpack.c.b16 %v1770, %v1766
    %v2515 = vpack.c.b16 %v1771, %v1767
    %v2516 = vpack.c.b16 %v1776, %v1772
    %v2517 = vpack.c.b16 %v1777, %v1773
    %v2518 = vpack.c.b16 %v1778, %v1774
    %v2519 = vpack.c.b16 %v1779, %v1775
    %v2520 = vpack.c.b16 %v1784, %v1780
    %v2521 = vpack.c.b16 %v1785, %v1781
    %v2522 = vpack.c.b16 %v1786, %v1782
    %v2523 = vpack.c.b16 %v1787, %v1783
    %v2524 = vpack.c.b16 %v1792, %v1788
    %v2525 = vpack.c.b16 %v1793, %v1789
    %v2526 = vpack.c.b16 %v1794, %v1790
    %v2527 = vpack.c.b16 %v1795, %v1791
    %v2528 = vpack.c.b16 %v1800, %v1796
    %v2529 = vpack.c.b16 %v1801, %v1797
    %v2530 = vpack.c.b16 %v1802, %v1798
    %v2531 = vpack.c.b16 %v1803, %v1799
    %v2532 = vpack.c.b16 %v1808, %v1804
    %v2533 = vpack.c.b16 %v1809, %v1805
    %v2534 = vpack.c.b16 %v1810, %v1806
    %v2535 = vpack.c.b16 %v1811, %v1807
    %v2536 = vpack.c.b16 %v1816, %v1812
    %v2537 = vpack.c.b16 %v1817, %v1813
    %v2538 = vpack.c.b16 %v1818, %v1814
    %v2539 = vpack.c.b16 %v1819, %v1815
    %v2540 = vpack.c.b16 %v1824, %v1820
    %v2541 = vpack.c.b16 %v1825, %v1821
    %v2542 = vpack.c.b16 %v1826, %v1822
    %v2543 = vpack.c.b16 %v1827, %v1823
    %v2544 = vpack.c.b16 %v1832, %v1828
    %v2545 = vpack.c.b16 %v1833, %v1829
    %v2546 = vpack.c.b16 %v1834, %v1830
    %v2547 = vpack.c.b16 %v1835, %v1831
    %v2548 = vpack.c.b16 %v1840, %v1836
    %v2549 = vpack.c.b16 %v1841, %v1837
    %v2550 = vpack.c.b16 %v1842, %v1838
    %v2551 = vpack.c.b16 %v1843, %v1839
    %v2552 = vpack.c.b16 %v1848, %v1844
    %v2553 = vpack.c.b16 %v1849, %v1845
    %v2554 = vpack.c.b16 %v1850, %v1846
    %v2555 = vpack.c.b16 %v1851, %v1847
    %v2556 = vpack.c.b16 %v1856, %v1852
    %v2557 = vpack.c.b16 %v1857, %v1853
    %v2558 = vpack.c.b16 %v1858, %v1854
    %v2559 = vpack.c.b16 %v1859, %v1855
    %v2560 = vpack.c.b16 %v1864, %v1860
    %v2561 = vpack.c.b16 %v1865, %v1861
    %v2562 = vpack.c.b16 %v1866, %v1862
    %v2563 = vpack.c.b16 %v1867, %v1863
    %v2564 = vpack.c.b16 %v1872, %v1868
    %v2565 = vpack.c.b16 %v1873, %v1869
    %v2566 = vpack.c.b16 %v1874, %v1870
    %v2567 = vpack.c.b16 %v1875, %v1871
    %v2568 = vpack.c.b16 %v1880, %v1876
    %v2569 = vpack.c.b16 %v1881, %v1877
    %v2570 = vpack.c.b16 %v1882, %v1878
    %v2571 = vpack.c.b16 %v1883, %v1879
    %v2572 = vpack.c.b16 %v1888, %v1884
    %v2573 = vpack.c.b16 %v1889, %v1885
    %v2574 = vpack.c.b16 %v1890, %v1886
    %v2575 = vpack.c.b16 %v1891, %v1887
    %v2576 = vpack.c.b16 %v1896, %v1892
    %v2577 = vpack.c.b16 %v1897, %v1893
    %v2578 = vpack.c.b16 %v1898, %v1894
    %v2579 = vpack.c.b16 %v1899, %v1895
    %v2580 = vpack.c.b16 %v1904, %v1900
    %v2581 = vpack.c.b16 %v1905, %v1901
    %v2582 = vpack.c.b16 %v1906, %v1902
    %v2583 = vpack.c.b16 %v1907, %v1903
    %v2584 = vpack.c.b16 %v1912, %v1908
    %v2585 = vpack.c.b16 %v1913, %v1909
    %v2586 = vpack.c.b16 %v1914, %v1910
    %v2587 = vpack.c.b16 %v1915, %v1911
    %v2588 = vpack.c.b16 %v1920, %v1916
    %v2589 = vpack.c.b16 %v1921, %v1917
    %v2590 = vpack.c.b16 %v1922, %v1918
    %v2591 = vpack.c.b16 %v1923, %v1919
    %v2592 = vpack.c.b16 %v1928, %v1924
    %v2593 = vpack.c.b16 %v1929, %v1925
    %v2594 = vpack.c.b16 %v1930, %v1926
    %v2595 = vpack.c.b16 %v1931, %v1927
    %v2596 = vpack.c.b16 %v1936, %v1932
    %v2597 = vpack.c.b16 %v1937, %v1933
    %v2598 = vpack.c.b16 %v1938, %v1934
    %v2599 = vpack.c.b16 %v1939, %v1935
    %v2600 = vpack.c.b16 %v1944, %v1940
    %v2601 = vpack.c.b16 %v1945, %v1941
    %v2602 = vpack.c.b16 %v1946, %v1942
    %v2603 = vpack.c.b16 %v1947, %v1943
    %v2604 = vpack.c.b16 %v1952, %v1948
    %v2605 = vpack.c.b16 %v1953, %v1949
    %v2606 = vpack.c.b16 %v1954, %v1950
    %v2607 = vpack.c.b16 %v1955, %v1951
    %v2608 = vpack.c.b16 %v1960, %v1956
    %v2609 = vpack.c.b16 %v1961, %v1957
    %v2610 = vpack.c.b16 %v1962, %v1958
    %v2611 = vpack.c.b16 %v1963, %v1959
    %v2612 = vpack.c.b16 %v1968, %v1964
    %v2613 = vpack.c.b16 %v1969, %v1965
    %v2614 = vpack.c.b16 %v1970, %v1966
    %v2615 = vpack.c.b16 %v1971, %v1967
    %v2616 = vpack.c.b16 %v1976, %v1972
    %v2617 = vpack.c.b16 %v1977, %v1973
    %v2618 = vpack.c.b16 %v1978, %v1974
    %v2619 = vpack.c.b16 %v1979, %v1975
    %v2620 = vpack.c.b16 %v1984, %v1980
    %v2621 = vpack.c.b16 %v1985, %v1981
    %v2622 = vpack.c.b16 %v1986, %v1982
    %v2623 = vpack.c.b16 %v1987, %v1983
    %v2624 = vpack.c.b16 %v1992, %v1988
    %v2625 = vpack.c.b16 %v1993, %v1989
    %v2626 = vpack.c.b16 %v1994, %v1990
    %v2627 = vpack.c.b16 %v1995, %v1991
    %v2628 = vpack.c.b16 %v2000, %v1996
    %v2629 = vpack.c.b16 %v2001, %v1997
    %v2630 = vpack.c.b16 %v2002, %v1998
    %v2631 = vpack.c.b16 %v2003, %v1999
    %v2632 = vpack.c.b16 %v2008, %v2004
    %v2633 = vpack.c.b16 %v2009, %v2005
    %v2634 = vpack.c.b16 %v2010, %v2006
    %v2635 = vpack.c.b16 %v2011, %v2007
    %v2636 = vpack.c.b16 %v2016, %v2012
    %v2637 = vpack.c.b16 %v2017, %v2013
    %v2638 = vpack.c.b16 %v2018, %v2014
    %v2639 = vpack.c.b16 %v2019, %v2015
    %v2640 = vpack.c.b16 %v2024, %v2020
    %v2641 = vpack.c.b16 %v2025, %v2021
    %v2642 = vpack.c.b16 %v2026, %v2022
    %v2643 = vpack.c.b16 %v2027, %v2023
    %v2644 = vpack.c.b16 %v2032, %v2028
    %v2645 = vpack.c.b16 %v2033, %v2029
    %v2646 = vpack.c.b16 %v2034, %v2030
    %v2647 = vpack.c.b16 %v2035, %v2031
    %v2648 = vpack.c.b16 %v2040, %v2036
    %v2649 = vpack.c.b16 %v2041, %v2037
    %v2650 = vpack.c.b16 %v2042, %v2038
    %v2651 = vpack.c.b16 %v2043, %v2039
    %v2652 = vpack.c.b16 %v2048, %v2044
    %v2653 = vpack.c.b16 %v2049, %v2045
    %v2654 = vpack.c.b16 %v2050, %v2046
    %v2655 = vpack.c.b16 %v2051, %v2047
    %v2656 = vpack.c.b16 %v2056, %v2052
    %v2657 = vpack.c.b16 %v2057, %v2053
    %v2658 = vpack.c.b16 %v2058, %v2054
    %v2659 = vpack.c.b16 %v2059, %v2055
    %v2660 = vpack.c.b16 %v2064, %v2060
    %v2661 = vpack.c.b16 %v2065, %v2061
    %v2662 = vpack.c.b16 %v2066, %v2062
    %v2663 = vpack.c.b16 %v2067, %v2063
    %v2664 = vpack.c.b16 %v2072, %v2068
    %v2665 = vpack.c.b16 %v2073, %v2069
    %v2666 = vpack.c.b16 %v2074, %v2070
    %v2667 = vpack.c.b16 %v2075, %v2071
    %v2668 = vpack.c.b16 %v2080, %v2076
    %v2669 = vpack.c.b16 %v2081, %v2077
    %v2670 = vpack.c.b16 %v2082, %v2078
    %v2671 = vpack.c.b16 %v2083, %v2079
    %v2672 = vpack.c.b16 %v2088, %v2084
    %v2673 = vpack.c.b16 %v2089, %v2085
    %v2674 = vpack.c.b16 %v2090, %v2086
    %v2675 = vpack.c.b16 %v2091, %v2087
    %v2676 = vpack.c.b16 %v2096, %v2092
    %v2677 = vpack.c.b16 %v2097, %v2093
    %v2678 = vpack.c.b16 %v2098, %v2094
    %v2679 = vpack.c.b16 %v2099, %v2095
    %v2680 = vpack.c.b16 %v2104, %v2100
    %v2681 = vpack.c.b16 %v2105, %v2101
    %v2682 = vpack.c.b16 %v2106, %v2102
    %v2683 = vpack.c.b16 %v2107, %v2103
    %v2684 = vpack.c.b16 %v2112, %v2108
    %v2685 = vpack.c.b16 %v2113, %v2109
    %v2686 = vpack.c.b16 %v2114, %v2110
    %v2687 = vpack.c.b16 %v2115, %v2111
    %v2688 = vpack.c.b16 %v2120, %v2116
    %v2689 = vpack.c.b16 %v2121, %v2117
    %v2690 = vpack.c.b16 %v2122, %v2118
    %v2691 = vpack.c.b16 %v2123, %v2119
    %v2692 = vpack.c.b16 %v2128, %v2124
    %v2693 = vpack.c.b16 %v2129, %v2125
    %v2694 = vpack.c.b16 %v2130, %v2126
    %v2695 = vpack.c.b16 %v2131, %v2127
    %v2696 = vpack.c.b16 %v2136, %v2132
    %v2697 = vpack.c.b16 %v2137, %v2133
    %v2698 = vpack.c.b16 %v2138, %v2134
    %v2699 = vpack.c.b16 %v2139, %v2135
    %v2700 = vpack.c.b16 %v2144, %v2140
    %v2701 = vpack.c.b16 %v2145, %v2141
    %v2702 = vpack.c.b16 %v2146, %v2142
    %v2703 = vpack.c.b16 %v2147, %v2143
    %v2704 = vpack.c.b16 %v2152, %v2148
    %v2705 = vpack.c.b16 %v2153, %v2149
    %v2706 = vpack.c.b16 %v2154, %v2150
    %v2707 = vpack.c.b16 %v2155, %v2151
    %v2708 = vpack.c.b16 %v2160, %v2156
    %v2709 = vpack.c.b16 %v2161, %v2157
    %v2710 = vpack.c.b16 %v2162, %v2158
    %v2711 = vpack.c.b16 %v2163, %v2159
    %v2712 = vpack.c.b16 %v2168, %v2164
    %v2713 = vpack.c.b16 %v2169, %v2165
    %v2714 = vpack.c.b16 %v2170, %v2166
    %v2715 = vpack.c.b16 %v2171, %v2167
    %v2716 = vpack.c.b16 %v2176, %v2172
    %v2717 = vpack.c.b16 %v2177, %v2173
    %v2718 = vpack.c.b16 %v2178, %v2174
    %v2719 = vpack.c.b16 %v2179, %v2175
    %v2720 = vpack.c.b16 %v2184, %v2180
    %v2721 = vpack.c.b16 %v2185, %v2181
    %v2722 = vpack.c.b16 %v2186, %v2182
    %v2723 = vpack.c.b16 %v2187, %v2183
    %v2724 = vpack.c.b16 %v2192, %v2188
    %v2725 = vpack.c.b16 %v2193, %v2189
    %v2726 = vpack.c.b16 %v2194, %v2190
    %v2727 = vpack.c.b16 %v2195, %v2191
    %v2728 = vpack.c.b16 %v2200, %v2196
    %v2729 = vpack.c.b16 %v2201, %v2197
    %v2730 = vpack.c.b16 %v2202, %v2198
    %v2731 = vpack.c.b16 %v2203, %v2199
    %v2732 = vpack.c.b16 %v2208, %v2204
    %v2733 = vpack.c.b16 %v2209, %v2205
    %v2734 = vpack.c.b16 %v2210, %v2206
    %v2735 = vpack.c.b16 %v2211, %v2207
    %v2736 = vpack.c.b16 %v2216, %v2212
    %v2737 = vpack.c.b16 %v2217, %v2213
    %v2738 = vpack.c.b16 %v2218, %v2214
    %v2739 = vpack.c.b16 %v2219, %v2215
    %v2740 = vpack.c.b16 %v2224, %v2220
    %v2741 = vpack.c.b16 %v2225, %v2221
    %v2742 = vpack.c.b16 %v2226, %v2222
    %v2743 = vpack.c.b16 %v2227, %v2223
    %v2744 = vpack.c.b16 %v2232, %v2228
    %v2745 = vpack.c.b16 %v2233, %v2229
    %v2746 = vpack.c.b16 %v2234, %v2230
    %v2747 = vpack.c.b16 %v2235, %v2231
    %3260 = vmatprep.subr.bf16.mxu0 %v2265
    %3261 = vmatpush1.bf16.msra.mxu0 %v2264
    %3262 = vmatprep.subr.bf16.mxu0 %v2261
    %3263 = vmatpush1.bf16.msra.mxu0 %v2260
    %3264 = vmatprep.subr.bf16.mxu0 %v2257
    %3265 = vmatpush1.bf16.msra.mxu0 %v2256
    %3266 = vmatprep.subr.bf16.mxu0 %v2253
    %3267 = vmatpush1.bf16.msra.mxu0 %v2252
    %3268 = vmatprep.subr.bf16.mxu0 %v2249
    %3269 = vmatpush1.bf16.msra.mxu0 %v2248
    %3270 = vmatprep.subr.bf16.mxu0 %v2245
    %3271 = vmatpush1.bf16.msra.mxu0 %v2244
    %3272 = vmatprep.subr.bf16.mxu0 %v2241
    %3273 = vmatpush1.bf16.msra.mxu0 %v2240
    %3274 = vmatprep.subr.bf16.mxu0 %v2237
    %3275 = vmatpush1.bf16.msra.mxu0 %v2236
    %3276 = vmatprep.subr.bf16.mxu0 %v2297
    %3277 = vmatpush2.bf16.msra.mxu0 %v2296
    %3278 = vmatprep.subr.bf16.mxu0 %v2293
    %3279 = vmatpush2.bf16.msra.mxu0 %v2292
    %3280 = vmatprep.subr.bf16.mxu0 %v2289
    %3281 = vmatpush2.bf16.msra.mxu0 %v2288
    %3282 = vmatprep.subr.bf16.mxu0 %v2285
    %3283 = vmatpush2.bf16.msra.mxu0 %v2284
    %3284 = vmatprep.subr.bf16.mxu0 %v2281
    %3285 = vmatpush2.bf16.msra.mxu0 %v2280
    %3286 = vmatprep.subr.bf16.mxu0 %v2277
    %3287 = vmatpush2.bf16.msra.mxu0 %v2276
    %3288 = vmatprep.subr.bf16.mxu0 %v2273
    %3289 = vmatpush2.bf16.msra.mxu0 %v2272
    %3290 = vmatprep.subr.bf16.mxu0 %v2269
    %3291 = vmatpush2.bf16.msra.mxu0 %v2268
    %3292 = vmatprep.mubr.bf16.mxu0 %v669
    %3293 = vmatmul.mubr.bf16.gmra.mxu0 %v668
    %v3294 = vpop.f32.mrf.mxu0
    %v3295 = vadd.f32 0.0, %v3294
    %v3296 = vpop.f32.mrf.mxu0
    %v3297 = vadd.f32 0.0, %v3296
    %v3298 = vpop.f32.mrf.mxu0
    %v3299 = vadd.f32 0.0, %v3298
    %v3300 = vpop.f32.mrf.mxu0
    %v3301 = vadd.f32 0.0, %v3300
    %3302 = vdwg.mxu0
    %3303 = vmatprep.subr.bf16.mxu0 %v2329
    %3304 = vmatpush1.bf16.msra.mxu0 %v2328
    %3305 = vmatprep.subr.bf16.mxu0 %v2325
    %3306 = vmatpush1.bf16.msra.mxu0 %v2324
    %3307 = vmatprep.subr.bf16.mxu0 %v2321
    %3308 = vmatpush1.bf16.msra.mxu0 %v2320
    %3309 = vmatprep.subr.bf16.mxu0 %v2317
    %3310 = vmatpush1.bf16.msra.mxu0 %v2316
    %3311 = vmatprep.subr.bf16.mxu0 %v2313
    %3312 = vmatpush1.bf16.msra.mxu0 %v2312
    %3313 = vmatprep.subr.bf16.mxu0 %v2309
    %3314 = vmatpush1.bf16.msra.mxu0 %v2308
    %3315 = vmatprep.subr.bf16.mxu0 %v2305
    %3316 = vmatpush1.bf16.msra.mxu0 %v2304
    %3317 = vmatprep.subr.bf16.mxu0 %v2301
    %3318 = vmatpush1.bf16.msra.mxu0 %v2300
    %3319 = vmatprep.subr.bf16.mxu0 %v2361
    %3320 = vmatpush2.bf16.msra.mxu0 %v2360
    %3321 = vmatprep.subr.bf16.mxu0 %v2357
    %3322 = vmatpush2.bf16.msra.mxu0 %v2356
    %3323 = vmatprep.subr.bf16.mxu0 %v2353
    %3324 = vmatpush2.bf16.msra.mxu0 %v2352
    %3325 = vmatprep.subr.bf16.mxu0 %v2349
    %3326 = vmatpush2.bf16.msra.mxu0 %v2348
    %3327 = vmatprep.subr.bf16.mxu0 %v2345
    %3328 = vmatpush2.bf16.msra.mxu0 %v2344
    %3329 = vmatprep.subr.bf16.mxu0 %v2341
    %3330 = vmatpush2.bf16.msra.mxu0 %v2340
    %3331 = vmatprep.subr.bf16.mxu0 %v2337
    %3332 = vmatpush2.bf16.msra.mxu0 %v2336
    %3333 = vmatprep.subr.bf16.mxu0 %v2333
    %3334 = vmatpush2.bf16.msra.mxu0 %v2332
    %3335 = vmatprep.mubr.bf16.mxu0 %v671
    %3336 = vmatmul.mubr.bf16.gmra.mxu0 %v670
    %v3337 = vpop.f32.mrf.mxu0
    %v3338 = vadd.f32 %v3295, %v3337
    %v3339 = vpop.f32.mrf.mxu0
    %v3340 = vadd.f32 %v3297, %v3339
    %v3341 = vpop.f32.mrf.mxu0
    %v3342 = vadd.f32 %v3299, %v3341
    %v3343 = vpop.f32.mrf.mxu0
    %v3344 = vadd.f32 %v3301, %v3343
    %3345 = vdwg.mxu0
    %3346 = vmatprep.subr.bf16.mxu0 %v2393
    %3347 = vmatpush1.bf16.msra.mxu0 %v2392
    %3348 = vmatprep.subr.bf16.mxu0 %v2389
    %3349 = vmatpush1.bf16.msra.mxu0 %v2388
    %3350 = vmatprep.subr.bf16.mxu0 %v2385
    %3351 = vmatpush1.bf16.msra.mxu0 %v2384
    %3352 = vmatprep.subr.bf16.mxu0 %v2381
    %3353 = vmatpush1.bf16.msra.mxu0 %v2380
    %3354 = vmatprep.subr.bf16.mxu0 %v2377
    %3355 = vmatpush1.bf16.msra.mxu0 %v2376
    %3356 = vmatprep.subr.bf16.mxu0 %v2373
    %3357 = vmatpush1.bf16.msra.mxu0 %v2372
    %3358 = vmatprep.subr.bf16.mxu0 %v2369
    %3359 = vmatpush1.bf16.msra.mxu0 %v2368
    %3360 = vmatprep.subr.bf16.mxu0 %v2365
    %3361 = vmatpush1.bf16.msra.mxu0 %v2364
    %3362 = vmatprep.subr.bf16.mxu0 %v2425
    %3363 = vmatpush2.bf16.msra.mxu0 %v2424
    %3364 = vmatprep.subr.bf16.mxu0 %v2421
    %3365 = vmatpush2.bf16.msra.mxu0 %v2420
    %3366 = vmatprep.subr.bf16.mxu0 %v2417
    %3367 = vmatpush2.bf16.msra.mxu0 %v2416
    %3368 = vmatprep.subr.bf16.mxu0 %v2413
    %3369 = vmatpush2.bf16.msra.mxu0 %v2412
    %3370 = vmatprep.subr.bf16.mxu0 %v2409
    %3371 = vmatpush2.bf16.msra.mxu0 %v2408
    %3372 = vmatprep.subr.bf16.mxu0 %v2405
    %3373 = vmatpush2.bf16.msra.mxu0 %v2404
    %3374 = vmatprep.subr.bf16.mxu0 %v2401
    %3375 = vmatpush2.bf16.msra.mxu0 %v2400
    %3376 = vmatprep.subr.bf16.mxu0 %v2397
    %3377 = vmatpush2.bf16.msra.mxu0 %v2396
    %3378 = vmatprep.mubr.bf16.mxu0 %v673
    %3379 = vmatmul.mubr.bf16.gmra.mxu0 %v672
    %v3380 = vpop.f32.mrf.mxu0
    %v3381 = vadd.f32 %v3338, %v3380
    %v3382 = vpop.f32.mrf.mxu0
    %v3383 = vadd.f32 %v3340, %v3382
    %v3384 = vpop.f32.mrf.mxu0
    %v3385 = vadd.f32 %v3342, %v3384
    %v3386 = vpop.f32.mrf.mxu0
    %v3387 = vadd.f32 %v3344, %v3386
    %3388 = vdwg.mxu0
    %3389 = vmatprep.subr.bf16.mxu0 %v2457
    %3390 = vmatpush1.bf16.msra.mxu0 %v2456
    %3391 = vmatprep.subr.bf16.mxu0 %v2453
    %3392 = vmatpush1.bf16.msra.mxu0 %v2452
    %3393 = vmatprep.subr.bf16.mxu0 %v2449
    %3394 = vmatpush1.bf16.msra.mxu0 %v2448
    %3395 = vmatprep.subr.bf16.mxu0 %v2445
    %3396 = vmatpush1.bf16.msra.mxu0 %v2444
    %3397 = vmatprep.subr.bf16.mxu0 %v2441
    %3398 = vmatpush1.bf16.msra.mxu0 %v2440
    %3399 = vmatprep.subr.bf16.mxu0 %v2437
    %3400 = vmatpush1.bf16.msra.mxu0 %v2436
    %3401 = vmatprep.subr.bf16.mxu0 %v2433
    %3402 = vmatpush1.bf16.msra.mxu0 %v2432
    %3403 = vmatprep.subr.bf16.mxu0 %v2429
    %3404 = vmatpush1.bf16.msra.mxu0 %v2428
    %3405 = vmatprep.subr.bf16.mxu0 %v2489
    %3406 = vmatpush2.bf16.msra.mxu0 %v2488
    %3407 = vmatprep.subr.bf16.mxu0 %v2485
    %3408 = vmatpush2.bf16.msra.mxu0 %v2484
    %3409 = vmatprep.subr.bf16.mxu0 %v2481
    %3410 = vmatpush2.bf16.msra.mxu0 %v2480
    %3411 = vmatprep.subr.bf16.mxu0 %v2477
    %3412 = vmatpush2.bf16.msra.mxu0 %v2476
    %3413 = vmatprep.subr.bf16.mxu0 %v2473
    %3414 = vmatpush2.bf16.msra.mxu0 %v2472
    %3415 = vmatprep.subr.bf16.mxu0 %v2469
    %3416 = vmatpush2.bf16.msra.mxu0 %v2468
    %3417 = vmatprep.subr.bf16.mxu0 %v2465
    %3418 = vmatpush2.bf16.msra.mxu0 %v2464
    %3419 = vmatprep.subr.bf16.mxu0 %v2461
    %3420 = vmatpush2.bf16.msra.mxu0 %v2460
    %3421 = vmatprep.mubr.bf16.mxu0 %v675
    %3422 = vmatmul.mubr.bf16.gmra.mxu0 %v674
    %v3423 = vpop.f32.mrf.mxu0
    %v3424 = vadd.f32 %v3381, %v3423
    %v3425 = vpop.f32.mrf.mxu0
    %v3426 = vadd.f32 %v3383, %v3425
    %v3427 = vpop.f32.mrf.mxu0
    %v3428 = vadd.f32 %v3385, %v3427
    %v3429 = vpop.f32.mrf.mxu0
    %v3430 = vadd.f32 %v3387, %v3429
    %3431 = vdwg.mxu0
    %3432 = vmatprep.subr.bf16.mxu0 %v2521
    %3433 = vmatpush1.bf16.msra.mxu0 %v2520
    %3434 = vmatprep.subr.bf16.mxu0 %v2517
    %3435 = vmatpush1.bf16.msra.mxu0 %v2516
    %3436 = vmatprep.subr.bf16.mxu0 %v2513
    %3437 = vmatpush1.bf16.msra.mxu0 %v2512
    %3438 = vmatprep.subr.bf16.mxu0 %v2509
    %3439 = vmatpush1.bf16.msra.mxu0 %v2508
    %3440 = vmatprep.subr.bf16.mxu0 %v2505
    %3441 = vmatpush1.bf16.msra.mxu0 %v2504
    %3442 = vmatprep.subr.bf16.mxu0 %v2501
    %3443 = vmatpush1.bf16.msra.mxu0 %v2500
    %3444 = vmatprep.subr.bf16.mxu0 %v2497
    %3445 = vmatpush1.bf16.msra.mxu0 %v2496
    %3446 = vmatprep.subr.bf16.mxu0 %v2493
    %3447 = vmatpush1.bf16.msra.mxu0 %v2492
    %3448 = vmatprep.subr.bf16.mxu0 %v2553
    %3449 = vmatpush2.bf16.msra.mxu0 %v2552
    %3450 = vmatprep.subr.bf16.mxu0 %v2549
    %3451 = vmatpush2.bf16.msra.mxu0 %v2548
    %3452 = vmatprep.subr.bf16.mxu0 %v2545
    %3453 = vmatpush2.bf16.msra.mxu0 %v2544
    %3454 = vmatprep.subr.bf16.mxu0 %v2541
    %3455 = vmatpush2.bf16.msra.mxu0 %v2540
    %3456 = vmatprep.subr.bf16.mxu0 %v2537
    %3457 = vmatpush2.bf16.msra.mxu0 %v2536
    %3458 = vmatprep.subr.bf16.mxu0 %v2533
    %3459 = vmatpush2.bf16.msra.mxu0 %v2532
    %3460 = vmatprep.subr.bf16.mxu0 %v2529
    %3461 = vmatpush2.bf16.msra.mxu0 %v2528
    %3462 = vmatprep.subr.bf16.mxu0 %v2525
    %3463 = vmatpush2.bf16.msra.mxu0 %v2524
    %3464 = vmatprep.mubr.bf16.mxu0 %v677
    %3465 = vmatmul.mubr.bf16.gmra.mxu0 %v676
    %v3466 = vpop.f32.mrf.mxu0
    %v3467 = vadd.f32 %v3424, %v3466
    %v3468 = vpop.f32.mrf.mxu0
    %v3469 = vadd.f32 %v3426, %v3468
    %v3470 = vpop.f32.mrf.mxu0
    %v3471 = vadd.f32 %v3428, %v3470
    %v3472 = vpop.f32.mrf.mxu0
    %v3473 = vadd.f32 %v3430, %v3472
    %3474 = vdwg.mxu0
    %3475 = vmatprep.subr.bf16.mxu0 %v2585
    %3476 = vmatpush1.bf16.msra.mxu0 %v2584
    %3477 = vmatprep.subr.bf16.mxu0 %v2581
    %3478 = vmatpush1.bf16.msra.mxu0 %v2580
    %3479 = vmatprep.subr.bf16.mxu0 %v2577
    %3480 = vmatpush1.bf16.msra.mxu0 %v2576
    %3481 = vmatprep.subr.bf16.mxu0 %v2573
    %3482 = vmatpush1.bf16.msra.mxu0 %v2572
    %3483 = vmatprep.subr.bf16.mxu0 %v2569
    %3484 = vmatpush1.bf16.msra.mxu0 %v2568
    %3485 = vmatprep.subr.bf16.mxu0 %v2565
    %3486 = vmatpush1.bf16.msra.mxu0 %v2564
    %3487 = vmatprep.subr.bf16.mxu0 %v2561
    %3488 = vmatpush1.bf16.msra.mxu0 %v2560
    %3489 = vmatprep.subr.bf16.mxu0 %v2557
    %3490 = vmatpush1.bf16.msra.mxu0 %v2556
    %3491 = vmatprep.subr.bf16.mxu0 %v2617
    %3492 = vmatpush2.bf16.msra.mxu0 %v2616
    %3493 = vmatprep.subr.bf16.mxu0 %v2613
    %3494 = vmatpush2.bf16.msra.mxu0 %v2612
    %3495 = vmatprep.subr.bf16.mxu0 %v2609
    %3496 = vmatpush2.bf16.msra.mxu0 %v2608
    %3497 = vmatprep.subr.bf16.mxu0 %v2605
    %3498 = vmatpush2.bf16.msra.mxu0 %v2604
    %3499 = vmatprep.subr.bf16.mxu0 %v2601
    %3500 = vmatpush2.bf16.msra.mxu0 %v2600
    %3501 = vmatprep.subr.bf16.mxu0 %v2597
    %3502 = vmatpush2.bf16.msra.mxu0 %v2596
    %3503 = vmatprep.subr.bf16.mxu0 %v2593
    %3504 = vmatpush2.bf16.msra.mxu0 %v2592
    %3505 = vmatprep.subr.bf16.mxu0 %v2589
    %3506 = vmatpush2.bf16.msra.mxu0 %v2588
    %3507 = vmatprep.mubr.bf16.mxu0 %v679
    %3508 = vmatmul.mubr.bf16.gmra.mxu0 %v678
    %v3509 = vpop.f32.mrf.mxu0
    %v3510 = vadd.f32 %v3467, %v3509
    %v3511 = vpop.f32.mrf.mxu0
    %v3512 = vadd.f32 %v3469, %v3511
    %v3513 = vpop.f32.mrf.mxu0
    %v3514 = vadd.f32 %v3471, %v3513
    %v3515 = vpop.f32.mrf.mxu0
    %v3516 = vadd.f32 %v3473, %v3515
    %3517 = vdwg.mxu0
    %3518 = vmatprep.subr.bf16.mxu0 %v2649
    %3519 = vmatpush1.bf16.msra.mxu0 %v2648
    %3520 = vmatprep.subr.bf16.mxu0 %v2645
    %3521 = vmatpush1.bf16.msra.mxu0 %v2644
    %3522 = vmatprep.subr.bf16.mxu0 %v2641
    %3523 = vmatpush1.bf16.msra.mxu0 %v2640
    %3524 = vmatprep.subr.bf16.mxu0 %v2637
    %3525 = vmatpush1.bf16.msra.mxu0 %v2636
    %3526 = vmatprep.subr.bf16.mxu0 %v2633
    %3527 = vmatpush1.bf16.msra.mxu0 %v2632
    %3528 = vmatprep.subr.bf16.mxu0 %v2629
    %3529 = vmatpush1.bf16.msra.mxu0 %v2628
    %3530 = vmatprep.subr.bf16.mxu0 %v2625
    %3531 = vmatpush1.bf16.msra.mxu0 %v2624
    %3532 = vmatprep.subr.bf16.mxu0 %v2621
    %3533 = vmatpush1.bf16.msra.mxu0 %v2620
    %3534 = vmatprep.subr.bf16.mxu0 %v2681
    %3535 = vmatpush2.bf16.msra.mxu0 %v2680
    %3536 = vmatprep.subr.bf16.mxu0 %v2677
    %3537 = vmatpush2.bf16.msra.mxu0 %v2676
    %3538 = vmatprep.subr.bf16.mxu0 %v2673
    %3539 = vmatpush2.bf16.msra.mxu0 %v2672
    %3540 = vmatprep.subr.bf16.mxu0 %v2669
    %3541 = vmatpush2.bf16.msra.mxu0 %v2668
    %3542 = vmatprep.subr.bf16.mxu0 %v2665
    %3543 = vmatpush2.bf16.msra.mxu0 %v2664
    %3544 = vmatprep.subr.bf16.mxu0 %v2661
    %3545 = vmatpush2.bf16.msra.mxu0 %v2660
    %3546 = vmatprep.subr.bf16.mxu0 %v2657
    %3547 = vmatpush2.bf16.msra.mxu0 %v2656
    %3548 = vmatprep.subr.bf16.mxu0 %v2653
    %3549 = vmatpush2.bf16.msra.mxu0 %v2652
    %3550 = vmatprep.mubr.bf16.mxu0 %v681
    %3551 = vmatmul.mubr.bf16.gmra.mxu0 %v680
    %v3552 = vpop.f32.mrf.mxu0
    %v3553 = vadd.f32 %v3510, %v3552
    %v3554 = vpop.f32.mrf.mxu0
    %v3555 = vadd.f32 %v3512, %v3554
    %v3556 = vpop.f32.mrf.mxu0
    %v3557 = vadd.f32 %v3514, %v3556
    %v3558 = vpop.f32.mrf.mxu0
    %v3559 = vadd.f32 %v3516, %v3558
    %3560 = vdwg.mxu0
    %3561 = vmatprep.subr.bf16.mxu0 %v2713
    %3562 = vmatpush1.bf16.msra.mxu0 %v2712
    %3563 = vmatprep.subr.bf16.mxu0 %v2709
    %3564 = vmatpush1.bf16.msra.mxu0 %v2708
    %3565 = vmatprep.subr.bf16.mxu0 %v2705
    %3566 = vmatpush1.bf16.msra.mxu0 %v2704
    %3567 = vmatprep.subr.bf16.mxu0 %v2701
    %3568 = vmatpush1.bf16.msra.mxu0 %v2700
    %3569 = vmatprep.subr.bf16.mxu0 %v2697
    %3570 = vmatpush1.bf16.msra.mxu0 %v2696
    %3571 = vmatprep.subr.bf16.mxu0 %v2693
    %3572 = vmatpush1.bf16.msra.mxu0 %v2692
    %3573 = vmatprep.subr.bf16.mxu0 %v2689
    %3574 = vmatpush1.bf16.msra.mxu0 %v2688
    %3575 = vmatprep.subr.bf16.mxu0 %v2685
    %3576 = vmatpush1.bf16.msra.mxu0 %v2684
    %3577 = vmatprep.subr.bf16.mxu0 %v2745
    %3578 = vmatpush2.bf16.msra.mxu0 %v2744
    %3579 = vmatprep.subr.bf16.mxu0 %v2741
    %3580 = vmatpush2.bf16.msra.mxu0 %v2740
    %3581 = vmatprep.subr.bf16.mxu0 %v2737
    %3582 = vmatpush2.bf16.msra.mxu0 %v2736
    %3583 = vmatprep.subr.bf16.mxu0 %v2733
    %3584 = vmatpush2.bf16.msra.mxu0 %v2732
    %3585 = vmatprep.subr.bf16.mxu0 %v2729
    %3586 = vmatpush2.bf16.msra.mxu0 %v2728
    %3587 = vmatprep.subr.bf16.mxu0 %v2725
    %3588 = vmatpush2.bf16.msra.mxu0 %v2724
    %3589 = vmatprep.subr.bf16.mxu0 %v2721
    %3590 = vmatpush2.bf16.msra.mxu0 %v2720
    %3591 = vmatprep.subr.bf16.mxu0 %v2717
    %3592 = vmatpush2.bf16.msra.mxu0 %v2716
    %3593 = vmatprep.mubr.bf16.mxu0 %v683
    %3594 = vmatmul.mubr.bf16.gmra.mxu0 %v682
    %v3595 = vpop.f32.mrf.mxu0
    %v3596 = vadd.f32 %v3553, %v3595
    %v3597 = vpop.f32.mrf.mxu0
    %v3598 = vadd.f32 %v3555, %v3597
    %v3599 = vpop.f32.mrf.mxu0
    %v3600 = vadd.f32 %v3557, %v3599
    %v3601 = vpop.f32.mrf.mxu0
    %v3602 = vadd.f32 %v3559, %v3601
    %3603 = vdwg.mxu0
    %3604 = vmatprep.subr.bf16.mxu0 %v2267
    %3605 = vmatpush1.bf16.msra.mxu0 %v2266
    %3606 = vmatprep.subr.bf16.mxu0 %v2263
    %3607 = vmatpush1.bf16.msra.mxu0 %v2262
    %3608 = vmatprep.subr.bf16.mxu0 %v2259
    %3609 = vmatpush1.bf16.msra.mxu0 %v2258
    %3610 = vmatprep.subr.bf16.mxu0 %v2255
    %3611 = vmatpush1.bf16.msra.mxu0 %v2254
    %3612 = vmatprep.subr.bf16.mxu0 %v2251
    %3613 = vmatpush1.bf16.msra.mxu0 %v2250
    %3614 = vmatprep.subr.bf16.mxu0 %v2247
    %3615 = vmatpush1.bf16.msra.mxu0 %v2246
    %3616 = vmatprep.subr.bf16.mxu0 %v2243
    %3617 = vmatpush1.bf16.msra.mxu0 %v2242
    %3618 = vmatprep.subr.bf16.mxu0 %v2239
    %3619 = vmatpush1.bf16.msra.mxu0 %v2238
    %3620 = vmatprep.subr.bf16.mxu0 %v2299
    %3621 = vmatpush2.bf16.msra.mxu0 %v2298
    %3622 = vmatprep.subr.bf16.mxu0 %v2295
    %3623 = vmatpush2.bf16.msra.mxu0 %v2294
    %3624 = vmatprep.subr.bf16.mxu0 %v2291
    %3625 = vmatpush2.bf16.msra.mxu0 %v2290
    %3626 = vmatprep.subr.bf16.mxu0 %v2287
    %3627 = vmatpush2.bf16.msra.mxu0 %v2286
    %3628 = vmatprep.subr.bf16.mxu0 %v2283
    %3629 = vmatpush2.bf16.msra.mxu0 %v2282
    %3630 = vmatprep.subr.bf16.mxu0 %v2279
    %3631 = vmatpush2.bf16.msra.mxu0 %v2278
    %3632 = vmatprep.subr.bf16.mxu0 %v2275
    %3633 = vmatpush2.bf16.msra.mxu0 %v2274
    %3634 = vmatprep.subr.bf16.mxu0 %v2271
    %3635 = vmatpush2.bf16.msra.mxu0 %v2270
    %3636 = vmatprep.mubr.bf16.mxu0 %v669
    %3637 = vmatmul.mubr.bf16.gmra.mxu0 %v668
    %v3638 = vpop.f32.mrf.mxu0
    %v3639 = vadd.f32 0.0, %v3638
    %v3640 = vpop.f32.mrf.mxu0
    %v3641 = vadd.f32 0.0, %v3640
    %v3642 = vpop.f32.mrf.mxu0
    %v3643 = vadd.f32 0.0, %v3642
    %v3644 = vpop.f32.mrf.mxu0
    %v3645 = vadd.f32 0.0, %v3644
    %3646 = vdwg.mxu0
    %3647 = vmatprep.subr.bf16.mxu0 %v2331
    %3648 = vmatpush1.bf16.msra.mxu0 %v2330
    %3649 = vmatprep.subr.bf16.mxu0 %v2327
    %3650 = vmatpush1.bf16.msra.mxu0 %v2326
    %3651 = vmatprep.subr.bf16.mxu0 %v2323
    %3652 = vmatpush1.bf16.msra.mxu0 %v2322
    %3653 = vmatprep.subr.bf16.mxu0 %v2319
    %3654 = vmatpush1.bf16.msra.mxu0 %v2318
    %3655 = vmatprep.subr.bf16.mxu0 %v2315
    %3656 = vmatpush1.bf16.msra.mxu0 %v2314
    %3657 = vmatprep.subr.bf16.mxu0 %v2311
    %3658 = vmatpush1.bf16.msra.mxu0 %v2310
    %3659 = vmatprep.subr.bf16.mxu0 %v2307
    %3660 = vmatpush1.bf16.msra.mxu0 %v2306
    %3661 = vmatprep.subr.bf16.mxu0 %v2303
    %3662 = vmatpush1.bf16.msra.mxu0 %v2302
    %3663 = vmatprep.subr.bf16.mxu0 %v2363
    %3664 = vmatpush2.bf16.msra.mxu0 %v2362
    %3665 = vmatprep.subr.bf16.mxu0 %v2359
    %3666 = vmatpush2.bf16.msra.mxu0 %v2358
    %3667 = vmatprep.subr.bf16.mxu0 %v2355
    %3668 = vmatpush2.bf16.msra.mxu0 %v2354
    %3669 = vmatprep.subr.bf16.mxu0 %v2351
    %3670 = vmatpush2.bf16.msra.mxu0 %v2350
    %3671 = vmatprep.subr.bf16.mxu0 %v2347
    %3672 = vmatpush2.bf16.msra.mxu0 %v2346
    %3673 = vmatprep.subr.bf16.mxu0 %v2343
    %3674 = vmatpush2.bf16.msra.mxu0 %v2342
    %3675 = vmatprep.subr.bf16.mxu0 %v2339
    %3676 = vmatpush2.bf16.msra.mxu0 %v2338
    %3677 = vmatprep.subr.bf16.mxu0 %v2335
    %3678 = vmatpush2.bf16.msra.mxu0 %v2334
    %3679 = vmatprep.mubr.bf16.mxu0 %v671
    %3680 = vmatmul.mubr.bf16.gmra.mxu0 %v670
    %v3681 = vpop.f32.mrf.mxu0
    %v3682 = vadd.f32 %v3639, %v3681
    %v3683 = vpop.f32.mrf.mxu0
    %v3684 = vadd.f32 %v3641, %v3683
    %v3685 = vpop.f32.mrf.mxu0
    %v3686 = vadd.f32 %v3643, %v3685
    %v3687 = vpop.f32.mrf.mxu0
    %v3688 = vadd.f32 %v3645, %v3687
    %3689 = vdwg.mxu0
    %3690 = vmatprep.subr.bf16.mxu0 %v2395
    %3691 = vmatpush1.bf16.msra.mxu0 %v2394
    %3692 = vmatprep.subr.bf16.mxu0 %v2391
    %3693 = vmatpush1.bf16.msra.mxu0 %v2390
    %3694 = vmatprep.subr.bf16.mxu0 %v2387
    %3695 = vmatpush1.bf16.msra.mxu0 %v2386
    %3696 = vmatprep.subr.bf16.mxu0 %v2383
    %3697 = vmatpush1.bf16.msra.mxu0 %v2382
    %3698 = vmatprep.subr.bf16.mxu0 %v2379
    %3699 = vmatpush1.bf16.msra.mxu0 %v2378
    %3700 = vmatprep.subr.bf16.mxu0 %v2375
    %3701 = vmatpush1.bf16.msra.mxu0 %v2374
    %3702 = vmatprep.subr.bf16.mxu0 %v2371
    %3703 = vmatpush1.bf16.msra.mxu0 %v2370
    %3704 = vmatprep.subr.bf16.mxu0 %v2367
    %3705 = vmatpush1.bf16.msra.mxu0 %v2366
    %3706 = vmatprep.subr.bf16.mxu0 %v2427
    %3707 = vmatpush2.bf16.msra.mxu0 %v2426
    %3708 = vmatprep.subr.bf16.mxu0 %v2423
    %3709 = vmatpush2.bf16.msra.mxu0 %v2422
    %3710 = vmatprep.subr.bf16.mxu0 %v2419
    %3711 = vmatpush2.bf16.msra.mxu0 %v2418
    %3712 = vmatprep.subr.bf16.mxu0 %v2415
    %3713 = vmatpush2.bf16.msra.mxu0 %v2414
    %3714 = vmatprep.subr.bf16.mxu0 %v2411
    %3715 = vmatpush2.bf16.msra.mxu0 %v2410
    %3716 = vmatprep.subr.bf16.mxu0 %v2407
    %3717 = vmatpush2.bf16.msra.mxu0 %v2406
    %3718 = vmatprep.subr.bf16.mxu0 %v2403
    %3719 = vmatpush2.bf16.msra.mxu0 %v2402
    %3720 = vmatprep.subr.bf16.mxu0 %v2399
    %3721 = vmatpush2.bf16.msra.mxu0 %v2398
    %3722 = vmatprep.mubr.bf16.mxu0 %v673
    %3723 = vmatmul.mubr.bf16.gmra.mxu0 %v672
    %v3724 = vpop.f32.mrf.mxu0
    %v3725 = vadd.f32 %v3682, %v3724
    %v3726 = vpop.f32.mrf.mxu0
    %v3727 = vadd.f32 %v3684, %v3726
    %v3728 = vpop.f32.mrf.mxu0
    %v3729 = vadd.f32 %v3686, %v3728
    %v3730 = vpop.f32.mrf.mxu0
    %v3731 = vadd.f32 %v3688, %v3730
    %3732 = vdwg.mxu0
    %3733 = vmatprep.subr.bf16.mxu0 %v2459
    %3734 = vmatpush1.bf16.msra.mxu0 %v2458
    %3735 = vmatprep.subr.bf16.mxu0 %v2455
    %3736 = vmatpush1.bf16.msra.mxu0 %v2454
    %3737 = vmatprep.subr.bf16.mxu0 %v2451
    %3738 = vmatpush1.bf16.msra.mxu0 %v2450
    %3739 = vmatprep.subr.bf16.mxu0 %v2447
    %3740 = vmatpush1.bf16.msra.mxu0 %v2446
    %3741 = vmatprep.subr.bf16.mxu0 %v2443
    %3742 = vmatpush1.bf16.msra.mxu0 %v2442
    %3743 = vmatprep.subr.bf16.mxu0 %v2439
    %3744 = vmatpush1.bf16.msra.mxu0 %v2438
    %3745 = vmatprep.subr.bf16.mxu0 %v2435
    %3746 = vmatpush1.bf16.msra.mxu0 %v2434
    %3747 = vmatprep.subr.bf16.mxu0 %v2431
    %3748 = vmatpush1.bf16.msra.mxu0 %v2430
    %3749 = vmatprep.subr.bf16.mxu0 %v2491
    %3750 = vmatpush2.bf16.msra.mxu0 %v2490
    %3751 = vmatprep.subr.bf16.mxu0 %v2487
    %3752 = vmatpush2.bf16.msra.mxu0 %v2486
    %3753 = vmatprep.subr.bf16.mxu0 %v2483
    %3754 = vmatpush2.bf16.msra.mxu0 %v2482
    %3755 = vmatprep.subr.bf16.mxu0 %v2479
    %3756 = vmatpush2.bf16.msra.mxu0 %v2478
    %3757 = vmatprep.subr.bf16.mxu0 %v2475
    %3758 = vmatpush2.bf16.msra.mxu0 %v2474
    %3759 = vmatprep.subr.bf16.mxu0 %v2471
    %3760 = vmatpush2.bf16.msra.mxu0 %v2470
    %3761 = vmatprep.subr.bf16.mxu0 %v2467
    %3762 = vmatpush2.bf16.msra.mxu0 %v2466
    %3763 = vmatprep.subr.bf16.mxu0 %v2463
    %3764 = vmatpush2.bf16.msra.mxu0 %v2462
    %3765 = vmatprep.mubr.bf16.mxu0 %v675
    %3766 = vmatmul.mubr.bf16.gmra.mxu0 %v674
    %v3767 = vpop.f32.mrf.mxu0
    %v3768 = vadd.f32 %v3725, %v3767
    %v3769 = vpop.f32.mrf.mxu0
    %v3770 = vadd.f32 %v3727, %v3769
    %v3771 = vpop.f32.mrf.mxu0
    %v3772 = vadd.f32 %v3729, %v3771
    %v3773 = vpop.f32.mrf.mxu0
    %v3774 = vadd.f32 %v3731, %v3773
    %3775 = vdwg.mxu0
    %3776 = vmatprep.subr.bf16.mxu0 %v2523
    %3777 = vmatpush1.bf16.msra.mxu0 %v2522
    %3778 = vmatprep.subr.bf16.mxu0 %v2519
    %3779 = vmatpush1.bf16.msra.mxu0 %v2518
    %3780 = vmatprep.subr.bf16.mxu0 %v2515
    %3781 = vmatpush1.bf16.msra.mxu0 %v2514
    %3782 = vmatprep.subr.bf16.mxu0 %v2511
    %3783 = vmatpush1.bf16.msra.mxu0 %v2510
    %3784 = vmatprep.subr.bf16.mxu0 %v2507
    %3785 = vmatpush1.bf16.msra.mxu0 %v2506
    %3786 = vmatprep.subr.bf16.mxu0 %v2503
    %3787 = vmatpush1.bf16.msra.mxu0 %v2502
    %3788 = vmatprep.subr.bf16.mxu0 %v2499
    %3789 = vmatpush1.bf16.msra.mxu0 %v2498
    %3790 = vmatprep.subr.bf16.mxu0 %v2495
    %3791 = vmatpush1.bf16.msra.mxu0 %v2494
    %3792 = vmatprep.subr.bf16.mxu0 %v2555
    %3793 = vmatpush2.bf16.msra.mxu0 %v2554
    %3794 = vmatprep.subr.bf16.mxu0 %v2551
    %3795 = vmatpush2.bf16.msra.mxu0 %v2550
    %3796 = vmatprep.subr.bf16.mxu0 %v2547
    %3797 = vmatpush2.bf16.msra.mxu0 %v2546
    %3798 = vmatprep.subr.bf16.mxu0 %v2543
    %3799 = vmatpush2.bf16.msra.mxu0 %v2542
    %3800 = vmatprep.subr.bf16.mxu0 %v2539
    %3801 = vmatpush2.bf16.msra.mxu0 %v2538
    %3802 = vmatprep.subr.bf16.mxu0 %v2535
    %3803 = vmatpush2.bf16.msra.mxu0 %v2534
    %3804 = vmatprep.subr.bf16.mxu0 %v2531
    %3805 = vmatpush2.bf16.msra.mxu0 %v2530
    %3806 = vmatprep.subr.bf16.mxu0 %v2527
    %3807 = vmatpush2.bf16.msra.mxu0 %v2526
    %3808 = vmatprep.mubr.bf16.mxu0 %v677
    %3809 = vmatmul.mubr.bf16.gmra.mxu0 %v676
    %v3810 = vpop.f32.mrf.mxu0
    %v3811 = vadd.f32 %v3768, %v3810
    %v3812 = vpop.f32.mrf.mxu0
    %v3813 = vadd.f32 %v3770, %v3812
    %v3814 = vpop.f32.mrf.mxu0
    %v3815 = vadd.f32 %v3772, %v3814
    %v3816 = vpop.f32.mrf.mxu0
    %v3817 = vadd.f32 %v3774, %v3816
    %3818 = vdwg.mxu0
    %3819 = vmatprep.subr.bf16.mxu0 %v2587
    %3820 = vmatpush1.bf16.msra.mxu0 %v2586
    %3821 = vmatprep.subr.bf16.mxu0 %v2583
    %3822 = vmatpush1.bf16.msra.mxu0 %v2582
    %3823 = vmatprep.subr.bf16.mxu0 %v2579
    %3824 = vmatpush1.bf16.msra.mxu0 %v2578
    %3825 = vmatprep.subr.bf16.mxu0 %v2575
    %3826 = vmatpush1.bf16.msra.mxu0 %v2574
    %3827 = vmatprep.subr.bf16.mxu0 %v2571
    %3828 = vmatpush1.bf16.msra.mxu0 %v2570
    %3829 = vmatprep.subr.bf16.mxu0 %v2567
    %3830 = vmatpush1.bf16.msra.mxu0 %v2566
    %3831 = vmatprep.subr.bf16.mxu0 %v2563
    %3832 = vmatpush1.bf16.msra.mxu0 %v2562
    %3833 = vmatprep.subr.bf16.mxu0 %v2559
    %3834 = vmatpush1.bf16.msra.mxu0 %v2558
    %3835 = vmatprep.subr.bf16.mxu0 %v2619
    %3836 = vmatpush2.bf16.msra.mxu0 %v2618
    %3837 = vmatprep.subr.bf16.mxu0 %v2615
    %3838 = vmatpush2.bf16.msra.mxu0 %v2614
    %3839 = vmatprep.subr.bf16.mxu0 %v2611
    %3840 = vmatpush2.bf16.msra.mxu0 %v2610
    %3841 = vmatprep.subr.bf16.mxu0 %v2607
    %3842 = vmatpush2.bf16.msra.mxu0 %v2606
    %3843 = vmatprep.subr.bf16.mxu0 %v2603
    %3844 = vmatpush2.bf16.msra.mxu0 %v2602
    %3845 = vmatprep.subr.bf16.mxu0 %v2599
    %3846 = vmatpush2.bf16.msra.mxu0 %v2598
    %3847 = vmatprep.subr.bf16.mxu0 %v2595
    %3848 = vmatpush2.bf16.msra.mxu0 %v2594
    %3849 = vmatprep.subr.bf16.mxu0 %v2591
    %3850 = vmatpush2.bf16.msra.mxu0 %v2590
    %3851 = vmatprep.mubr.bf16.mxu0 %v679
    %3852 = vmatmul.mubr.bf16.gmra.mxu0 %v678
    %v3853 = vpop.f32.mrf.mxu0
    %v3854 = vadd.f32 %v3811, %v3853
    %v3855 = vpop.f32.mrf.mxu0
    %v3856 = vadd.f32 %v3813, %v3855
    %v3857 = vpop.f32.mrf.mxu0
    %v3858 = vadd.f32 %v3815, %v3857
    %v3859 = vpop.f32.mrf.mxu0
    %v3860 = vadd.f32 %v3817, %v3859
    %3861 = vdwg.mxu0
    %3862 = vmatprep.subr.bf16.mxu0 %v2651
    %3863 = vmatpush1.bf16.msra.mxu0 %v2650
    %3864 = vmatprep.subr.bf16.mxu0 %v2647
    %3865 = vmatpush1.bf16.msra.mxu0 %v2646
    %3866 = vmatprep.subr.bf16.mxu0 %v2643
    %3867 = vmatpush1.bf16.msra.mxu0 %v2642
    %3868 = vmatprep.subr.bf16.mxu0 %v2639
    %3869 = vmatpush1.bf16.msra.mxu0 %v2638
    %3870 = vmatprep.subr.bf16.mxu0 %v2635
    %3871 = vmatpush1.bf16.msra.mxu0 %v2634
    %3872 = vmatprep.subr.bf16.mxu0 %v2631
    %3873 = vmatpush1.bf16.msra.mxu0 %v2630
    %3874 = vmatprep.subr.bf16.mxu0 %v2627
    %3875 = vmatpush1.bf16.msra.mxu0 %v2626
    %3876 = vmatprep.subr.bf16.mxu0 %v2623
    %3877 = vmatpush1.bf16.msra.mxu0 %v2622
    %3878 = vmatprep.subr.bf16.mxu0 %v2683
    %3879 = vmatpush2.bf16.msra.mxu0 %v2682
    %3880 = vmatprep.subr.bf16.mxu0 %v2679
    %3881 = vmatpush2.bf16.msra.mxu0 %v2678
    %3882 = vmatprep.subr.bf16.mxu0 %v2675
    %3883 = vmatpush2.bf16.msra.mxu0 %v2674
    %3884 = vmatprep.subr.bf16.mxu0 %v2671
    %3885 = vmatpush2.bf16.msra.mxu0 %v2670
    %3886 = vmatprep.subr.bf16.mxu0 %v2667
    %3887 = vmatpush2.bf16.msra.mxu0 %v2666
    %3888 = vmatprep.subr.bf16.mxu0 %v2663
    %3889 = vmatpush2.bf16.msra.mxu0 %v2662
    %3890 = vmatprep.subr.bf16.mxu0 %v2659
    %3891 = vmatpush2.bf16.msra.mxu0 %v2658
    %3892 = vmatprep.subr.bf16.mxu0 %v2655
    %3893 = vmatpush2.bf16.msra.mxu0 %v2654
    %3894 = vmatprep.mubr.bf16.mxu0 %v681
    %3895 = vmatmul.mubr.bf16.gmra.mxu0 %v680
    %v3896 = vpop.f32.mrf.mxu0
    %v3897 = vadd.f32 %v3854, %v3896
    %v3898 = vpop.f32.mrf.mxu0
    %v3899 = vadd.f32 %v3856, %v3898
    %v3900 = vpop.f32.mrf.mxu0
    %v3901 = vadd.f32 %v3858, %v3900
    %v3902 = vpop.f32.mrf.mxu0
    %v3903 = vadd.f32 %v3860, %v3902
    %3904 = vdwg.mxu0
    %3905 = vmatprep.subr.bf16.mxu0 %v2715
    %3906 = vmatpush1.bf16.msra.mxu0 %v2714
    %3907 = vmatprep.subr.bf16.mxu0 %v2711
    %3908 = vmatpush1.bf16.msra.mxu0 %v2710
    %3909 = vmatprep.subr.bf16.mxu0 %v2707
    %3910 = vmatpush1.bf16.msra.mxu0 %v2706
    %3911 = vmatprep.subr.bf16.mxu0 %v2703
    %3912 = vmatpush1.bf16.msra.mxu0 %v2702
    %3913 = vmatprep.subr.bf16.mxu0 %v2699
    %3914 = vmatpush1.bf16.msra.mxu0 %v2698
    %3915 = vmatprep.subr.bf16.mxu0 %v2695
    %3916 = vmatpush1.bf16.msra.mxu0 %v2694
    %3917 = vmatprep.subr.bf16.mxu0 %v2691
    %3918 = vmatpush1.bf16.msra.mxu0 %v2690
    %3919 = vmatprep.subr.bf16.mxu0 %v2687
    %3920 = vmatpush1.bf16.msra.mxu0 %v2686
    %3921 = vmatprep.subr.bf16.mxu0 %v2747
    %3922 = vmatpush2.bf16.msra.mxu0 %v2746
    %3923 = vmatprep.subr.bf16.mxu0 %v2743
    %3924 = vmatpush2.bf16.msra.mxu0 %v2742
    %3925 = vmatprep.subr.bf16.mxu0 %v2739
    %3926 = vmatpush2.bf16.msra.mxu0 %v2738
    %3927 = vmatprep.subr.bf16.mxu0 %v2735
    %3928 = vmatpush2.bf16.msra.mxu0 %v2734
    %3929 = vmatprep.subr.bf16.mxu0 %v2731
    %3930 = vmatpush2.bf16.msra.mxu0 %v2730
    %3931 = vmatprep.subr.bf16.mxu0 %v2727
    %3932 = vmatpush2.bf16.msra.mxu0 %v2726
    %3933 = vmatprep.subr.bf16.mxu0 %v2723
    %3934 = vmatpush2.bf16.msra.mxu0 %v2722
    %3935 = vmatprep.subr.bf16.mxu0 %v2719
    %3936 = vmatpush2.bf16.msra.mxu0 %v2718
    %3937 = vmatprep.mubr.bf16.mxu0 %v683
    %3938 = vmatmul.mubr.bf16.gmra.mxu0 %v682
    %v3939 = vpop.f32.mrf.mxu0
    %v3940 = vadd.f32 %v3897, %v3939
    %v3941 = vpop.f32.mrf.mxu0
    %v3942 = vadd.f32 %v3899, %v3941
    %v3943 = vpop.f32.mrf.mxu0
    %v3944 = vadd.f32 %v3901, %v3943
    %v3945 = vpop.f32.mrf.mxu0
    %v3946 = vadd.f32 %v3903, %v3945
    %3947 = vdwg.mxu0
    %v3948 = vadd.f32 %v84, %v3596
    %v3949 = vadd.f32 %v85, %v3598
    %v3950 = vadd.f32 %v86, %v3940
    %v3951 = vadd.f32 %v87, %v3942
    %v3952 = vadd.f32 %v88, %v3600
    %v3953 = vadd.f32 %v89, %v3602
    %v3954 = vadd.f32 %v90, %v3944
    %v3955 = vadd.f32 %v91, %v3946
    %3956 = vst [vmem:[#allocation2] sm:$0xff] %v3948
    %3957 = vst [vmem:[#allocation2 + $0x8] sm:$0xff] %v3949
    %3958 = vst [vmem:[#allocation2 + $0x10] sm:$0xff] %v3950
    %3959 = vst [vmem:[#allocation2 + $0x18] sm:$0xff] %v3951
    %3960 = vst [vmem:[#allocation2 + $0x20] sm:$0xff] %v3952
    %3961 = vst [vmem:[#allocation2 + $0x28] sm:$0xff] %v3953
    %3962 = vst [vmem:[#allocation2 + $0x30] sm:$0xff] %v3954
    %3963 = vst [vmem:[#allocation2 + $0x38] sm:$0xff] %v3955
    // Predicated region
    $region42: #{tpu_custom_call.1} parent=1 // pred_check
      %p3964 = pneg %p72
    $region43: #{tpu_custom_call.1} parent=1 // pred_check_branch
      %3966 = sbr.rel (%p3964) target = $region45
    $region44: #{tpu_custom_call.1} parent=1 // pred_region
      %v3967 = vld [vmem:[#allocation2] sm:$0xff]
      %v3968 = vld [vmem:[#allocation2 + $0x8] sm:$0xff]
      %v3969 = vld [vmem:[#allocation2 + $0x10] sm:$0xff]
      %v3970 = vld [vmem:[#allocation2 + $0x18] sm:$0xff]
      %v3971 = vld [vmem:[#allocation2 + $0x20] sm:$0xff]
      %v3972 = vld [vmem:[#allocation2 + $0x28] sm:$0xff]
      %v3973 = vld [vmem:[#allocation2 + $0x30] sm:$0xff]
      %v3974 = vld [vmem:[#allocation2 + $0x38] sm:$0xff]
      %v3975 = vld [vmem:[#allocation8] sm:$0xf]
      %v3977 = vlaneseq
      %v3978 = vshrl.u32 %v3977, 7
      %v3979 = vsub.s32 0, %v3978
      %v3980 = vrot.slane %v3975, %v3979
      %v3981 = vlaneseq
      %v3982 = vshrl.u32 %v3981, 7
      %v3983 = vsub.s32 1, %v3982
      %v3984 = vrot.slane %v3975, %v3983
      %v3985 = vlaneseq
      %v3986 = vshrl.u32 %v3985, 7
      %v3987 = vsub.s32 2, %v3986
      %v3988 = vrot.slane %v3975, %v3987
      %v3989 = vlaneseq
      %v3990 = vshrl.u32 %v3989, 7
      %v3991 = vsub.s32 3, %v3990
      %v3992 = vrot.slane %v3975, %v3991
      %v3997 = vadd.f32 %v3967, %v3980
      %v3998 = vadd.f32 %v3968, %v3984
      %v3999 = vadd.f32 %v3969, %v3988
      %v4000 = vadd.f32 %v3970, %v3992
      %v4001 = vadd.f32 %v3971, %v3980
      %v4002 = vadd.f32 %v3972, %v3984
      %v4003 = vadd.f32 %v3973, %v3988
      %v4004 = vadd.f32 %v3974, %v3992
      %v4005 = vmax.f32 %v3997, 0.0
      %v4006 = vmax.f32 %v3998, 0.0
      %v4007 = vmax.f32 %v3999, 0.0
      %v4008 = vmax.f32 %v4000, 0.0
      %v4009 = vmax.f32 %v4001, 0.0
      %v4010 = vmax.f32 %v4002, 0.0
      %v4011 = vmax.f32 %v4003, 0.0
      %v4012 = vmax.f32 %v4004, 0.0
      %v4013 = vld [vmem:[#allocation9] sm:$0xf]
      %v4015 = vlaneseq
      %v4016 = vshrl.u32 %v4015, 7
      %v4017 = vsub.s32 0, %v4016
      %v4018 = vrot.slane %v4013, %v4017
      %v4019 = vlaneseq
      %v4020 = vshrl.u32 %v4019, 7
      %v4021 = vsub.s32 1, %v4020
      %v4022 = vrot.slane %v4013, %v4021
      %v4023 = vlaneseq
      %v4024 = vshrl.u32 %v4023, 7
      %v4025 = vsub.s32 2, %v4024
      %v4026 = vrot.slane %v4013, %v4025
      %v4027 = vlaneseq
      %v4028 = vshrl.u32 %v4027, 7
      %v4029 = vsub.s32 3, %v4028
      %v4030 = vrot.slane %v4013, %v4029
      %v4035 = vmul.f32 %v4005, %v4018
      %v4036 = vmul.f32 %v4006, %v4022
      %v4037 = vmul.f32 %v4007, %v4026
      %v4038 = vmul.f32 %v4008, %v4030
      %v4039 = vmul.f32 %v4009, %v4018
      %v4040 = vmul.f32 %v4010, %v4022
      %v4041 = vmul.f32 %v4011, %v4026
      %v4042 = vmul.f32 %v4012, %v4030
      %v4043 = vadd.f32 %v4035, %v4036
      %v4044 = vadd.f32 %v4043, %v4037
      %v4045 = vadd.f32 %v4044, %v4038
      %4046 = vadd.xlane.f32.xlu0 %v4045
      %v4047 = vpop.xlane.xlu0 %4046
      %v4048 = vadd.f32 %v4039, %v4040
      %v4049 = vadd.f32 %v4048, %v4041
      %v4050 = vadd.f32 %v4049, %v4042
      %4051 = vadd.xlane.f32.xlu0 %v4050
      %v4052 = vpop.xlane.xlu0 %4051
      %s4053 = sld [smem:[#allocation3]]
      %v4054 = vstv %s4053
      %v4055 = vadd.f32 %v4047, %v4054
      %v4056 = vadd.f32 %v4052, %v4054
      %v4057 = vtanh.pop %v4055
      %v4058 = vtanh.pop %v4056
      %vm4059 = vcmask 7168
      %4060 = vst.msk [vmem:[%s5] sm:$0xff] %vm4059, %v4057
      %4061 = vst.msk [vmem:[%s5 + $0x8] sm:$0xff] %vm4059, %v4058
    $region45: #{tpu_custom_call.1} parent=1 // pred_fallthru
      _
    // Predicated region
    $region46: #{tpu_custom_call.1} parent=1 // pred_check
      _
    $region47: #{tpu_custom_call.1} parent=1 // pred_check_branch
      %4063 = sbr.rel (0) target = $region49
    $region48: #{tpu_custom_call.1} parent=1 // pred_region
      _
    $region49: #{tpu_custom_call.1} parent=1 // pred_fallthru
      _
    // Predicated region
    $region50: #{tpu_custom_call.1} parent=1 // pred_check
      _
    $region51: #{tpu_custom_call.1} parent=1 // pred_check_branch
      %4065 = sbr.rel (0) target = $region53
    $region52: #{tpu_custom_call.1} parent=1 // pred_region
      _
    $region53: #{tpu_custom_call.1} parent=1 // pred_fallthru
      _
    %4066 = vsyncpa [#allocation5], 1
    %4067 = vsyncpa [#allocation7], 1
    %4068 = vsyncpa [#allocation10], 1

</llo_original>
